<compile_context>
chip_gen: v7x
topology: tpu7x:2x2x1
jax: 0.10.0
libtpu: 0.0.40
codegen_flags: <defaults>
</compile_context>

<pallas_src>
import functools
import math

import jax
import jax.numpy as jnp
import numpy as np
from jax import lax
from jax.experimental import pallas as pl
from jax.experimental.pallas import tpu as pltpu

NEG_INF = -1e9
LN_EPS = 1e-5  # torch.nn.LayerNorm default


def _vmem_spec():
    return pl.BlockSpec(memory_space=pltpu.MemorySpace.VMEM)


# -----------------------------------------------------------------------------
# Fused kernel: frontend + all transformer blocks
# -----------------------------------------------------------------------------
def _melody_encoder_kernel(emb_ref, nmt_ref, k_ref, wlin_ref, blin_ref, pos_ref,
                           mask_ref,
                           wqkv_ref, bqkv_ref, woq_ref, woc_ref, bo_ref,
                           g1_ref, be1_ref, w1_ref, bf1_ref, w2_ref, bf2_ref,
                           g2_ref, be2_ref,
                           out_ref, attn_ref,
                           *, batch, seq, d_model, heads, n_layers):
    d_h = d_model // heads

    # ---- Frontend: Compress.mean + Linear(hidden//2->hidden) + cat + pos ----
    rows = []
    for b in range(batch):                       # B=2, statically unrolled
        nm_t = nmt_ref[b]                        # (Sn, T) f32
        emb_b = emb_ref[b]                       # (T, E) f32
        acc = jnp.dot(nm_t, emb_b, preferred_element_type=jnp.float32)  # (Sn, E)
        msum = jnp.sum(nm_t, axis=1, keepdims=True)                     # (Sn, 1)
        msum = jnp.where(msum == 0.0, jnp.ones_like(msum), msum)
        mean = acc / msum
        note = jnp.dot(mean.astype(jnp.bfloat16), wlin_ref[...],
                       preferred_element_type=jnp.float32) + blin_ref[...]
        # cat([k, notes], dim=0) + alpha * pe  -> (S, D)
        rows.append(jnp.concatenate([k_ref[b], note], axis=0) + pos_ref[...])
    x = jnp.concatenate(rows, axis=0)            # (B*S, D) f32, stays resident

    # ---- Transformer blocks (statically unrolled over layers) ----
    for l in range(n_layers):
        xb = x.astype(jnp.bfloat16)
        # Fused QKV projection, all batches folded into the row dimension.
        qkv = (jnp.dot(xb, wqkv_ref[l], preferred_element_type=jnp.float32)
               + bqkv_ref[l])                    # (B*S, 3D); wq/bq pre-scaled

        ctx_rows = []
        for b in range(batch):
            r0 = b * seq
            q_b = qkv[r0:r0 + seq, 0:d_model]
            k_b = qkv[r0:r0 + seq, d_model:2 * d_model]
            v_b = qkv[r0:r0 + seq, 2 * d_model:3 * d_model]
            mask_row = jnp.broadcast_to(mask_ref[b], (seq, seq))   # key mask

            ctx_h, p_h = [], []
            for h in range(heads):               # H=4, statically unrolled
                c0 = h * d_h
                qh = q_b[:, c0:c0 + d_h].astype(jnp.bfloat16)
                kh = k_b[:, c0:c0 + d_h].astype(jnp.bfloat16)
                vh = v_b[:, c0:c0 + d_h].astype(jnp.bfloat16)
                # scores = q @ k^T without an explicit transpose.
                s = lax.dot_general(qh, kh, (((1,), (1,)), ((), ())),
                                    preferred_element_type=jnp.float32)
                s = jnp.where(mask_row > 0.0, s, jnp.full_like(s, NEG_INF))
                m = jnp.max(s, axis=-1, keepdims=True)
                e = jnp.exp(s - m)
                p = e * pl.reciprocal(jnp.sum(e, axis=-1, keepdims=True),
                                      approx=True)
                ctx_h.append(jnp.dot(p.astype(jnp.bfloat16), vh,
                                     preferred_element_type=jnp.float32))
                p_h.append(p)
            # Only the last block's attention leaves the kernel (matches PyTorch:
            # attn = transformer_blocks[-1].attention.attention.attn).
            if l == n_layers - 1:
                attn_ref[b] = jnp.concatenate(p_h, axis=-1).astype(attn_ref.dtype)
            ctx_rows.append(jnp.concatenate(ctx_h, axis=-1))       # (S, D)
        ctx = jnp.concatenate(ctx_rows, axis=0)                    # (B*S, D)

        # output_linear(cat([query, ctx])) split matmul + residual + LayerNorm.
        y = (jnp.dot(xb, woq_ref[l], preferred_element_type=jnp.float32)
             + jnp.dot(ctx.astype(jnp.bfloat16), woc_ref[l],
                       preferred_element_type=jnp.float32)
             + bo_ref[l])
        h1 = y + x
        mu1 = jnp.mean(h1, axis=-1, keepdims=True)
        d1 = h1 - mu1
        var1 = jnp.mean(d1 * d1, axis=-1, keepdims=True)
        h1n = d1 * lax.rsqrt(var1 + LN_EPS) * g1_ref[l] + be1_ref[l]

        # FFN: 1x1 convs == linears, LeakyReLU(0.2), residual + LayerNorm.
        a1 = (jnp.dot(h1n.astype(jnp.bfloat16), w1_ref[l],
                      preferred_element_type=jnp.float32) + bf1_ref[l])
        a1 = jnp.where(a1 >= 0.0, a1, 0.2 * a1)
        a2 = (jnp.dot(a1.astype(jnp.bfloat16), w2_ref[l],
                      preferred_element_type=jnp.float32) + bf2_ref[l])
        h2 = a2 + h1n
        mu2 = jnp.mean(h2, axis=-1, keepdims=True)
        d2 = h2 - mu2
        var2 = jnp.mean(d2 * d2, axis=-1, keepdims=True)
        x = d2 * lax.rsqrt(var2 + LN_EPS) * g2_ref[l] + be2_ref[l]

    out_ref[...] = x.astype(out_ref.dtype)


# -----------------------------------------------------------------------------
# Parameter packing / positional tables
# -----------------------------------------------------------------------------
def positional_table(max_len, d_model):
    position = np.arange(max_len, dtype=np.float32)[:, None]
    div_term = np.exp(np.arange(0, d_model, 2, dtype=np.float32)
                      * -(math.log(10000.0) / d_model))
    pe = np.zeros((max_len, d_model), dtype=np.float32)
    pe[:, 0::2] = np.sin(position * div_term)
    pe[:, 1::2] = np.cos(position * div_term)
    return jnp.asarray(pe)


def pack_layer_params(lp, *, heads):
    D = lp["wq"].shape[0]
    d_h = D // heads
    scale = 1.0 / math.sqrt(d_h)            # fold score scale into wq / bq
    bf, f32 = jnp.bfloat16, jnp.float32
    return {
        "w_qkv": jnp.concatenate([lp["wq"] * scale, lp["wk"], lp["wv"]],
                                 axis=1).astype(bf),
        "b_qkv": jnp.concatenate([lp["bq"] * scale, lp["bk"], lp["bv"]]
                                 ).reshape(1, 3 * D).astype(f32),
        "w_o_q": lp["wo"][:D].astype(bf),
        "w_o_c": lp["wo"][D:].astype(bf),
        "b_o": lp["bo"].reshape(1, D).astype(f32),
        "ln1_g": lp["ln1_g"].reshape(1, D).astype(f32),
        "ln1_b": lp["ln1_b"].reshape(1, D).astype(f32),
        "w_ffn1": lp["w1"].astype(bf),
        "b_ffn1": lp["b1"].reshape(1, -1).astype(f32),
        "w_ffn2": lp["w2"].astype(bf),
        "b_ffn2": lp["b2"].reshape(1, D).astype(f32),
        "ln2_g": lp["ln2_g"].reshape(1, D).astype(f32),
        "ln2_b": lp["ln2_b"].reshape(1, D).astype(f32),
    }


def stack_layer_params(layers_raw, *, heads):
    packed = [pack_layer_params(lp, heads=heads) for lp in layers_raw]
    return {k: jnp.stack([p[k] for p in packed], axis=0) for k in packed[0]}


# -----------------------------------------------------------------------------
# Full forward (Pallas) — one pallas_call for the whole encoder
# -----------------------------------------------------------------------------
def melody_encoder_pallas(x_tok, k, nm, cm, params, *, heads):
    B, T = x_tok.shape
    Sn = nm.shape[-1]
    S = Sn + 1
    D = params["w_lin"].shape[-1]
    st = params["layers_stacked"]
    n_layers = int(st["w_qkv"].shape[0])

    # pitch-class normalization + embedding gather + scaled frame positional.
    x_norm = jnp.where(x_tok == 88, 12, (x_tok + 21) % 12)
    # TODO(synk): the nn.Embedding gather is data-dependent and tiny; left to XLA.
    emb = params["emb_table"][x_norm] + params["alpha_frame"] * params["pe_half"][:T]
    pos_scaled = params["alpha_pos"] * params["pe_full"][:S]

    # non-causal key mask from the chord features (same per head / query row).
    cm_ = jnp.concatenate([cm[:, :1], cm], axis=1)
    key_mask = jnp.sign(jnp.abs(jnp.sum(cm_, axis=-1)))          # (B, S)

    nm_t = jnp.transpose(nm, (0, 2, 1))          # (B, Sn, T), done by XLA

    args = (emb.astype(jnp.float32),
            nm_t.astype(jnp.float32),
            k.reshape(B, 1, D).astype(jnp.float32),
            params["w_lin"].astype(jnp.bfloat16),
            params["b_lin"].reshape(1, D).astype(jnp.float32),
            pos_scaled.astype(jnp.float32),
            key_mask.reshape(B, 1, S).astype(jnp.float32),
            st["w_qkv"], st["b_qkv"], st["w_o_q"], st["w_o_c"], st["b_o"],
            st["ln1_g"], st["ln1_b"], st["w_ffn1"], st["b_ffn1"],
            st["w_ffn2"], st["b_ffn2"], st["ln2_g"], st["ln2_b"])

    out2, attn_lane = pl.pallas_call(
        functools.partial(_melody_encoder_kernel, batch=B, seq=S, d_model=D,
                          heads=heads, n_layers=n_layers),
        out_shape=(jax.ShapeDtypeStruct((B * S, D), jnp.float32),
                   jax.ShapeDtypeStruct((B, S, heads * S), jnp.float32)),
        in_specs=[_vmem_spec()] * len(args),
        out_specs=(_vmem_spec(), _vmem_spec()),
    )(*args)

    note_out = out2.reshape(B, S, D)
    attn = attn_lane.reshape(B, S, heads, S).transpose(0, 2, 1, 3)  # (B, H, S, S)
    return note_out, attn


# -----------------------------------------------------------------------------
# Pure-JAX reference mirroring the PyTorch forward (f32 everywhere)
# -----------------------------------------------------------------------------
def melody_encoder_reference(x_tok, k, nm, cm, params, *, heads):
    B, T = x_tok.shape
    hidden = params["w_lin"].shape[-1]
    d_h = hidden // heads
    Sn = nm.shape[-1]
    S = Sn + 1

    x_norm = jnp.where(x_tok == 88, 12, (x_tok + 21) % 12)
    emb = params["emb_table"][x_norm] + params["alpha_frame"] * params["pe_half"][:T]

    comp = jnp.einsum("bte,bts->bse", emb, nm)
    msum = jnp.sum(nm, axis=1)[..., None]
    msum = jnp.where(msum == 0.0, jnp.ones_like(msum), msum)
    note = comp / msum
    note = note @ params["w_lin"] + params["b_lin"]
    note = jnp.concatenate([k[:, None, :], note], axis=1)
    note = note + params["alpha_pos"] * params["pe_full"][:S]

    cm_ = jnp.concatenate([cm[:, :1], cm], axis=1)
    seq_mask = jnp.sign(jnp.abs(jnp.sum(cm_, axis=-1)))          # (B, S)
    mask4 = jnp.broadcast_to(seq_mask[:, None, None, :], (B, heads, S, S))

    def layer_norm(x, g, b):
        mu = jnp.mean(x, axis=-1, keepdims=True)
        var = jnp.mean((x - mu) ** 2, axis=-1, keepdims=True)
        return (x - mu) / jnp.sqrt(var + LN_EPS) * g + b

    attn = None
    for lp in params["layers_raw"]:
        def proj(xx, w, bvec):
            y = xx @ w + bvec
            return y.reshape(B, S, heads, d_h).transpose(0, 2, 1, 3)

        Q = proj(note, lp["wq"], lp["bq"])
        K = proj(note, lp["wk"], lp["bk"])
        V = proj(note, lp["wv"], lp["bv"])
        scores = jnp.einsum("bhqd,bhkd->bhqk", Q, K) / math.sqrt(d_h)
        scores = jnp.where(mask4 == 0.0, NEG_INF, scores)
        p = jax.nn.softmax(scores, axis=-1)
        attn = p
        ctx = jnp.einsum("bhqk,bhkd->bhqd", p, V)
        ctx = ctx.transpose(0, 2, 1, 3).reshape(B, S, hidden)
        qx = jnp.concatenate([note, ctx], axis=-1)
        res = qx @ lp["wo"] + lp["bo"] + note
        res = layer_norm(res, lp["ln1_g"], lp["ln1_b"])
        a1 = res @ lp["w1"] + lp["b1"]
        a1 = jnp.where(a1 >= 0.0, a1, 0.2 * a1)
        a2 = a1 @ lp["w2"] + lp["b2"]
        note = layer_norm(a2 + res, lp["ln2_g"], lp["ln2_b"])
    return note, attn


# -----------------------------------------------------------------------------
# Deterministic synthetic parameters
# -----------------------------------------------------------------------------
def init_params(key, *, hidden, heads, n_layers, max_len=64):
    half = hidden // 2
    keys = iter(jax.random.split(key, 64))

    def nxt():
        return next(keys)

    def lin(fan_in, fan_out):
        s = 1.0 / math.sqrt(fan_in)
        return jax.random.uniform(nxt(), (fan_in, fan_out), jnp.float32, -s, s)

    def bias(fan_in, fan_out):
        s = 1.0 / math.sqrt(fan_in)
        return jax.random.uniform(nxt(), (fan_out,), jnp.float32, -s, s)

    layers_raw = []
    for _ in range(n_layers):
        lp = {
            "wq": lin(hidden, hidden), "bq": bias(hidden, hidden),
            "wk": lin(hidden, hidden), "bk": bias(hidden, hidden),
            "wv": lin(hidden, hidden), "bv": bias(hidden, hidden),
            "wo": lin(2 * hidden, hidden), "bo": bias(2 * hidden, hidden),
            "ln1_g": 1.0 + 0.1 * jax.random.normal(nxt(), (hidden,), jnp.float32),
            "ln1_b": 0.1 * jax.random.normal(nxt(), (hidden,), jnp.float32),
            "w1": lin(hidden, 4 * hidden), "b1": bias(hidden, 4 * hidden),
            "w2": lin(4 * hidden, hidden), "b2": bias(4 * hidden, hidden),
            "ln2_g": 1.0 + 0.1 * jax.random.normal(nxt(), (hidden,), jnp.float32),
            "ln2_b": 0.1 * jax.random.normal(nxt(), (hidden,), jnp.float32),
        }
        layers_raw.append(lp)

    params = {
        "emb_table": jax.random.normal(nxt(), (13, half), jnp.float32),
        "alpha_frame": jax.random.uniform(nxt(), (), jnp.float32, 0.5, 1.5),
        "alpha_pos": jax.random.uniform(nxt(), (), jnp.float32, 0.5, 1.5),
        "w_lin": lin(half, hidden),
        "b_lin": bias(half, hidden),
        "pe_half": positional_table(max_len, half),
        "pe_full": positional_table(max_len, hidden),
        "layers_raw": layers_raw,
        "layers_stacked": stack_layer_params(layers_raw, heads=heads),
    }
    return params


if __name__ == "__main__":
    B, T, SN, HIDDEN, HEADS, N_LAYERS = 2, 16, 7, 32, 4, 2
    S = SN + 1

    root = jax.random.PRNGKey(0)
    k_par, k_x, k_k, k_cm = jax.random.split(root, 4)
    params = init_params(k_par, hidden=HIDDEN, heads=HEADS, n_layers=N_LAYERS)

    # MIDI-like pitch tokens in [0, 88]; 88 is the rest symbol.
    x_tok = jax.random.randint(k_x, (B, T), 0, 89, dtype=jnp.int32)
    k_vec = jax.random.normal(k_k, (B, HIDDEN), jnp.float32)

    # Frame -> note membership mask (the last note gets no frames, exercising the
    # zero-count guard of Compress.mean).
    frame_note = np.minimum(np.arange(T) // 3, SN - 1)
    nm_np = np.zeros((B, T, SN), np.float32)
    nm_np[:, np.arange(T), frame_note] = 1.0
    nm = jnp.asarray(nm_np)

    # Per-note chord features; zero the last two notes of batch 1 so the key mask
    # actually masks some attention keys.
    cm = jax.random.normal(k_cm, (B, SN, 4), jnp.float32)
    cm = cm.at[1, SN - 2:, :].set(0.0)

    note_out, attn_out = melody_encoder_pallas(x_tok, k_vec, nm, cm, params,
                                               heads=HEADS)
    jax.block_until_ready((note_out, attn_out))

    note_ref, attn_ref = melody_encoder_reference(x_tok, k_vec, nm, cm, params,
                                                  heads=HEADS)

    assert note_out.shape == (B, S, HIDDEN)
    assert attn_out.shape == (B, HEADS, S, S)
    # Tolerances account for bf16 MXU operands (f32 accumulation) and the
    # approximate EUP reciprocal in the softmax denominator.
    assert jnp.allclose(attn_out, attn_ref, rtol=5e-2, atol=3e-2), \
        float(jnp.max(jnp.abs(attn_out - attn_ref)))
    assert jnp.allclose(note_out, note_ref, rtol=8e-2, atol=8e-2), \
        float(jnp.max(jnp.abs(note_out - note_ref)))

    print("KERNEL_OK")
</pallas_src>

<mosaic_0001>
module attributes {stable_mosaic.version = 11 : i64} {
  func.func @_melody_encoder_kernel(%arg0: memref<2x16x16xf32, #tpu.memory_space<vmem>>, %arg1: memref<2x7x16xf32, #tpu.memory_space<vmem>>, %arg2: memref<2x1x32xf32, #tpu.memory_space<vmem>>, %arg3: memref<16x32xbf16, #tpu.memory_space<vmem>>, %arg4: memref<1x32xf32, #tpu.memory_space<vmem>>, %arg5: memref<8x32xf32, #tpu.memory_space<vmem>>, %arg6: memref<2x1x8xf32, #tpu.memory_space<vmem>>, %arg7: memref<2x32x96xbf16, #tpu.memory_space<vmem>>, %arg8: memref<2x1x96xf32, #tpu.memory_space<vmem>>, %arg9: memref<2x32x32xbf16, #tpu.memory_space<vmem>>, %arg10: memref<2x32x32xbf16, #tpu.memory_space<vmem>>, %arg11: memref<2x1x32xf32, #tpu.memory_space<vmem>>, %arg12: memref<2x1x32xf32, #tpu.memory_space<vmem>>, %arg13: memref<2x1x32xf32, #tpu.memory_space<vmem>>, %arg14: memref<2x32x128xbf16, #tpu.memory_space<vmem>>, %arg15: memref<2x1x128xf32, #tpu.memory_space<vmem>>, %arg16: memref<2x128x32xbf16, #tpu.memory_space<vmem>>, %arg17: memref<2x1x32xf32, #tpu.memory_space<vmem>>, %arg18: memref<2x1x32xf32, #tpu.memory_space<vmem>>, %arg19: memref<2x1x32xf32, #tpu.memory_space<vmem>>, %arg20: memref<16x32xf32, #tpu.memory_space<vmem>>, %arg21: memref<2x8x32xf32, #tpu.memory_space<vmem>>) attributes {dimension_semantics = [], scalar_prefetch = 0 : i64, scratch_operands = 0 : i64, tpu.core_type = #tpu.core_type<tc>} {
    %c0 = arith.constant 0 : index
    %c0_0 = arith.constant 0 : index
    %c0_1 = arith.constant 0 : index
    %0 = vector.load %arg1[%c0, %c0_0, %c0_1] : memref<2x7x16xf32, #tpu.memory_space<vmem>>, vector<1x7x16xf32>
    %1 = vector.shape_cast %0 : vector<1x7x16xf32> to vector<7x16xf32>
    %c0_2 = arith.constant 0 : index
    %c0_3 = arith.constant 0 : index
    %c0_4 = arith.constant 0 : index
    %2 = vector.load %arg0[%c0_2, %c0_3, %c0_4] : memref<2x16x16xf32, #tpu.memory_space<vmem>>, vector<1x16x16xf32>
    %3 = vector.shape_cast %2 : vector<1x16x16xf32> to vector<16x16xf32>
    %cst = arith.constant dense<0.000000e+00> : vector<7x16xf32>
    %4 = tpu.matmul %1, %3, %cst {dimension_numbers = #tpu.dot_dimension_numbers<[1], [0], [0], [1], [0, 0, 1, 1], [], []>} : vector<7x16xf32>, vector<16x16xf32>, vector<7x16xf32> -> vector<7x16xf32>
    %cst_5 = arith.constant dense<0.000000e+00> : vector<7xf32>
    %5 = vector.multi_reduction <add>, %1, %cst_5 [1] : vector<7x16xf32> to vector<7xf32>
    %6 = vector.shape_cast %5 : vector<7xf32> to vector<7x1xf32>
    %cst_6 = arith.constant 0.000000e+00 : f32
    %7 = vector.broadcast %cst_6 : f32 to vector<7x1xf32>
    %8 = arith.cmpf oeq, %6, %7 : vector<7x1xf32>
    %cst_7 = arith.constant 1.000000e+00 : f32
    %9 = vector.broadcast %cst_7 : f32 to vector<7x1xf32>
    %10 = arith.select %8, %9, %6 : vector<7x1xi1>, vector<7x1xf32>
    %11 = vector.broadcast %10 : vector<7x1xf32> to vector<7x16xf32>
    %12 = arith.divf %4, %11 : vector<7x16xf32>
    %13 = arith.truncf %12 : vector<7x16xf32> to vector<7x16xbf16>
    %c0_8 = arith.constant 0 : index
    %c0_9 = arith.constant 0 : index
    %14 = vector.load %arg3[%c0_8, %c0_9] : memref<16x32xbf16, #tpu.memory_space<vmem>>, vector<16x32xbf16>
    %cst_10 = arith.constant dense<0.000000e+00> : vector<7x32xf32>
    %15 = tpu.matmul %13, %14, %cst_10 {dimension_numbers = #tpu.dot_dimension_numbers<[1], [0], [0], [1], [0, 0, 1, 1], [], []>} : vector<7x16xbf16>, vector<16x32xbf16>, vector<7x32xf32> -> vector<7x32xf32>
    %c0_11 = arith.constant 0 : index
    %c0_12 = arith.constant 0 : index
    %16 = vector.load %arg4[%c0_11, %c0_12] : memref<1x32xf32, #tpu.memory_space<vmem>>, vector<1x32xf32>
    %17 = vector.broadcast %16 : vector<1x32xf32> to vector<7x32xf32>
    %18 = arith.addf %15, %17 : vector<7x32xf32>
    %c0_13 = arith.constant 0 : index
    %c0_14 = arith.constant 0 : index
    %c0_15 = arith.constant 0 : index
    %19 = vector.load %arg2[%c0_13, %c0_14, %c0_15] : memref<2x1x32xf32, #tpu.memory_space<vmem>>, vector<1x1x32xf32>
    %20 = vector.shape_cast %19 : vector<1x1x32xf32> to vector<1x32xf32>
    %21 = tpu.concatenate %20, %18 in 0 : vector<1x32xf32>, vector<7x32xf32> -> vector<8x32xf32>
    %c0_16 = arith.constant 0 : index
    %c0_17 = arith.constant 0 : index
    %22 = vector.load %arg5[%c0_16, %c0_17] : memref<8x32xf32, #tpu.memory_space<vmem>>, vector<8x32xf32>
    %23 = arith.addf %21, %22 : vector<8x32xf32>
    %c1 = arith.constant 1 : index
    %c0_18 = arith.constant 0 : index
    %c0_19 = arith.constant 0 : index
    %24 = vector.load %arg1[%c1, %c0_18, %c0_19] : memref<2x7x16xf32, #tpu.memory_space<vmem>>, vector<1x7x16xf32>
    %25 = vector.shape_cast %24 : vector<1x7x16xf32> to vector<7x16xf32>
    %c1_20 = arith.constant 1 : index
    %c0_21 = arith.constant 0 : index
    %c0_22 = arith.constant 0 : index
    %26 = vector.load %arg0[%c1_20, %c0_21, %c0_22] : memref<2x16x16xf32, #tpu.memory_space<vmem>>, vector<1x16x16xf32>
    %27 = vector.shape_cast %26 : vector<1x16x16xf32> to vector<16x16xf32>
    %cst_23 = arith.constant dense<0.000000e+00> : vector<7x16xf32>
    %28 = tpu.matmul %25, %27, %cst_23 {dimension_numbers = #tpu.dot_dimension_numbers<[1], [0], [0], [1], [0, 0, 1, 1], [], []>} : vector<7x16xf32>, vector<16x16xf32>, vector<7x16xf32> -> vector<7x16xf32>
    %cst_24 = arith.constant dense<0.000000e+00> : vector<7xf32>
    %29 = vector.multi_reduction <add>, %25, %cst_24 [1] : vector<7x16xf32> to vector<7xf32>
    %30 = vector.shape_cast %29 : vector<7xf32> to vector<7x1xf32>
    %cst_25 = arith.constant 0.000000e+00 : f32
    %31 = vector.broadcast %cst_25 : f32 to vector<7x1xf32>
    %32 = arith.cmpf oeq, %30, %31 : vector<7x1xf32>
    %cst_26 = arith.constant 1.000000e+00 : f32
    %33 = vector.broadcast %cst_26 : f32 to vector<7x1xf32>
    %34 = arith.select %32, %33, %30 : vector<7x1xi1>, vector<7x1xf32>
    %35 = vector.broadcast %34 : vector<7x1xf32> to vector<7x16xf32>
    %36 = arith.divf %28, %35 : vector<7x16xf32>
    %37 = arith.truncf %36 : vector<7x16xf32> to vector<7x16xbf16>
    %c0_27 = arith.constant 0 : index
    %c0_28 = arith.constant 0 : index
    %38 = vector.load %arg3[%c0_27, %c0_28] : memref<16x32xbf16, #tpu.memory_space<vmem>>, vector<16x32xbf16>
    %cst_29 = arith.constant dense<0.000000e+00> : vector<7x32xf32>
    %39 = tpu.matmul %37, %38, %cst_29 {dimension_numbers = #tpu.dot_dimension_numbers<[1], [0], [0], [1], [0, 0, 1, 1], [], []>} : vector<7x16xbf16>, vector<16x32xbf16>, vector<7x32xf32> -> vector<7x32xf32>
    %c0_30 = arith.constant 0 : index
    %c0_31 = arith.constant 0 : index
    %40 = vector.load %arg4[%c0_30, %c0_31] : memref<1x32xf32, #tpu.memory_space<vmem>>, vector<1x32xf32>
    %41 = vector.broadcast %40 : vector<1x32xf32> to vector<7x32xf32>
    %42 = arith.addf %39, %41 : vector<7x32xf32>
    %c1_32 = arith.constant 1 : index
    %c0_33 = arith.constant 0 : index
    %c0_34 = arith.constant 0 : index
    %43 = vector.load %arg2[%c1_32, %c0_33, %c0_34] : memref<2x1x32xf32, #tpu.memory_space<vmem>>, vector<1x1x32xf32>
    %44 = vector.shape_cast %43 : vector<1x1x32xf32> to vector<1x32xf32>
    %45 = tpu.concatenate %44, %42 in 0 : vector<1x32xf32>, vector<7x32xf32> -> vector<8x32xf32>
    %c0_35 = arith.constant 0 : index
    %c0_36 = arith.constant 0 : index
    %46 = vector.load %arg5[%c0_35, %c0_36] : memref<8x32xf32, #tpu.memory_space<vmem>>, vector<8x32xf32>
    %47 = arith.addf %45, %46 : vector<8x32xf32>
    %48 = tpu.concatenate %23, %47 in 0 : vector<8x32xf32>, vector<8x32xf32> -> vector<16x32xf32>
    %49 = arith.truncf %48 : vector<16x32xf32> to vector<16x32xbf16>
    %c0_37 = arith.constant 0 : index
    %c0_38 = arith.constant 0 : index
    %c0_39 = arith.constant 0 : index
    %50 = vector.load %arg7[%c0_37, %c0_38, %c0_39] : memref<2x32x96xbf16, #tpu.memory_space<vmem>>, vector<1x32x96xbf16>
    %51 = vector.shape_cast %50 : vector<1x32x96xbf16> to vector<32x96xbf16>
    %cst_40 = arith.constant dense<0.000000e+00> : vector<16x96xf32>
    %52 = tpu.matmul %49, %51, %cst_40 {dimension_numbers = #tpu.dot_dimension_numbers<[1], [0], [0], [1], [0, 0, 1, 1], [], []>} : vector<16x32xbf16>, vector<32x96xbf16>, vector<16x96xf32> -> vector<16x96xf32>
    %c0_41 = arith.constant 0 : index
    %c0_42 = arith.constant 0 : index
    %c0_43 = arith.constant 0 : index
    %53 = vector.load %arg8[%c0_41, %c0_42, %c0_43] : memref<2x1x96xf32, #tpu.memory_space<vmem>>, vector<1x1x96xf32>
    %54 = vector.shape_cast %53 : vector<1x1x96xf32> to vector<1x96xf32>
    %55 = vector.broadcast %54 : vector<1x96xf32> to vector<16x96xf32>
    %56 = arith.addf %52, %55 : vector<16x96xf32>
    %57 = vector.extract_strided_slice %56 {offsets = [0, 0], sizes = [8, 32], strides = [1, 1]} : vector<16x96xf32> to vector<8x32xf32>
    %58 = vector.extract_strided_slice %56 {offsets = [0, 32], sizes = [8, 32], strides = [1, 1]} : vector<16x96xf32> to vector<8x32xf32>
    %59 = vector.extract_strided_slice %56 {offsets = [0, 64], sizes = [8, 32], strides = [1, 1]} : vector<16x96xf32> to vector<8x32xf32>
    %c0_44 = arith.constant 0 : index
    %c0_45 = arith.constant 0 : index
    %c0_46 = arith.constant 0 : index
    %60 = vector.load %arg6[%c0_44, %c0_45, %c0_46] : memref<2x1x8xf32, #tpu.memory_space<vmem>>, vector<1x1x8xf32>
    %61 = vector.shape_cast %60 : vector<1x1x8xf32> to vector<1x8xf32>
    %62 = vector.shape_cast %61 : vector<1x8xf32> to vector<1x8xf32>
    %63 = vector.broadcast %62 : vector<1x8xf32> to vector<8x8xf32>
    %64 = vector.extract_strided_slice %57 {offsets = [0, 0], sizes = [8, 8], strides = [1, 1]} : vector<8x32xf32> to vector<8x8xf32>
    %65 = arith.truncf %64 : vector<8x8xf32> to vector<8x8xbf16>
    %66 = vector.extract_strided_slice %58 {offsets = [0, 0], sizes = [8, 8], strides = [1, 1]} : vector<8x32xf32> to vector<8x8xf32>
    %67 = arith.truncf %66 : vector<8x8xf32> to vector<8x8xbf16>
    %68 = vector.extract_strided_slice %59 {offsets = [0, 0], sizes = [8, 8], strides = [1, 1]} : vector<8x32xf32> to vector<8x8xf32>
    %69 = arith.truncf %68 : vector<8x8xf32> to vector<8x8xbf16>
    %cst_47 = arith.constant dense<0.000000e+00> : vector<8x8xf32>
    %70 = tpu.matmul %65, %67, %cst_47 {dimension_numbers = #tpu.dot_dimension_numbers<[1], [1], [0], [0], [0, 0, 1, 0], [], []>} : vector<8x8xbf16>, vector<8x8xbf16>, vector<8x8xf32> -> vector<8x8xf32>
    %cst_48 = arith.constant 0.000000e+00 : f32
    %71 = vector.broadcast %cst_48 : f32 to vector<8x8xf32>
    %72 = arith.cmpf ogt, %63, %71 : vector<8x8xf32>
    %cst_49 = arith.constant -1.000000e+09 : f32
    %73 = vector.broadcast %cst_49 : f32 to vector<8x8xf32>
    %74 = arith.select %72, %70, %73 : vector<8x8xi1>, vector<8x8xf32>
    %cst_50 = arith.constant dense<0xFF800000> : vector<8xf32>
    %75 = vector.multi_reduction <maximumf>, %74, %cst_50 [1] : vector<8x8xf32> to vector<8xf32>
    %76 = vector.shape_cast %75 : vector<8xf32> to vector<8x1xf32>
    %77 = vector.broadcast %76 : vector<8x1xf32> to vector<8x8xf32>
    %78 = arith.subf %74, %77 : vector<8x8xf32>
    %79 = math.exp %78 : vector<8x8xf32>
    %cst_51 = arith.constant dense<0.000000e+00> : vector<8xf32>
    %80 = vector.multi_reduction <add>, %79, %cst_51 [1] : vector<8x8xf32> to vector<8xf32>
    %81 = vector.shape_cast %80 : vector<8xf32> to vector<8x1xf32>
    %82 = tpu.reciprocal %81 {approx = true} : vector<8x1xf32> -> vector<8x1xf32>
    %83 = vector.broadcast %82 : vector<8x1xf32> to vector<8x8xf32>
    %84 = arith.mulf %79, %83 : vector<8x8xf32>
    %85 = arith.truncf %84 : vector<8x8xf32> to vector<8x8xbf16>
    %cst_52 = arith.constant dense<0.000000e+00> : vector<8x8xf32>
    %86 = tpu.matmul %85, %69, %cst_52 {dimension_numbers = #tpu.dot_dimension_numbers<[1], [0], [0], [1], [0, 0, 1, 1], [], []>} : vector<8x8xbf16>, vector<8x8xbf16>, vector<8x8xf32> -> vector<8x8xf32>
    %87 = vector.extract_strided_slice %57 {offsets = [0, 8], sizes = [8, 8], strides = [1, 1]} : vector<8x32xf32> to vector<8x8xf32>
    %88 = arith.truncf %87 : vector<8x8xf32> to vector<8x8xbf16>
    %89 = vector.extract_strided_slice %58 {offsets = [0, 8], sizes = [8, 8], strides = [1, 1]} : vector<8x32xf32> to vector<8x8xf32>
    %90 = arith.truncf %89 : vector<8x8xf32> to vector<8x8xbf16>
    %91 = vector.extract_strided_slice %59 {offsets = [0, 8], sizes = [8, 8], strides = [1, 1]} : vector<8x32xf32> to vector<8x8xf32>
    %92 = arith.truncf %91 : vector<8x8xf32> to vector<8x8xbf16>
    %cst_53 = arith.constant dense<0.000000e+00> : vector<8x8xf32>
    %93 = tpu.matmul %88, %90, %cst_53 {dimension_numbers = #tpu.dot_dimension_numbers<[1], [1], [0], [0], [0, 0, 1, 0], [], []>} : vector<8x8xbf16>, vector<8x8xbf16>, vector<8x8xf32> -> vector<8x8xf32>
    %cst_54 = arith.constant 0.000000e+00 : f32
    %94 = vector.broadcast %cst_54 : f32 to vector<8x8xf32>
    %95 = arith.cmpf ogt, %63, %94 : vector<8x8xf32>
    %cst_55 = arith.constant -1.000000e+09 : f32
    %96 = vector.broadcast %cst_55 : f32 to vector<8x8xf32>
    %97 = arith.select %95, %93, %96 : vector<8x8xi1>, vector<8x8xf32>
    %cst_56 = arith.constant dense<0xFF800000> : vector<8xf32>
    %98 = vector.multi_reduction <maximumf>, %97, %cst_56 [1] : vector<8x8xf32> to vector<8xf32>
    %99 = vector.shape_cast %98 : vector<8xf32> to vector<8x1xf32>
    %100 = vector.broadcast %99 : vector<8x1xf32> to vector<8x8xf32>
    %101 = arith.subf %97, %100 : vector<8x8xf32>
    %102 = math.exp %101 : vector<8x8xf32>
    %cst_57 = arith.constant dense<0.000000e+00> : vector<8xf32>
    %103 = vector.multi_reduction <add>, %102, %cst_57 [1] : vector<8x8xf32> to vector<8xf32>
    %104 = vector.shape_cast %103 : vector<8xf32> to vector<8x1xf32>
    %105 = tpu.reciprocal %104 {approx = true} : vector<8x1xf32> -> vector<8x1xf32>
    %106 = vector.broadcast %105 : vector<8x1xf32> to vector<8x8xf32>
    %107 = arith.mulf %102, %106 : vector<8x8xf32>
    %108 = arith.truncf %107 : vector<8x8xf32> to vector<8x8xbf16>
    %cst_58 = arith.constant dense<0.000000e+00> : vector<8x8xf32>
    %109 = tpu.matmul %108, %92, %cst_58 {dimension_numbers = #tpu.dot_dimension_numbers<[1], [0], [0], [1], [0, 0, 1, 1], [], []>} : vector<8x8xbf16>, vector<8x8xbf16>, vector<8x8xf32> -> vector<8x8xf32>
    %110 = vector.extract_strided_slice %57 {offsets = [0, 16], sizes = [8, 8], strides = [1, 1]} : vector<8x32xf32> to vector<8x8xf32>
    %111 = arith.truncf %110 : vector<8x8xf32> to vector<8x8xbf16>
    %112 = vector.extract_strided_slice %58 {offsets = [0, 16], sizes = [8, 8], strides = [1, 1]} : vector<8x32xf32> to vector<8x8xf32>
    %113 = arith.truncf %112 : vector<8x8xf32> to vector<8x8xbf16>
    %114 = vector.extract_strided_slice %59 {offsets = [0, 16], sizes = [8, 8], strides = [1, 1]} : vector<8x32xf32> to vector<8x8xf32>
    %115 = arith.truncf %114 : vector<8x8xf32> to vector<8x8xbf16>
    %cst_59 = arith.constant dense<0.000000e+00> : vector<8x8xf32>
    %116 = tpu.matmul %111, %113, %cst_59 {dimension_numbers = #tpu.dot_dimension_numbers<[1], [1], [0], [0], [0, 0, 1, 0], [], []>} : vector<8x8xbf16>, vector<8x8xbf16>, vector<8x8xf32> -> vector<8x8xf32>
    %cst_60 = arith.constant 0.000000e+00 : f32
    %117 = vector.broadcast %cst_60 : f32 to vector<8x8xf32>
    %118 = arith.cmpf ogt, %63, %117 : vector<8x8xf32>
    %cst_61 = arith.constant -1.000000e+09 : f32
    %119 = vector.broadcast %cst_61 : f32 to vector<8x8xf32>
    %120 = arith.select %118, %116, %119 : vector<8x8xi1>, vector<8x8xf32>
    %cst_62 = arith.constant dense<0xFF800000> : vector<8xf32>
    %121 = vector.multi_reduction <maximumf>, %120, %cst_62 [1] : vector<8x8xf32> to vector<8xf32>
    %122 = vector.shape_cast %121 : vector<8xf32> to vector<8x1xf32>
    %123 = vector.broadcast %122 : vector<8x1xf32> to vector<8x8xf32>
    %124 = arith.subf %120, %123 : vector<8x8xf32>
    %125 = math.exp %124 : vector<8x8xf32>
    %cst_63 = arith.constant dense<0.000000e+00> : vector<8xf32>
    %126 = vector.multi_reduction <add>, %125, %cst_63 [1] : vector<8x8xf32> to vector<8xf32>
    %127 = vector.shape_cast %126 : vector<8xf32> to vector<8x1xf32>
    %128 = tpu.reciprocal %127 {approx = true} : vector<8x1xf32> -> vector<8x1xf32>
    %129 = vector.broadcast %128 : vector<8x1xf32> to vector<8x8xf32>
    %130 = arith.mulf %125, %129 : vector<8x8xf32>
    %131 = arith.truncf %130 : vector<8x8xf32> to vector<8x8xbf16>
    %cst_64 = arith.constant dense<0.000000e+00> : vector<8x8xf32>
    %132 = tpu.matmul %131, %115, %cst_64 {dimension_numbers = #tpu.dot_dimension_numbers<[1], [0], [0], [1], [0, 0, 1, 1], [], []>} : vector<8x8xbf16>, vector<8x8xbf16>, vector<8x8xf32> -> vector<8x8xf32>
    %133 = vector.extract_strided_slice %57 {offsets = [0, 24], sizes = [8, 8], strides = [1, 1]} : vector<8x32xf32> to vector<8x8xf32>
    %134 = arith.truncf %133 : vector<8x8xf32> to vector<8x8xbf16>
    %135 = vector.extract_strided_slice %58 {offsets = [0, 24], sizes = [8, 8], strides = [1, 1]} : vector<8x32xf32> to vector<8x8xf32>
    %136 = arith.truncf %135 : vector<8x8xf32> to vector<8x8xbf16>
    %137 = vector.extract_strided_slice %59 {offsets = [0, 24], sizes = [8, 8], strides = [1, 1]} : vector<8x32xf32> to vector<8x8xf32>
    %138 = arith.truncf %137 : vector<8x8xf32> to vector<8x8xbf16>
    %cst_65 = arith.constant dense<0.000000e+00> : vector<8x8xf32>
    %139 = tpu.matmul %134, %136, %cst_65 {dimension_numbers = #tpu.dot_dimension_numbers<[1], [1], [0], [0], [0, 0, 1, 0], [], []>} : vector<8x8xbf16>, vector<8x8xbf16>, vector<8x8xf32> -> vector<8x8xf32>
    %cst_66 = arith.constant 0.000000e+00 : f32
    %140 = vector.broadcast %cst_66 : f32 to vector<8x8xf32>
    %141 = arith.cmpf ogt, %63, %140 : vector<8x8xf32>
    %cst_67 = arith.constant -1.000000e+09 : f32
    %142 = vector.broadcast %cst_67 : f32 to vector<8x8xf32>
    %143 = arith.select %141, %139, %142 : vector<8x8xi1>, vector<8x8xf32>
    %cst_68 = arith.constant dense<0xFF800000> : vector<8xf32>
    %144 = vector.multi_reduction <maximumf>, %143, %cst_68 [1] : vector<8x8xf32> to vector<8xf32>
    %145 = vector.shape_cast %144 : vector<8xf32> to vector<8x1xf32>
    %146 = vector.broadcast %145 : vector<8x1xf32> to vector<8x8xf32>
    %147 = arith.subf %143, %146 : vector<8x8xf32>
    %148 = math.exp %147 : vector<8x8xf32>
    %cst_69 = arith.constant dense<0.000000e+00> : vector<8xf32>
    %149 = vector.multi_reduction <add>, %148, %cst_69 [1] : vector<8x8xf32> to vector<8xf32>
    %150 = vector.shape_cast %149 : vector<8xf32> to vector<8x1xf32>
    %151 = tpu.reciprocal %150 {approx = true} : vector<8x1xf32> -> vector<8x1xf32>
    %152 = vector.broadcast %151 : vector<8x1xf32> to vector<8x8xf32>
    %153 = arith.mulf %148, %152 : vector<8x8xf32>
    %154 = arith.truncf %153 : vector<8x8xf32> to vector<8x8xbf16>
    %cst_70 = arith.constant dense<0.000000e+00> : vector<8x8xf32>
    %155 = tpu.matmul %154, %138, %cst_70 {dimension_numbers = #tpu.dot_dimension_numbers<[1], [0], [0], [1], [0, 0, 1, 1], [], []>} : vector<8x8xbf16>, vector<8x8xbf16>, vector<8x8xf32> -> vector<8x8xf32>
    %156 = tpu.concatenate %86, %109, %132, %155 in 1 : vector<8x8xf32>, vector<8x8xf32>, vector<8x8xf32>, vector<8x8xf32> -> vector<8x32xf32>
    %157 = vector.extract_strided_slice %56 {offsets = [8, 0], sizes = [8, 32], strides = [1, 1]} : vector<16x96xf32> to vector<8x32xf32>
    %158 = vector.extract_strided_slice %56 {offsets = [8, 32], sizes = [8, 32], strides = [1, 1]} : vector<16x96xf32> to vector<8x32xf32>
    %159 = vector.extract_strided_slice %56 {offsets = [8, 64], sizes = [8, 32], strides = [1, 1]} : vector<16x96xf32> to vector<8x32xf32>
    %c1_71 = arith.constant 1 : index
    %c0_72 = arith.constant 0 : index
    %c0_73 = arith.constant 0 : index
    %160 = vector.load %arg6[%c1_71, %c0_72, %c0_73] : memref<2x1x8xf32, #tpu.memory_space<vmem>>, vector<1x1x8xf32>
    %161 = vector.shape_cast %160 : vector<1x1x8xf32> to vector<1x8xf32>
    %162 = vector.shape_cast %161 : vector<1x8xf32> to vector<1x8xf32>
    %163 = vector.broadcast %162 : vector<1x8xf32> to vector<8x8xf32>
    %164 = vector.extract_strided_slice %157 {offsets = [0, 0], sizes = [8, 8], strides = [1, 1]} : vector<8x32xf32> to vector<8x8xf32>
    %165 = arith.truncf %164 : vector<8x8xf32> to vector<8x8xbf16>
    %166 = vector.extract_strided_slice %158 {offsets = [0, 0], sizes = [8, 8], strides = [1, 1]} : vector<8x32xf32> to vector<8x8xf32>
    %167 = arith.truncf %166 : vector<8x8xf32> to vector<8x8xbf16>
    %168 = vector.extract_strided_slice %159 {offsets = [0, 0], sizes = [8, 8], strides = [1, 1]} : vector<8x32xf32> to vector<8x8xf32>
    %169 = arith.truncf %168 : vector<8x8xf32> to vector<8x8xbf16>
    %cst_74 = arith.constant dense<0.000000e+00> : vector<8x8xf32>
    %170 = tpu.matmul %165, %167, %cst_74 {dimension_numbers = #tpu.dot_dimension_numbers<[1], [1], [0], [0], [0, 0, 1, 0], [], []>} : vector<8x8xbf16>, vector<8x8xbf16>, vector<8x8xf32> -> vector<8x8xf32>
    %cst_75 = arith.constant 0.000000e+00 : f32
    %171 = vector.broadcast %cst_75 : f32 to vector<8x8xf32>
    %172 = arith.cmpf ogt, %163, %171 : vector<8x8xf32>
    %cst_76 = arith.constant -1.000000e+09 : f32
    %173 = vector.broadcast %cst_76 : f32 to vector<8x8xf32>
    %174 = arith.select %172, %170, %173 : vector<8x8xi1>, vector<8x8xf32>
    %cst_77 = arith.constant dense<0xFF800000> : vector<8xf32>
    %175 = vector.multi_reduction <maximumf>, %174, %cst_77 [1] : vector<8x8xf32> to vector<8xf32>
    %176 = vector.shape_cast %175 : vector<8xf32> to vector<8x1xf32>
    %177 = vector.broadcast %176 : vector<8x1xf32> to vector<8x8xf32>
    %178 = arith.subf %174, %177 : vector<8x8xf32>
    %179 = math.exp %178 : vector<8x8xf32>
    %cst_78 = arith.constant dense<0.000000e+00> : vector<8xf32>
    %180 = vector.multi_reduction <add>, %179, %cst_78 [1] : vector<8x8xf32> to vector<8xf32>
    %181 = vector.shape_cast %180 : vector<8xf32> to vector<8x1xf32>
    %182 = tpu.reciprocal %181 {approx = true} : vector<8x1xf32> -> vector<8x1xf32>
    %183 = vector.broadcast %182 : vector<8x1xf32> to vector<8x8xf32>
    %184 = arith.mulf %179, %183 : vector<8x8xf32>
    %185 = arith.truncf %184 : vector<8x8xf32> to vector<8x8xbf16>
    %cst_79 = arith.constant dense<0.000000e+00> : vector<8x8xf32>
    %186 = tpu.matmul %185, %169, %cst_79 {dimension_numbers = #tpu.dot_dimension_numbers<[1], [0], [0], [1], [0, 0, 1, 1], [], []>} : vector<8x8xbf16>, vector<8x8xbf16>, vector<8x8xf32> -> vector<8x8xf32>
    %187 = vector.extract_strided_slice %157 {offsets = [0, 8], sizes = [8, 8], strides = [1, 1]} : vector<8x32xf32> to vector<8x8xf32>
    %188 = arith.truncf %187 : vector<8x8xf32> to vector<8x8xbf16>
    %189 = vector.extract_strided_slice %158 {offsets = [0, 8], sizes = [8, 8], strides = [1, 1]} : vector<8x32xf32> to vector<8x8xf32>
    %190 = arith.truncf %189 : vector<8x8xf32> to vector<8x8xbf16>
    %191 = vector.extract_strided_slice %159 {offsets = [0, 8], sizes = [8, 8], strides = [1, 1]} : vector<8x32xf32> to vector<8x8xf32>
    %192 = arith.truncf %191 : vector<8x8xf32> to vector<8x8xbf16>
    %cst_80 = arith.constant dense<0.000000e+00> : vector<8x8xf32>
    %193 = tpu.matmul %188, %190, %cst_80 {dimension_numbers = #tpu.dot_dimension_numbers<[1], [1], [0], [0], [0, 0, 1, 0], [], []>} : vector<8x8xbf16>, vector<8x8xbf16>, vector<8x8xf32> -> vector<8x8xf32>
    %cst_81 = arith.constant 0.000000e+00 : f32
    %194 = vector.broadcast %cst_81 : f32 to vector<8x8xf32>
    %195 = arith.cmpf ogt, %163, %194 : vector<8x8xf32>
    %cst_82 = arith.constant -1.000000e+09 : f32
    %196 = vector.broadcast %cst_82 : f32 to vector<8x8xf32>
    %197 = arith.select %195, %193, %196 : vector<8x8xi1>, vector<8x8xf32>
    %cst_83 = arith.constant dense<0xFF800000> : vector<8xf32>
    %198 = vector.multi_reduction <maximumf>, %197, %cst_83 [1] : vector<8x8xf32> to vector<8xf32>
    %199 = vector.shape_cast %198 : vector<8xf32> to vector<8x1xf32>
    %200 = vector.broadcast %199 : vector<8x1xf32> to vector<8x8xf32>
    %201 = arith.subf %197, %200 : vector<8x8xf32>
    %202 = math.exp %201 : vector<8x8xf32>
    %cst_84 = arith.constant dense<0.000000e+00> : vector<8xf32>
    %203 = vector.multi_reduction <add>, %202, %cst_84 [1] : vector<8x8xf32> to vector<8xf32>
    %204 = vector.shape_cast %203 : vector<8xf32> to vector<8x1xf32>
    %205 = tpu.reciprocal %204 {approx = true} : vector<8x1xf32> -> vector<8x1xf32>
    %206 = vector.broadcast %205 : vector<8x1xf32> to vector<8x8xf32>
    %207 = arith.mulf %202, %206 : vector<8x8xf32>
    %208 = arith.truncf %207 : vector<8x8xf32> to vector<8x8xbf16>
    %cst_85 = arith.constant dense<0.000000e+00> : vector<8x8xf32>
    %209 = tpu.matmul %208, %192, %cst_85 {dimension_numbers = #tpu.dot_dimension_numbers<[1], [0], [0], [1], [0, 0, 1, 1], [], []>} : vector<8x8xbf16>, vector<8x8xbf16>, vector<8x8xf32> -> vector<8x8xf32>
    %210 = vector.extract_strided_slice %157 {offsets = [0, 16], sizes = [8, 8], strides = [1, 1]} : vector<8x32xf32> to vector<8x8xf32>
    %211 = arith.truncf %210 : vector<8x8xf32> to vector<8x8xbf16>
    %212 = vector.extract_strided_slice %158 {offsets = [0, 16], sizes = [8, 8], strides = [1, 1]} : vector<8x32xf32> to vector<8x8xf32>
    %213 = arith.truncf %212 : vector<8x8xf32> to vector<8x8xbf16>
    %214 = vector.extract_strided_slice %159 {offsets = [0, 16], sizes = [8, 8], strides = [1, 1]} : vector<8x32xf32> to vector<8x8xf32>
    %215 = arith.truncf %214 : vector<8x8xf32> to vector<8x8xbf16>
    %cst_86 = arith.constant dense<0.000000e+00> : vector<8x8xf32>
    %216 = tpu.matmul %211, %213, %cst_86 {dimension_numbers = #tpu.dot_dimension_numbers<[1], [1], [0], [0], [0, 0, 1, 0], [], []>} : vector<8x8xbf16>, vector<8x8xbf16>, vector<8x8xf32> -> vector<8x8xf32>
    %cst_87 = arith.constant 0.000000e+00 : f32
    %217 = vector.broadcast %cst_87 : f32 to vector<8x8xf32>
    %218 = arith.cmpf ogt, %163, %217 : vector<8x8xf32>
    %cst_88 = arith.constant -1.000000e+09 : f32
    %219 = vector.broadcast %cst_88 : f32 to vector<8x8xf32>
    %220 = arith.select %218, %216, %219 : vector<8x8xi1>, vector<8x8xf32>
    %cst_89 = arith.constant dense<0xFF800000> : vector<8xf32>
    %221 = vector.multi_reduction <maximumf>, %220, %cst_89 [1] : vector<8x8xf32> to vector<8xf32>
    %222 = vector.shape_cast %221 : vector<8xf32> to vector<8x1xf32>
    %223 = vector.broadcast %222 : vector<8x1xf32> to vector<8x8xf32>
    %224 = arith.subf %220, %223 : vector<8x8xf32>
    %225 = math.exp %224 : vector<8x8xf32>
    %cst_90 = arith.constant dense<0.000000e+00> : vector<8xf32>
    %226 = vector.multi_reduction <add>, %225, %cst_90 [1] : vector<8x8xf32> to vector<8xf32>
    %227 = vector.shape_cast %226 : vector<8xf32> to vector<8x1xf32>
    %228 = tpu.reciprocal %227 {approx = true} : vector<8x1xf32> -> vector<8x1xf32>
    %229 = vector.broadcast %228 : vector<8x1xf32> to vector<8x8xf32>
    %230 = arith.mulf %225, %229 : vector<8x8xf32>
    %231 = arith.truncf %230 : vector<8x8xf32> to vector<8x8xbf16>
    %cst_91 = arith.constant dense<0.000000e+00> : vector<8x8xf32>
    %232 = tpu.matmul %231, %215, %cst_91 {dimension_numbers = #tpu.dot_dimension_numbers<[1], [0], [0], [1], [0, 0, 1, 1], [], []>} : vector<8x8xbf16>, vector<8x8xbf16>, vector<8x8xf32> -> vector<8x8xf32>
    %233 = vector.extract_strided_slice %157 {offsets = [0, 24], sizes = [8, 8], strides = [1, 1]} : vector<8x32xf32> to vector<8x8xf32>
    %234 = arith.truncf %233 : vector<8x8xf32> to vector<8x8xbf16>
    %235 = vector.extract_strided_slice %158 {offsets = [0, 24], sizes = [8, 8], strides = [1, 1]} : vector<8x32xf32> to vector<8x8xf32>
    %236 = arith.truncf %235 : vector<8x8xf32> to vector<8x8xbf16>
    %237 = vector.extract_strided_slice %159 {offsets = [0, 24], sizes = [8, 8], strides = [1, 1]} : vector<8x32xf32> to vector<8x8xf32>
    %238 = arith.truncf %237 : vector<8x8xf32> to vector<8x8xbf16>
    %cst_92 = arith.constant dense<0.000000e+00> : vector<8x8xf32>
    %239 = tpu.matmul %234, %236, %cst_92 {dimension_numbers = #tpu.dot_dimension_numbers<[1], [1], [0], [0], [0, 0, 1, 0], [], []>} : vector<8x8xbf16>, vector<8x8xbf16>, vector<8x8xf32> -> vector<8x8xf32>
    %cst_93 = arith.constant 0.000000e+00 : f32
    %240 = vector.broadcast %cst_93 : f32 to vector<8x8xf32>
    %241 = arith.cmpf ogt, %163, %240 : vector<8x8xf32>
    %cst_94 = arith.constant -1.000000e+09 : f32
    %242 = vector.broadcast %cst_94 : f32 to vector<8x8xf32>
    %243 = arith.select %241, %239, %242 : vector<8x8xi1>, vector<8x8xf32>
    %cst_95 = arith.constant dense<0xFF800000> : vector<8xf32>
    %244 = vector.multi_reduction <maximumf>, %243, %cst_95 [1] : vector<8x8xf32> to vector<8xf32>
    %245 = vector.shape_cast %244 : vector<8xf32> to vector<8x1xf32>
    %246 = vector.broadcast %245 : vector<8x1xf32> to vector<8x8xf32>
    %247 = arith.subf %243, %246 : vector<8x8xf32>
    %248 = math.exp %247 : vector<8x8xf32>
    %cst_96 = arith.constant dense<0.000000e+00> : vector<8xf32>
    %249 = vector.multi_reduction <add>, %248, %cst_96 [1] : vector<8x8xf32> to vector<8xf32>
    %250 = vector.shape_cast %249 : vector<8xf32> to vector<8x1xf32>
    %251 = tpu.reciprocal %250 {approx = true} : vector<8x1xf32> -> vector<8x1xf32>
    %252 = vector.broadcast %251 : vector<8x1xf32> to vector<8x8xf32>
    %253 = arith.mulf %248, %252 : vector<8x8xf32>
    %254 = arith.truncf %253 : vector<8x8xf32> to vector<8x8xbf16>
    %cst_97 = arith.constant dense<0.000000e+00> : vector<8x8xf32>
    %255 = tpu.matmul %254, %238, %cst_97 {dimension_numbers = #tpu.dot_dimension_numbers<[1], [0], [0], [1], [0, 0, 1, 1], [], []>} : vector<8x8xbf16>, vector<8x8xbf16>, vector<8x8xf32> -> vector<8x8xf32>
    %256 = tpu.concatenate %186, %209, %232, %255 in 1 : vector<8x8xf32>, vector<8x8xf32>, vector<8x8xf32>, vector<8x8xf32> -> vector<8x32xf32>
    %257 = tpu.concatenate %156, %256 in 0 : vector<8x32xf32>, vector<8x32xf32> -> vector<16x32xf32>
    %c0_98 = arith.constant 0 : index
    %c0_99 = arith.constant 0 : index
    %c0_100 = arith.constant 0 : index
    %258 = vector.load %arg9[%c0_98, %c0_99, %c0_100] : memref<2x32x32xbf16, #tpu.memory_space<vmem>>, vector<1x32x32xbf16>
    %259 = vector.shape_cast %258 : vector<1x32x32xbf16> to vector<32x32xbf16>
    %cst_101 = arith.constant dense<0.000000e+00> : vector<16x32xf32>
    %260 = tpu.matmul %49, %259, %cst_101 {dimension_numbers = #tpu.dot_dimension_numbers<[1], [0], [0], [1], [0, 0, 1, 1], [], []>} : vector<16x32xbf16>, vector<32x32xbf16>, vector<16x32xf32> -> vector<16x32xf32>
    %261 = arith.truncf %257 : vector<16x32xf32> to vector<16x32xbf16>
    %c0_102 = arith.constant 0 : index
    %c0_103 = arith.constant 0 : index
    %c0_104 = arith.constant 0 : index
    %262 = vector.load %arg10[%c0_102, %c0_103, %c0_104] : memref<2x32x32xbf16, #tpu.memory_space<vmem>>, vector<1x32x32xbf16>
    %263 = vector.shape_cast %262 : vector<1x32x32xbf16> to vector<32x32xbf16>
    %cst_105 = arith.constant dense<0.000000e+00> : vector<16x32xf32>
    %264 = tpu.matmul %261, %263, %cst_105 {dimension_numbers = #tpu.dot_dimension_numbers<[1], [0], [0], [1], [0, 0, 1, 1], [], []>} : vector<16x32xbf16>, vector<32x32xbf16>, vector<16x32xf32> -> vector<16x32xf32>
    %265 = arith.addf %260, %264 : vector<16x32xf32>
    %c0_106 = arith.constant 0 : index
    %c0_107 = arith.constant 0 : index
    %c0_108 = arith.constant 0 : index
    %266 = vector.load %arg11[%c0_106, %c0_107, %c0_108] : memref<2x1x32xf32, #tpu.memory_space<vmem>>, vector<1x1x32xf32>
    %267 = vector.shape_cast %266 : vector<1x1x32xf32> to vector<1x32xf32>
    %268 = vector.broadcast %267 : vector<1x32xf32> to vector<16x32xf32>
    %269 = arith.addf %265, %268 : vector<16x32xf32>
    %270 = arith.addf %269, %48 : vector<16x32xf32>
    %cst_109 = arith.constant dense<0.000000e+00> : vector<16xf32>
    %271 = vector.multi_reduction <add>, %270, %cst_109 [1] : vector<16x32xf32> to vector<16xf32>
    %272 = vector.shape_cast %271 : vector<16xf32> to vector<16x1xf32>
    %cst_110 = arith.constant 3.200000e+01 : f32
    %273 = vector.broadcast %cst_110 : f32 to vector<16x1xf32>
    %274 = arith.divf %272, %273 : vector<16x1xf32>
    %275 = vector.broadcast %274 : vector<16x1xf32> to vector<16x32xf32>
    %276 = arith.subf %270, %275 : vector<16x32xf32>
    %277 = arith.mulf %276, %276 : vector<16x32xf32>
    %cst_111 = arith.constant dense<0.000000e+00> : vector<16xf32>
    %278 = vector.multi_reduction <add>, %277, %cst_111 [1] : vector<16x32xf32> to vector<16xf32>
    %279 = vector.shape_cast %278 : vector<16xf32> to vector<16x1xf32>
    %cst_112 = arith.constant 3.200000e+01 : f32
    %280 = vector.broadcast %cst_112 : f32 to vector<16x1xf32>
    %281 = arith.divf %279, %280 : vector<16x1xf32>
    %cst_113 = arith.constant 9.99999974E-6 : f32
    %282 = vector.broadcast %cst_113 : f32 to vector<16x1xf32>
    %283 = arith.addf %281, %282 : vector<16x1xf32>
    %284 = math.rsqrt %283 : vector<16x1xf32>
    %285 = vector.broadcast %284 : vector<16x1xf32> to vector<16x32xf32>
    %286 = arith.mulf %276, %285 : vector<16x32xf32>
    %c0_114 = arith.constant 0 : index
    %c0_115 = arith.constant 0 : index
    %c0_116 = arith.constant 0 : index
    %287 = vector.load %arg12[%c0_114, %c0_115, %c0_116] : memref<2x1x32xf32, #tpu.memory_space<vmem>>, vector<1x1x32xf32>
    %288 = vector.shape_cast %287 : vector<1x1x32xf32> to vector<1x32xf32>
    %289 = vector.broadcast %288 : vector<1x32xf32> to vector<16x32xf32>
    %290 = arith.mulf %286, %289 : vector<16x32xf32>
    %c0_117 = arith.constant 0 : index
    %c0_118 = arith.constant 0 : index
    %c0_119 = arith.constant 0 : index
    %291 = vector.load %arg13[%c0_117, %c0_118, %c0_119] : memref<2x1x32xf32, #tpu.memory_space<vmem>>, vector<1x1x32xf32>
    %292 = vector.shape_cast %291 : vector<1x1x32xf32> to vector<1x32xf32>
    %293 = vector.broadcast %292 : vector<1x32xf32> to vector<16x32xf32>
    %294 = arith.addf %290, %293 : vector<16x32xf32>
    %295 = arith.truncf %294 : vector<16x32xf32> to vector<16x32xbf16>
    %c0_120 = arith.constant 0 : index
    %c0_121 = arith.constant 0 : index
    %c0_122 = arith.constant 0 : index
    %296 = vector.load %arg14[%c0_120, %c0_121, %c0_122] : memref<2x32x128xbf16, #tpu.memory_space<vmem>>, vector<1x32x128xbf16>
    %297 = vector.shape_cast %296 : vector<1x32x128xbf16> to vector<32x128xbf16>
    %cst_123 = arith.constant dense<0.000000e+00> : vector<16x128xf32>
    %298 = tpu.matmul %295, %297, %cst_123 {dimension_numbers = #tpu.dot_dimension_numbers<[1], [0], [0], [1], [0, 0, 1, 1], [], []>} : vector<16x32xbf16>, vector<32x128xbf16>, vector<16x128xf32> -> vector<16x128xf32>
    %c0_124 = arith.constant 0 : index
    %c0_125 = arith.constant 0 : index
    %c0_126 = arith.constant 0 : index
    %299 = vector.load %arg15[%c0_124, %c0_125, %c0_126] : memref<2x1x128xf32, #tpu.memory_space<vmem>>, vector<1x1x128xf32>
    %300 = vector.shape_cast %299 : vector<1x1x128xf32> to vector<1x128xf32>
    %301 = vector.broadcast %300 : vector<1x128xf32> to vector<16x128xf32>
    %302 = arith.addf %298, %301 : vector<16x128xf32>
    %cst_127 = arith.constant 0.000000e+00 : f32
    %303 = vector.broadcast %cst_127 : f32 to vector<16x128xf32>
    %304 = arith.cmpf oge, %302, %303 : vector<16x128xf32>
    %cst_128 = arith.constant 2.000000e-01 : f32
    %305 = vector.broadcast %cst_128 : f32 to vector<16x128xf32>
    %306 = arith.mulf %305, %302 : vector<16x128xf32>
    %307 = arith.select %304, %302, %306 : vector<16x128xi1>, vector<16x128xf32>
    %308 = arith.truncf %307 : vector<16x128xf32> to vector<16x128xbf16>
    %c0_129 = arith.constant 0 : index
    %c0_130 = arith.constant 0 : index
    %c0_131 = arith.constant 0 : index
    %309 = vector.load %arg16[%c0_129, %c0_130, %c0_131] : memref<2x128x32xbf16, #tpu.memory_space<vmem>>, vector<1x128x32xbf16>
    %310 = vector.shape_cast %309 : vector<1x128x32xbf16> to vector<128x32xbf16>
    %cst_132 = arith.constant dense<0.000000e+00> : vector<16x32xf32>
    %311 = tpu.matmul %308, %310, %cst_132 {dimension_numbers = #tpu.dot_dimension_numbers<[1], [0], [0], [1], [0, 0, 1, 1], [], []>} : vector<16x128xbf16>, vector<128x32xbf16>, vector<16x32xf32> -> vector<16x32xf32>
    %c0_133 = arith.constant 0 : index
    %c0_134 = arith.constant 0 : index
    %c0_135 = arith.constant 0 : index
    %312 = vector.load %arg17[%c0_133, %c0_134, %c0_135] : memref<2x1x32xf32, #tpu.memory_space<vmem>>, vector<1x1x32xf32>
    %313 = vector.shape_cast %312 : vector<1x1x32xf32> to vector<1x32xf32>
    %314 = vector.broadcast %313 : vector<1x32xf32> to vector<16x32xf32>
    %315 = arith.addf %311, %314 : vector<16x32xf32>
    %316 = arith.addf %315, %294 : vector<16x32xf32>
    %cst_136 = arith.constant dense<0.000000e+00> : vector<16xf32>
    %317 = vector.multi_reduction <add>, %316, %cst_136 [1] : vector<16x32xf32> to vector<16xf32>
    %318 = vector.shape_cast %317 : vector<16xf32> to vector<16x1xf32>
    %cst_137 = arith.constant 3.200000e+01 : f32
    %319 = vector.broadcast %cst_137 : f32 to vector<16x1xf32>
    %320 = arith.divf %318, %319 : vector<16x1xf32>
    %321 = vector.broadcast %320 : vector<16x1xf32> to vector<16x32xf32>
    %322 = arith.subf %316, %321 : vector<16x32xf32>
    %323 = arith.mulf %322, %322 : vector<16x32xf32>
    %cst_138 = arith.constant dense<0.000000e+00> : vector<16xf32>
    %324 = vector.multi_reduction <add>, %323, %cst_138 [1] : vector<16x32xf32> to vector<16xf32>
    %325 = vector.shape_cast %324 : vector<16xf32> to vector<16x1xf32>
    %cst_139 = arith.constant 3.200000e+01 : f32
    %326 = vector.broadcast %cst_139 : f32 to vector<16x1xf32>
    %327 = arith.divf %325, %326 : vector<16x1xf32>
    %cst_140 = arith.constant 9.99999974E-6 : f32
    %328 = vector.broadcast %cst_140 : f32 to vector<16x1xf32>
    %329 = arith.addf %327, %328 : vector<16x1xf32>
    %330 = math.rsqrt %329 : vector<16x1xf32>
    %331 = vector.broadcast %330 : vector<16x1xf32> to vector<16x32xf32>
    %332 = arith.mulf %322, %331 : vector<16x32xf32>
    %c0_141 = arith.constant 0 : index
    %c0_142 = arith.constant 0 : index
    %c0_143 = arith.constant 0 : index
    %333 = vector.load %arg18[%c0_141, %c0_142, %c0_143] : memref<2x1x32xf32, #tpu.memory_space<vmem>>, vector<1x1x32xf32>
    %334 = vector.shape_cast %333 : vector<1x1x32xf32> to vector<1x32xf32>
    %335 = vector.broadcast %334 : vector<1x32xf32> to vector<16x32xf32>
    %336 = arith.mulf %332, %335 : vector<16x32xf32>
    %c0_144 = arith.constant 0 : index
    %c0_145 = arith.constant 0 : index
    %c0_146 = arith.constant 0 : index
    %337 = vector.load %arg19[%c0_144, %c0_145, %c0_146] : memref<2x1x32xf32, #tpu.memory_space<vmem>>, vector<1x1x32xf32>
    %338 = vector.shape_cast %337 : vector<1x1x32xf32> to vector<1x32xf32>
    %339 = vector.broadcast %338 : vector<1x32xf32> to vector<16x32xf32>
    %340 = arith.addf %336, %339 : vector<16x32xf32>
    %341 = arith.truncf %340 : vector<16x32xf32> to vector<16x32xbf16>
    %c1_147 = arith.constant 1 : index
    %c0_148 = arith.constant 0 : index
    %c0_149 = arith.constant 0 : index
    %342 = vector.load %arg7[%c1_147, %c0_148, %c0_149] : memref<2x32x96xbf16, #tpu.memory_space<vmem>>, vector<1x32x96xbf16>
    %343 = vector.shape_cast %342 : vector<1x32x96xbf16> to vector<32x96xbf16>
    %cst_150 = arith.constant dense<0.000000e+00> : vector<16x96xf32>
    %344 = tpu.matmul %341, %343, %cst_150 {dimension_numbers = #tpu.dot_dimension_numbers<[1], [0], [0], [1], [0, 0, 1, 1], [], []>} : vector<16x32xbf16>, vector<32x96xbf16>, vector<16x96xf32> -> vector<16x96xf32>
    %c1_151 = arith.constant 1 : index
    %c0_152 = arith.constant 0 : index
    %c0_153 = arith.constant 0 : index
    %345 = vector.load %arg8[%c1_151, %c0_152, %c0_153] : memref<2x1x96xf32, #tpu.memory_space<vmem>>, vector<1x1x96xf32>
    %346 = vector.shape_cast %345 : vector<1x1x96xf32> to vector<1x96xf32>
    %347 = vector.broadcast %346 : vector<1x96xf32> to vector<16x96xf32>
    %348 = arith.addf %344, %347 : vector<16x96xf32>
    %349 = vector.extract_strided_slice %348 {offsets = [0, 0], sizes = [8, 32], strides = [1, 1]} : vector<16x96xf32> to vector<8x32xf32>
    %350 = vector.extract_strided_slice %348 {offsets = [0, 32], sizes = [8, 32], strides = [1, 1]} : vector<16x96xf32> to vector<8x32xf32>
    %351 = vector.extract_strided_slice %348 {offsets = [0, 64], sizes = [8, 32], strides = [1, 1]} : vector<16x96xf32> to vector<8x32xf32>
    %c0_154 = arith.constant 0 : index
    %c0_155 = arith.constant 0 : index
    %c0_156 = arith.constant 0 : index
    %352 = vector.load %arg6[%c0_154, %c0_155, %c0_156] : memref<2x1x8xf32, #tpu.memory_space<vmem>>, vector<1x1x8xf32>
    %353 = vector.shape_cast %352 : vector<1x1x8xf32> to vector<1x8xf32>
    %354 = vector.shape_cast %353 : vector<1x8xf32> to vector<1x8xf32>
    %355 = vector.broadcast %354 : vector<1x8xf32> to vector<8x8xf32>
    %356 = vector.extract_strided_slice %349 {offsets = [0, 0], sizes = [8, 8], strides = [1, 1]} : vector<8x32xf32> to vector<8x8xf32>
    %357 = arith.truncf %356 : vector<8x8xf32> to vector<8x8xbf16>
    %358 = vector.extract_strided_slice %350 {offsets = [0, 0], sizes = [8, 8], strides = [1, 1]} : vector<8x32xf32> to vector<8x8xf32>
    %359 = arith.truncf %358 : vector<8x8xf32> to vector<8x8xbf16>
    %360 = vector.extract_strided_slice %351 {offsets = [0, 0], sizes = [8, 8], strides = [1, 1]} : vector<8x32xf32> to vector<8x8xf32>
    %361 = arith.truncf %360 : vector<8x8xf32> to vector<8x8xbf16>
    %cst_157 = arith.constant dense<0.000000e+00> : vector<8x8xf32>
    %362 = tpu.matmul %357, %359, %cst_157 {dimension_numbers = #tpu.dot_dimension_numbers<[1], [1], [0], [0], [0, 0, 1, 0], [], []>} : vector<8x8xbf16>, vector<8x8xbf16>, vector<8x8xf32> -> vector<8x8xf32>
    %cst_158 = arith.constant 0.000000e+00 : f32
    %363 = vector.broadcast %cst_158 : f32 to vector<8x8xf32>
    %364 = arith.cmpf ogt, %355, %363 : vector<8x8xf32>
    %cst_159 = arith.constant -1.000000e+09 : f32
    %365 = vector.broadcast %cst_159 : f32 to vector<8x8xf32>
    %366 = arith.select %364, %362, %365 : vector<8x8xi1>, vector<8x8xf32>
    %cst_160 = arith.constant dense<0xFF800000> : vector<8xf32>
    %367 = vector.multi_reduction <maximumf>, %366, %cst_160 [1] : vector<8x8xf32> to vector<8xf32>
    %368 = vector.shape_cast %367 : vector<8xf32> to vector<8x1xf32>
    %369 = vector.broadcast %368 : vector<8x1xf32> to vector<8x8xf32>
    %370 = arith.subf %366, %369 : vector<8x8xf32>
    %371 = math.exp %370 : vector<8x8xf32>
    %cst_161 = arith.constant dense<0.000000e+00> : vector<8xf32>
    %372 = vector.multi_reduction <add>, %371, %cst_161 [1] : vector<8x8xf32> to vector<8xf32>
    %373 = vector.shape_cast %372 : vector<8xf32> to vector<8x1xf32>
    %374 = tpu.reciprocal %373 {approx = true} : vector<8x1xf32> -> vector<8x1xf32>
    %375 = vector.broadcast %374 : vector<8x1xf32> to vector<8x8xf32>
    %376 = arith.mulf %371, %375 : vector<8x8xf32>
    %377 = arith.truncf %376 : vector<8x8xf32> to vector<8x8xbf16>
    %cst_162 = arith.constant dense<0.000000e+00> : vector<8x8xf32>
    %378 = tpu.matmul %377, %361, %cst_162 {dimension_numbers = #tpu.dot_dimension_numbers<[1], [0], [0], [1], [0, 0, 1, 1], [], []>} : vector<8x8xbf16>, vector<8x8xbf16>, vector<8x8xf32> -> vector<8x8xf32>
    %379 = vector.extract_strided_slice %349 {offsets = [0, 8], sizes = [8, 8], strides = [1, 1]} : vector<8x32xf32> to vector<8x8xf32>
    %380 = arith.truncf %379 : vector<8x8xf32> to vector<8x8xbf16>
    %381 = vector.extract_strided_slice %350 {offsets = [0, 8], sizes = [8, 8], strides = [1, 1]} : vector<8x32xf32> to vector<8x8xf32>
    %382 = arith.truncf %381 : vector<8x8xf32> to vector<8x8xbf16>
    %383 = vector.extract_strided_slice %351 {offsets = [0, 8], sizes = [8, 8], strides = [1, 1]} : vector<8x32xf32> to vector<8x8xf32>
    %384 = arith.truncf %383 : vector<8x8xf32> to vector<8x8xbf16>
    %cst_163 = arith.constant dense<0.000000e+00> : vector<8x8xf32>
    %385 = tpu.matmul %380, %382, %cst_163 {dimension_numbers = #tpu.dot_dimension_numbers<[1], [1], [0], [0], [0, 0, 1, 0], [], []>} : vector<8x8xbf16>, vector<8x8xbf16>, vector<8x8xf32> -> vector<8x8xf32>
    %cst_164 = arith.constant 0.000000e+00 : f32
    %386 = vector.broadcast %cst_164 : f32 to vector<8x8xf32>
    %387 = arith.cmpf ogt, %355, %386 : vector<8x8xf32>
    %cst_165 = arith.constant -1.000000e+09 : f32
    %388 = vector.broadcast %cst_165 : f32 to vector<8x8xf32>
    %389 = arith.select %387, %385, %388 : vector<8x8xi1>, vector<8x8xf32>
    %cst_166 = arith.constant dense<0xFF800000> : vector<8xf32>
    %390 = vector.multi_reduction <maximumf>, %389, %cst_166 [1] : vector<8x8xf32> to vector<8xf32>
    %391 = vector.shape_cast %390 : vector<8xf32> to vector<8x1xf32>
    %392 = vector.broadcast %391 : vector<8x1xf32> to vector<8x8xf32>
    %393 = arith.subf %389, %392 : vector<8x8xf32>
    %394 = math.exp %393 : vector<8x8xf32>
    %cst_167 = arith.constant dense<0.000000e+00> : vector<8xf32>
    %395 = vector.multi_reduction <add>, %394, %cst_167 [1] : vector<8x8xf32> to vector<8xf32>
    %396 = vector.shape_cast %395 : vector<8xf32> to vector<8x1xf32>
    %397 = tpu.reciprocal %396 {approx = true} : vector<8x1xf32> -> vector<8x1xf32>
    %398 = vector.broadcast %397 : vector<8x1xf32> to vector<8x8xf32>
    %399 = arith.mulf %394, %398 : vector<8x8xf32>
    %400 = arith.truncf %399 : vector<8x8xf32> to vector<8x8xbf16>
    %cst_168 = arith.constant dense<0.000000e+00> : vector<8x8xf32>
    %401 = tpu.matmul %400, %384, %cst_168 {dimension_numbers = #tpu.dot_dimension_numbers<[1], [0], [0], [1], [0, 0, 1, 1], [], []>} : vector<8x8xbf16>, vector<8x8xbf16>, vector<8x8xf32> -> vector<8x8xf32>
    %402 = vector.extract_strided_slice %349 {offsets = [0, 16], sizes = [8, 8], strides = [1, 1]} : vector<8x32xf32> to vector<8x8xf32>
    %403 = arith.truncf %402 : vector<8x8xf32> to vector<8x8xbf16>
    %404 = vector.extract_strided_slice %350 {offsets = [0, 16], sizes = [8, 8], strides = [1, 1]} : vector<8x32xf32> to vector<8x8xf32>
    %405 = arith.truncf %404 : vector<8x8xf32> to vector<8x8xbf16>
    %406 = vector.extract_strided_slice %351 {offsets = [0, 16], sizes = [8, 8], strides = [1, 1]} : vector<8x32xf32> to vector<8x8xf32>
    %407 = arith.truncf %406 : vector<8x8xf32> to vector<8x8xbf16>
    %cst_169 = arith.constant dense<0.000000e+00> : vector<8x8xf32>
    %408 = tpu.matmul %403, %405, %cst_169 {dimension_numbers = #tpu.dot_dimension_numbers<[1], [1], [0], [0], [0, 0, 1, 0], [], []>} : vector<8x8xbf16>, vector<8x8xbf16>, vector<8x8xf32> -> vector<8x8xf32>
    %cst_170 = arith.constant 0.000000e+00 : f32
    %409 = vector.broadcast %cst_170 : f32 to vector<8x8xf32>
    %410 = arith.cmpf ogt, %355, %409 : vector<8x8xf32>
    %cst_171 = arith.constant -1.000000e+09 : f32
    %411 = vector.broadcast %cst_171 : f32 to vector<8x8xf32>
    %412 = arith.select %410, %408, %411 : vector<8x8xi1>, vector<8x8xf32>
    %cst_172 = arith.constant dense<0xFF800000> : vector<8xf32>
    %413 = vector.multi_reduction <maximumf>, %412, %cst_172 [1] : vector<8x8xf32> to vector<8xf32>
    %414 = vector.shape_cast %413 : vector<8xf32> to vector<8x1xf32>
    %415 = vector.broadcast %414 : vector<8x1xf32> to vector<8x8xf32>
    %416 = arith.subf %412, %415 : vector<8x8xf32>
    %417 = math.exp %416 : vector<8x8xf32>
    %cst_173 = arith.constant dense<0.000000e+00> : vector<8xf32>
    %418 = vector.multi_reduction <add>, %417, %cst_173 [1] : vector<8x8xf32> to vector<8xf32>
    %419 = vector.shape_cast %418 : vector<8xf32> to vector<8x1xf32>
    %420 = tpu.reciprocal %419 {approx = true} : vector<8x1xf32> -> vector<8x1xf32>
    %421 = vector.broadcast %420 : vector<8x1xf32> to vector<8x8xf32>
    %422 = arith.mulf %417, %421 : vector<8x8xf32>
    %423 = arith.truncf %422 : vector<8x8xf32> to vector<8x8xbf16>
    %cst_174 = arith.constant dense<0.000000e+00> : vector<8x8xf32>
    %424 = tpu.matmul %423, %407, %cst_174 {dimension_numbers = #tpu.dot_dimension_numbers<[1], [0], [0], [1], [0, 0, 1, 1], [], []>} : vector<8x8xbf16>, vector<8x8xbf16>, vector<8x8xf32> -> vector<8x8xf32>
    %425 = vector.extract_strided_slice %349 {offsets = [0, 24], sizes = [8, 8], strides = [1, 1]} : vector<8x32xf32> to vector<8x8xf32>
    %426 = arith.truncf %425 : vector<8x8xf32> to vector<8x8xbf16>
    %427 = vector.extract_strided_slice %350 {offsets = [0, 24], sizes = [8, 8], strides = [1, 1]} : vector<8x32xf32> to vector<8x8xf32>
    %428 = arith.truncf %427 : vector<8x8xf32> to vector<8x8xbf16>
    %429 = vector.extract_strided_slice %351 {offsets = [0, 24], sizes = [8, 8], strides = [1, 1]} : vector<8x32xf32> to vector<8x8xf32>
    %430 = arith.truncf %429 : vector<8x8xf32> to vector<8x8xbf16>
    %cst_175 = arith.constant dense<0.000000e+00> : vector<8x8xf32>
    %431 = tpu.matmul %426, %428, %cst_175 {dimension_numbers = #tpu.dot_dimension_numbers<[1], [1], [0], [0], [0, 0, 1, 0], [], []>} : vector<8x8xbf16>, vector<8x8xbf16>, vector<8x8xf32> -> vector<8x8xf32>
    %cst_176 = arith.constant 0.000000e+00 : f32
    %432 = vector.broadcast %cst_176 : f32 to vector<8x8xf32>
    %433 = arith.cmpf ogt, %355, %432 : vector<8x8xf32>
    %cst_177 = arith.constant -1.000000e+09 : f32
    %434 = vector.broadcast %cst_177 : f32 to vector<8x8xf32>
    %435 = arith.select %433, %431, %434 : vector<8x8xi1>, vector<8x8xf32>
    %cst_178 = arith.constant dense<0xFF800000> : vector<8xf32>
    %436 = vector.multi_reduction <maximumf>, %435, %cst_178 [1] : vector<8x8xf32> to vector<8xf32>
    %437 = vector.shape_cast %436 : vector<8xf32> to vector<8x1xf32>
    %438 = vector.broadcast %437 : vector<8x1xf32> to vector<8x8xf32>
    %439 = arith.subf %435, %438 : vector<8x8xf32>
    %440 = math.exp %439 : vector<8x8xf32>
    %cst_179 = arith.constant dense<0.000000e+00> : vector<8xf32>
    %441 = vector.multi_reduction <add>, %440, %cst_179 [1] : vector<8x8xf32> to vector<8xf32>
    %442 = vector.shape_cast %441 : vector<8xf32> to vector<8x1xf32>
    %443 = tpu.reciprocal %442 {approx = true} : vector<8x1xf32> -> vector<8x1xf32>
    %444 = vector.broadcast %443 : vector<8x1xf32> to vector<8x8xf32>
    %445 = arith.mulf %440, %444 : vector<8x8xf32>
    %446 = arith.truncf %445 : vector<8x8xf32> to vector<8x8xbf16>
    %cst_180 = arith.constant dense<0.000000e+00> : vector<8x8xf32>
    %447 = tpu.matmul %446, %430, %cst_180 {dimension_numbers = #tpu.dot_dimension_numbers<[1], [0], [0], [1], [0, 0, 1, 1], [], []>} : vector<8x8xbf16>, vector<8x8xbf16>, vector<8x8xf32> -> vector<8x8xf32>
    %448 = tpu.concatenate %376, %399, %422, %445 in 1 : vector<8x8xf32>, vector<8x8xf32>, vector<8x8xf32>, vector<8x8xf32> -> vector<8x32xf32>
    %c0_181 = arith.constant 0 : index
    %c0_182 = arith.constant 0 : index
    %c0_183 = arith.constant 0 : index
    %449 = vector.load %arg21[%c0_181, %c0_182, %c0_183] : memref<2x8x32xf32, #tpu.memory_space<vmem>>, vector<1x8x32xf32>
    %450 = vector.shape_cast %449 : vector<1x8x32xf32> to vector<8x32xf32>
    %451 = vector.shape_cast %448 : vector<8x32xf32> to vector<1x8x32xf32>
    tpu.vector_store %arg21[%c0_181, %c0_182, %c0_183], %451 {strides = array<i32>} : memref<2x8x32xf32, #tpu.memory_space<vmem>>, vector<1x8x32xf32>,
    %452 = tpu.concatenate %378, %401, %424, %447 in 1 : vector<8x8xf32>, vector<8x8xf32>, vector<8x8xf32>, vector<8x8xf32> -> vector<8x32xf32>
    %453 = vector.extract_strided_slice %348 {offsets = [8, 0], sizes = [8, 32], strides = [1, 1]} : vector<16x96xf32> to vector<8x32xf32>
    %454 = vector.extract_strided_slice %348 {offsets = [8, 32], sizes = [8, 32], strides = [1, 1]} : vector<16x96xf32> to vector<8x32xf32>
    %455 = vector.extract_strided_slice %348 {offsets = [8, 64], sizes = [8, 32], strides = [1, 1]} : vector<16x96xf32> to vector<8x32xf32>
    %c1_184 = arith.constant 1 : index
    %c0_185 = arith.constant 0 : index
    %c0_186 = arith.constant 0 : index
    %456 = vector.load %arg6[%c1_184, %c0_185, %c0_186] : memref<2x1x8xf32, #tpu.memory_space<vmem>>, vector<1x1x8xf32>
    %457 = vector.shape_cast %456 : vector<1x1x8xf32> to vector<1x8xf32>
    %458 = vector.shape_cast %457 : vector<1x8xf32> to vector<1x8xf32>
    %459 = vector.broadcast %458 : vector<1x8xf32> to vector<8x8xf32>
    %460 = vector.extract_strided_slice %453 {offsets = [0, 0], sizes = [8, 8], strides = [1, 1]} : vector<8x32xf32> to vector<8x8xf32>
    %461 = arith.truncf %460 : vector<8x8xf32> to vector<8x8xbf16>
    %462 = vector.extract_strided_slice %454 {offsets = [0, 0], sizes = [8, 8], strides = [1, 1]} : vector<8x32xf32> to vector<8x8xf32>
    %463 = arith.truncf %462 : vector<8x8xf32> to vector<8x8xbf16>
    %464 = vector.extract_strided_slice %455 {offsets = [0, 0], sizes = [8, 8], strides = [1, 1]} : vector<8x32xf32> to vector<8x8xf32>
    %465 = arith.truncf %464 : vector<8x8xf32> to vector<8x8xbf16>
    %cst_187 = arith.constant dense<0.000000e+00> : vector<8x8xf32>
    %466 = tpu.matmul %461, %463, %cst_187 {dimension_numbers = #tpu.dot_dimension_numbers<[1], [1], [0], [0], [0, 0, 1, 0], [], []>} : vector<8x8xbf16>, vector<8x8xbf16>, vector<8x8xf32> -> vector<8x8xf32>
    %cst_188 = arith.constant 0.000000e+00 : f32
    %467 = vector.broadcast %cst_188 : f32 to vector<8x8xf32>
    %468 = arith.cmpf ogt, %459, %467 : vector<8x8xf32>
    %cst_189 = arith.constant -1.000000e+09 : f32
    %469 = vector.broadcast %cst_189 : f32 to vector<8x8xf32>
    %470 = arith.select %468, %466, %469 : vector<8x8xi1>, vector<8x8xf32>
    %cst_190 = arith.constant dense<0xFF800000> : vector<8xf32>
    %471 = vector.multi_reduction <maximumf>, %470, %cst_190 [1] : vector<8x8xf32> to vector<8xf32>
    %472 = vector.shape_cast %471 : vector<8xf32> to vector<8x1xf32>
    %473 = vector.broadcast %472 : vector<8x1xf32> to vector<8x8xf32>
    %474 = arith.subf %470, %473 : vector<8x8xf32>
    %475 = math.exp %474 : vector<8x8xf32>
    %cst_191 = arith.constant dense<0.000000e+00> : vector<8xf32>
    %476 = vector.multi_reduction <add>, %475, %cst_191 [1] : vector<8x8xf32> to vector<8xf32>
    %477 = vector.shape_cast %476 : vector<8xf32> to vector<8x1xf32>
    %478 = tpu.reciprocal %477 {approx = true} : vector<8x1xf32> -> vector<8x1xf32>
    %479 = vector.broadcast %478 : vector<8x1xf32> to vector<8x8xf32>
    %480 = arith.mulf %475, %479 : vector<8x8xf32>
    %481 = arith.truncf %480 : vector<8x8xf32> to vector<8x8xbf16>
    %cst_192 = arith.constant dense<0.000000e+00> : vector<8x8xf32>
    %482 = tpu.matmul %481, %465, %cst_192 {dimension_numbers = #tpu.dot_dimension_numbers<[1], [0], [0], [1], [0, 0, 1, 1], [], []>} : vector<8x8xbf16>, vector<8x8xbf16>, vector<8x8xf32> -> vector<8x8xf32>
    %483 = vector.extract_strided_slice %453 {offsets = [0, 8], sizes = [8, 8], strides = [1, 1]} : vector<8x32xf32> to vector<8x8xf32>
    %484 = arith.truncf %483 : vector<8x8xf32> to vector<8x8xbf16>
    %485 = vector.extract_strided_slice %454 {offsets = [0, 8], sizes = [8, 8], strides = [1, 1]} : vector<8x32xf32> to vector<8x8xf32>
    %486 = arith.truncf %485 : vector<8x8xf32> to vector<8x8xbf16>
    %487 = vector.extract_strided_slice %455 {offsets = [0, 8], sizes = [8, 8], strides = [1, 1]} : vector<8x32xf32> to vector<8x8xf32>
    %488 = arith.truncf %487 : vector<8x8xf32> to vector<8x8xbf16>
    %cst_193 = arith.constant dense<0.000000e+00> : vector<8x8xf32>
    %489 = tpu.matmul %484, %486, %cst_193 {dimension_numbers = #tpu.dot_dimension_numbers<[1], [1], [0], [0], [0, 0, 1, 0], [], []>} : vector<8x8xbf16>, vector<8x8xbf16>, vector<8x8xf32> -> vector<8x8xf32>
    %cst_194 = arith.constant 0.000000e+00 : f32
    %490 = vector.broadcast %cst_194 : f32 to vector<8x8xf32>
    %491 = arith.cmpf ogt, %459, %490 : vector<8x8xf32>
    %cst_195 = arith.constant -1.000000e+09 : f32
    %492 = vector.broadcast %cst_195 : f32 to vector<8x8xf32>
    %493 = arith.select %491, %489, %492 : vector<8x8xi1>, vector<8x8xf32>
    %cst_196 = arith.constant dense<0xFF800000> : vector<8xf32>
    %494 = vector.multi_reduction <maximumf>, %493, %cst_196 [1] : vector<8x8xf32> to vector<8xf32>
    %495 = vector.shape_cast %494 : vector<8xf32> to vector<8x1xf32>
    %496 = vector.broadcast %495 : vector<8x1xf32> to vector<8x8xf32>
    %497 = arith.subf %493, %496 : vector<8x8xf32>
    %498 = math.exp %497 : vector<8x8xf32>
    %cst_197 = arith.constant dense<0.000000e+00> : vector<8xf32>
    %499 = vector.multi_reduction <add>, %498, %cst_197 [1] : vector<8x8xf32> to vector<8xf32>
    %500 = vector.shape_cast %499 : vector<8xf32> to vector<8x1xf32>
    %501 = tpu.reciprocal %500 {approx = true} : vector<8x1xf32> -> vector<8x1xf32>
    %502 = vector.broadcast %501 : vector<8x1xf32> to vector<8x8xf32>
    %503 = arith.mulf %498, %502 : vector<8x8xf32>
    %504 = arith.truncf %503 : vector<8x8xf32> to vector<8x8xbf16>
    %cst_198 = arith.constant dense<0.000000e+00> : vector<8x8xf32>
    %505 = tpu.matmul %504, %488, %cst_198 {dimension_numbers = #tpu.dot_dimension_numbers<[1], [0], [0], [1], [0, 0, 1, 1], [], []>} : vector<8x8xbf16>, vector<8x8xbf16>, vector<8x8xf32> -> vector<8x8xf32>
    %506 = vector.extract_strided_slice %453 {offsets = [0, 16], sizes = [8, 8], strides = [1, 1]} : vector<8x32xf32> to vector<8x8xf32>
    %507 = arith.truncf %506 : vector<8x8xf32> to vector<8x8xbf16>
    %508 = vector.extract_strided_slice %454 {offsets = [0, 16], sizes = [8, 8], strides = [1, 1]} : vector<8x32xf32> to vector<8x8xf32>
    %509 = arith.truncf %508 : vector<8x8xf32> to vector<8x8xbf16>
    %510 = vector.extract_strided_slice %455 {offsets = [0, 16], sizes = [8, 8], strides = [1, 1]} : vector<8x32xf32> to vector<8x8xf32>
    %511 = arith.truncf %510 : vector<8x8xf32> to vector<8x8xbf16>
    %cst_199 = arith.constant dense<0.000000e+00> : vector<8x8xf32>
    %512 = tpu.matmul %507, %509, %cst_199 {dimension_numbers = #tpu.dot_dimension_numbers<[1], [1], [0], [0], [0, 0, 1, 0], [], []>} : vector<8x8xbf16>, vector<8x8xbf16>, vector<8x8xf32> -> vector<8x8xf32>
    %cst_200 = arith.constant 0.000000e+00 : f32
    %513 = vector.broadcast %cst_200 : f32 to vector<8x8xf32>
    %514 = arith.cmpf ogt, %459, %513 : vector<8x8xf32>
    %cst_201 = arith.constant -1.000000e+09 : f32
    %515 = vector.broadcast %cst_201 : f32 to vector<8x8xf32>
    %516 = arith.select %514, %512, %515 : vector<8x8xi1>, vector<8x8xf32>
    %cst_202 = arith.constant dense<0xFF800000> : vector<8xf32>
    %517 = vector.multi_reduction <maximumf>, %516, %cst_202 [1] : vector<8x8xf32> to vector<8xf32>
    %518 = vector.shape_cast %517 : vector<8xf32> to vector<8x1xf32>
    %519 = vector.broadcast %518 : vector<8x1xf32> to vector<8x8xf32>
    %520 = arith.subf %516, %519 : vector<8x8xf32>
    %521 = math.exp %520 : vector<8x8xf32>
    %cst_203 = arith.constant dense<0.000000e+00> : vector<8xf32>
    %522 = vector.multi_reduction <add>, %521, %cst_203 [1] : vector<8x8xf32> to vector<8xf32>
    %523 = vector.shape_cast %522 : vector<8xf32> to vector<8x1xf32>
    %524 = tpu.reciprocal %523 {approx = true} : vector<8x1xf32> -> vector<8x1xf32>
    %525 = vector.broadcast %524 : vector<8x1xf32> to vector<8x8xf32>
    %526 = arith.mulf %521, %525 : vector<8x8xf32>
    %527 = arith.truncf %526 : vector<8x8xf32> to vector<8x8xbf16>
    %cst_204 = arith.constant dense<0.000000e+00> : vector<8x8xf32>
    %528 = tpu.matmul %527, %511, %cst_204 {dimension_numbers = #tpu.dot_dimension_numbers<[1], [0], [0], [1], [0, 0, 1, 1], [], []>} : vector<8x8xbf16>, vector<8x8xbf16>, vector<8x8xf32> -> vector<8x8xf32>
    %529 = vector.extract_strided_slice %453 {offsets = [0, 24], sizes = [8, 8], strides = [1, 1]} : vector<8x32xf32> to vector<8x8xf32>
    %530 = arith.truncf %529 : vector<8x8xf32> to vector<8x8xbf16>
    %531 = vector.extract_strided_slice %454 {offsets = [0, 24], sizes = [8, 8], strides = [1, 1]} : vector<8x32xf32> to vector<8x8xf32>
    %532 = arith.truncf %531 : vector<8x8xf32> to vector<8x8xbf16>
    %533 = vector.extract_strided_slice %455 {offsets = [0, 24], sizes = [8, 8], strides = [1, 1]} : vector<8x32xf32> to vector<8x8xf32>
    %534 = arith.truncf %533 : vector<8x8xf32> to vector<8x8xbf16>
    %cst_205 = arith.constant dense<0.000000e+00> : vector<8x8xf32>
    %535 = tpu.matmul %530, %532, %cst_205 {dimension_numbers = #tpu.dot_dimension_numbers<[1], [1], [0], [0], [0, 0, 1, 0], [], []>} : vector<8x8xbf16>, vector<8x8xbf16>, vector<8x8xf32> -> vector<8x8xf32>
    %cst_206 = arith.constant 0.000000e+00 : f32
    %536 = vector.broadcast %cst_206 : f32 to vector<8x8xf32>
    %537 = arith.cmpf ogt, %459, %536 : vector<8x8xf32>
    %cst_207 = arith.constant -1.000000e+09 : f32
    %538 = vector.broadcast %cst_207 : f32 to vector<8x8xf32>
    %539 = arith.select %537, %535, %538 : vector<8x8xi1>, vector<8x8xf32>
    %cst_208 = arith.constant dense<0xFF800000> : vector<8xf32>
    %540 = vector.multi_reduction <maximumf>, %539, %cst_208 [1] : vector<8x8xf32> to vector<8xf32>
    %541 = vector.shape_cast %540 : vector<8xf32> to vector<8x1xf32>
    %542 = vector.broadcast %541 : vector<8x1xf32> to vector<8x8xf32>
    %543 = arith.subf %539, %542 : vector<8x8xf32>
    %544 = math.exp %543 : vector<8x8xf32>
    %cst_209 = arith.constant dense<0.000000e+00> : vector<8xf32>
    %545 = vector.multi_reduction <add>, %544, %cst_209 [1] : vector<8x8xf32> to vector<8xf32>
    %546 = vector.shape_cast %545 : vector<8xf32> to vector<8x1xf32>
    %547 = tpu.reciprocal %546 {approx = true} : vector<8x1xf32> -> vector<8x1xf32>
    %548 = vector.broadcast %547 : vector<8x1xf32> to vector<8x8xf32>
    %549 = arith.mulf %544, %548 : vector<8x8xf32>
    %550 = arith.truncf %549 : vector<8x8xf32> to vector<8x8xbf16>
    %cst_210 = arith.constant dense<0.000000e+00> : vector<8x8xf32>
    %551 = tpu.matmul %550, %534, %cst_210 {dimension_numbers = #tpu.dot_dimension_numbers<[1], [0], [0], [1], [0, 0, 1, 1], [], []>} : vector<8x8xbf16>, vector<8x8xbf16>, vector<8x8xf32> -> vector<8x8xf32>
    %552 = tpu.concatenate %480, %503, %526, %549 in 1 : vector<8x8xf32>, vector<8x8xf32>, vector<8x8xf32>, vector<8x8xf32> -> vector<8x32xf32>
    %c1_211 = arith.constant 1 : index
    %c0_212 = arith.constant 0 : index
    %c0_213 = arith.constant 0 : index
    %553 = vector.load %arg21[%c1_211, %c0_212, %c0_213] : memref<2x8x32xf32, #tpu.memory_space<vmem>>, vector<1x8x32xf32>
    %554 = vector.shape_cast %553 : vector<1x8x32xf32> to vector<8x32xf32>
    %555 = vector.shape_cast %552 : vector<8x32xf32> to vector<1x8x32xf32>
    tpu.vector_store %arg21[%c1_211, %c0_212, %c0_213], %555 {strides = array<i32>} : memref<2x8x32xf32, #tpu.memory_space<vmem>>, vector<1x8x32xf32>,
    %556 = tpu.concatenate %482, %505, %528, %551 in 1 : vector<8x8xf32>, vector<8x8xf32>, vector<8x8xf32>, vector<8x8xf32> -> vector<8x32xf32>
    %557 = tpu.concatenate %452, %556 in 0 : vector<8x32xf32>, vector<8x32xf32> -> vector<16x32xf32>
    %c1_214 = arith.constant 1 : index
    %c0_215 = arith.constant 0 : index
    %c0_216 = arith.constant 0 : index
    %558 = vector.load %arg9[%c1_214, %c0_215, %c0_216] : memref<2x32x32xbf16, #tpu.memory_space<vmem>>, vector<1x32x32xbf16>
    %559 = vector.shape_cast %558 : vector<1x32x32xbf16> to vector<32x32xbf16>
    %cst_217 = arith.constant dense<0.000000e+00> : vector<16x32xf32>
    %560 = tpu.matmul %341, %559, %cst_217 {dimension_numbers = #tpu.dot_dimension_numbers<[1], [0], [0], [1], [0, 0, 1, 1], [], []>} : vector<16x32xbf16>, vector<32x32xbf16>, vector<16x32xf32> -> vector<16x32xf32>
    %561 = arith.truncf %557 : vector<16x32xf32> to vector<16x32xbf16>
    %c1_218 = arith.constant 1 : index
    %c0_219 = arith.constant 0 : index
    %c0_220 = arith.constant 0 : index
    %562 = vector.load %arg10[%c1_218, %c0_219, %c0_220] : memref<2x32x32xbf16, #tpu.memory_space<vmem>>, vector<1x32x32xbf16>
    %563 = vector.shape_cast %562 : vector<1x32x32xbf16> to vector<32x32xbf16>
    %cst_221 = arith.constant dense<0.000000e+00> : vector<16x32xf32>
    %564 = tpu.matmul %561, %563, %cst_221 {dimension_numbers = #tpu.dot_dimension_numbers<[1], [0], [0], [1], [0, 0, 1, 1], [], []>} : vector<16x32xbf16>, vector<32x32xbf16>, vector<16x32xf32> -> vector<16x32xf32>
    %565 = arith.addf %560, %564 : vector<16x32xf32>
    %c1_222 = arith.constant 1 : index
    %c0_223 = arith.constant 0 : index
    %c0_224 = arith.constant 0 : index
    %566 = vector.load %arg11[%c1_222, %c0_223, %c0_224] : memref<2x1x32xf32, #tpu.memory_space<vmem>>, vector<1x1x32xf32>
    %567 = vector.shape_cast %566 : vector<1x1x32xf32> to vector<1x32xf32>
    %568 = vector.broadcast %567 : vector<1x32xf32> to vector<16x32xf32>
    %569 = arith.addf %565, %568 : vector<16x32xf32>
    %570 = arith.addf %569, %340 : vector<16x32xf32>
    %cst_225 = arith.constant dense<0.000000e+00> : vector<16xf32>
    %571 = vector.multi_reduction <add>, %570, %cst_225 [1] : vector<16x32xf32> to vector<16xf32>
    %572 = vector.shape_cast %571 : vector<16xf32> to vector<16x1xf32>
    %cst_226 = arith.constant 3.200000e+01 : f32
    %573 = vector.broadcast %cst_226 : f32 to vector<16x1xf32>
    %574 = arith.divf %572, %573 : vector<16x1xf32>
    %575 = vector.broadcast %574 : vector<16x1xf32> to vector<16x32xf32>
    %576 = arith.subf %570, %575 : vector<16x32xf32>
    %577 = arith.mulf %576, %576 : vector<16x32xf32>
    %cst_227 = arith.constant dense<0.000000e+00> : vector<16xf32>
    %578 = vector.multi_reduction <add>, %577, %cst_227 [1] : vector<16x32xf32> to vector<16xf32>
    %579 = vector.shape_cast %578 : vector<16xf32> to vector<16x1xf32>
    %cst_228 = arith.constant 3.200000e+01 : f32
    %580 = vector.broadcast %cst_228 : f32 to vector<16x1xf32>
    %581 = arith.divf %579, %580 : vector<16x1xf32>
    %cst_229 = arith.constant 9.99999974E-6 : f32
    %582 = vector.broadcast %cst_229 : f32 to vector<16x1xf32>
    %583 = arith.addf %581, %582 : vector<16x1xf32>
    %584 = math.rsqrt %583 : vector<16x1xf32>
    %585 = vector.broadcast %584 : vector<16x1xf32> to vector<16x32xf32>
    %586 = arith.mulf %576, %585 : vector<16x32xf32>
    %c1_230 = arith.constant 1 : index
    %c0_231 = arith.constant 0 : index
    %c0_232 = arith.constant 0 : index
    %587 = vector.load %arg12[%c1_230, %c0_231, %c0_232] : memref<2x1x32xf32, #tpu.memory_space<vmem>>, vector<1x1x32xf32>
    %588 = vector.shape_cast %587 : vector<1x1x32xf32> to vector<1x32xf32>
    %589 = vector.broadcast %588 : vector<1x32xf32> to vector<16x32xf32>
    %590 = arith.mulf %586, %589 : vector<16x32xf32>
    %c1_233 = arith.constant 1 : index
    %c0_234 = arith.constant 0 : index
    %c0_235 = arith.constant 0 : index
    %591 = vector.load %arg13[%c1_233, %c0_234, %c0_235] : memref<2x1x32xf32, #tpu.memory_space<vmem>>, vector<1x1x32xf32>
    %592 = vector.shape_cast %591 : vector<1x1x32xf32> to vector<1x32xf32>
    %593 = vector.broadcast %592 : vector<1x32xf32> to vector<16x32xf32>
    %594 = arith.addf %590, %593 : vector<16x32xf32>
    %595 = arith.truncf %594 : vector<16x32xf32> to vector<16x32xbf16>
    %c1_236 = arith.constant 1 : index
    %c0_237 = arith.constant 0 : index
    %c0_238 = arith.constant 0 : index
    %596 = vector.load %arg14[%c1_236, %c0_237, %c0_238] : memref<2x32x128xbf16, #tpu.memory_space<vmem>>, vector<1x32x128xbf16>
    %597 = vector.shape_cast %596 : vector<1x32x128xbf16> to vector<32x128xbf16>
    %cst_239 = arith.constant dense<0.000000e+00> : vector<16x128xf32>
    %598 = tpu.matmul %595, %597, %cst_239 {dimension_numbers = #tpu.dot_dimension_numbers<[1], [0], [0], [1], [0, 0, 1, 1], [], []>} : vector<16x32xbf16>, vector<32x128xbf16>, vector<16x128xf32> -> vector<16x128xf32>
    %c1_240 = arith.constant 1 : index
    %c0_241 = arith.constant 0 : index
    %c0_242 = arith.constant 0 : index
    %599 = vector.load %arg15[%c1_240, %c0_241, %c0_242] : memref<2x1x128xf32, #tpu.memory_space<vmem>>, vector<1x1x128xf32>
    %600 = vector.shape_cast %599 : vector<1x1x128xf32> to vector<1x128xf32>
    %601 = vector.broadcast %600 : vector<1x128xf32> to vector<16x128xf32>
    %602 = arith.addf %598, %601 : vector<16x128xf32>
    %cst_243 = arith.constant 0.000000e+00 : f32
    %603 = vector.broadcast %cst_243 : f32 to vector<16x128xf32>
    %604 = arith.cmpf oge, %602, %603 : vector<16x128xf32>
    %cst_244 = arith.constant 2.000000e-01 : f32
    %605 = vector.broadcast %cst_244 : f32 to vector<16x128xf32>
    %606 = arith.mulf %605, %602 : vector<16x128xf32>
    %607 = arith.select %604, %602, %606 : vector<16x128xi1>, vector<16x128xf32>
    %608 = arith.truncf %607 : vector<16x128xf32> to vector<16x128xbf16>
    %c1_245 = arith.constant 1 : index
    %c0_246 = arith.constant 0 : index
    %c0_247 = arith.constant 0 : index
    %609 = vector.load %arg16[%c1_245, %c0_246, %c0_247] : memref<2x128x32xbf16, #tpu.memory_space<vmem>>, vector<1x128x32xbf16>
    %610 = vector.shape_cast %609 : vector<1x128x32xbf16> to vector<128x32xbf16>
    %cst_248 = arith.constant dense<0.000000e+00> : vector<16x32xf32>
    %611 = tpu.matmul %608, %610, %cst_248 {dimension_numbers = #tpu.dot_dimension_numbers<[1], [0], [0], [1], [0, 0, 1, 1], [], []>} : vector<16x128xbf16>, vector<128x32xbf16>, vector<16x32xf32> -> vector<16x32xf32>
    %c1_249 = arith.constant 1 : index
    %c0_250 = arith.constant 0 : index
    %c0_251 = arith.constant 0 : index
    %612 = vector.load %arg17[%c1_249, %c0_250, %c0_251] : memref<2x1x32xf32, #tpu.memory_space<vmem>>, vector<1x1x32xf32>
    %613 = vector.shape_cast %612 : vector<1x1x32xf32> to vector<1x32xf32>
    %614 = vector.broadcast %613 : vector<1x32xf32> to vector<16x32xf32>
    %615 = arith.addf %611, %614 : vector<16x32xf32>
    %616 = arith.addf %615, %594 : vector<16x32xf32>
    %cst_252 = arith.constant dense<0.000000e+00> : vector<16xf32>
    %617 = vector.multi_reduction <add>, %616, %cst_252 [1] : vector<16x32xf32> to vector<16xf32>
    %618 = vector.shape_cast %617 : vector<16xf32> to vector<16x1xf32>
    %cst_253 = arith.constant 3.200000e+01 : f32
    %619 = vector.broadcast %cst_253 : f32 to vector<16x1xf32>
    %620 = arith.divf %618, %619 : vector<16x1xf32>
    %621 = vector.broadcast %620 : vector<16x1xf32> to vector<16x32xf32>
    %622 = arith.subf %616, %621 : vector<16x32xf32>
    %623 = arith.mulf %622, %622 : vector<16x32xf32>
    %cst_254 = arith.constant dense<0.000000e+00> : vector<16xf32>
    %624 = vector.multi_reduction <add>, %623, %cst_254 [1] : vector<16x32xf32> to vector<16xf32>
    %625 = vector.shape_cast %624 : vector<16xf32> to vector<16x1xf32>
    %cst_255 = arith.constant 3.200000e+01 : f32
    %626 = vector.broadcast %cst_255 : f32 to vector<16x1xf32>
    %627 = arith.divf %625, %626 : vector<16x1xf32>
    %cst_256 = arith.constant 9.99999974E-6 : f32
    %628 = vector.broadcast %cst_256 : f32 to vector<16x1xf32>
    %629 = arith.addf %627, %628 : vector<16x1xf32>
    %630 = math.rsqrt %629 : vector<16x1xf32>
    %631 = vector.broadcast %630 : vector<16x1xf32> to vector<16x32xf32>
    %632 = arith.mulf %622, %631 : vector<16x32xf32>
    %c1_257 = arith.constant 1 : index
    %c0_258 = arith.constant 0 : index
    %c0_259 = arith.constant 0 : index
    %633 = vector.load %arg18[%c1_257, %c0_258, %c0_259] : memref<2x1x32xf32, #tpu.memory_space<vmem>>, vector<1x1x32xf32>
    %634 = vector.shape_cast %633 : vector<1x1x32xf32> to vector<1x32xf32>
    %635 = vector.broadcast %634 : vector<1x32xf32> to vector<16x32xf32>
    %636 = arith.mulf %632, %635 : vector<16x32xf32>
    %c1_260 = arith.constant 1 : index
    %c0_261 = arith.constant 0 : index
    %c0_262 = arith.constant 0 : index
    %637 = vector.load %arg19[%c1_260, %c0_261, %c0_262] : memref<2x1x32xf32, #tpu.memory_space<vmem>>, vector<1x1x32xf32>
    %638 = vector.shape_cast %637 : vector<1x1x32xf32> to vector<1x32xf32>
    %639 = vector.broadcast %638 : vector<1x32xf32> to vector<16x32xf32>
    %640 = arith.addf %636, %639 : vector<16x32xf32>
    %c0_263 = arith.constant 0 : index
    %c0_264 = arith.constant 0 : index
    %641 = vector.load %arg20[%c0_263, %c0_264] : memref<16x32xf32, #tpu.memory_space<vmem>>, vector<16x32xf32>
    tpu.vector_store %arg20[%c0_263, %c0_264], %640 {strides = array<i32>} : memref<16x32xf32, #tpu.memory_space<vmem>>, vector<16x32xf32>,
    return
  }
}

</mosaic_0001>

<llo_original>
// kernel: tpu_custom_call.1
$region0: #{tpu_custom_call.1}
  #allocation0 [shape = 'u32[]', space=smem, size = 0x4, offset = 0x4, fixed_abs, tag = 'smem constant byte address 0x4 - core index']
  #allocation1 [shape = 'u32[144,128]{1,0:T(1,128)}', space=vmem, size = 0x12000, scoped, tag = 'internal scratch']
  %s0 = inlined_call_operand.vmem [shape: f32[2,16,16], index: 0, kind: input, shape index: {}]
  %s1 = inlined_call_operand.vmem [shape: f32[2,7,16], index: 1, kind: input, shape index: {}]
  %s2 = inlined_call_operand.vmem [shape: f32[2,1,32], index: 2, kind: input, shape index: {}]
  %s3 = inlined_call_operand.vmem [shape: bf16[16,32], index: 3, kind: input, shape index: {}]
  %s4 = inlined_call_operand.hbm [shape: f32[1,32], index: 4, kind: input, shape index: {}]
  %s5 = inlined_call_operand.vmem [shape: f32[8,32], index: 5, kind: input, shape index: {}]
  %s6 = inlined_call_operand.vmem [shape: f32[2,1,8], index: 6, kind: input, shape index: {}]
  %s7 = inlined_call_operand.vmem [shape: bf16[2,32,96], index: 7, kind: input, shape index: {}]
  %s8 = inlined_call_operand.vmem [shape: f32[2,1,96], index: 8, kind: input, shape index: {}]
  %s9 = inlined_call_operand.vmem [shape: bf16[2,32,32], index: 9, kind: input, shape index: {}]
  %s10 = inlined_call_operand.vmem [shape: bf16[2,32,32], index: 10, kind: input, shape index: {}]
  %s11 = inlined_call_operand.vmem [shape: f32[2,1,32], index: 11, kind: input, shape index: {}]
  %s12 = inlined_call_operand.vmem [shape: f32[2,1,32], index: 12, kind: input, shape index: {}]
  %s13 = inlined_call_operand.vmem [shape: f32[2,1,32], index: 13, kind: input, shape index: {}]
  %s14 = inlined_call_operand.vmem [shape: bf16[2,32,128], index: 14, kind: input, shape index: {}]
  %s15 = inlined_call_operand.vmem [shape: f32[2,1,128], index: 15, kind: input, shape index: {}]
  %s16 = inlined_call_operand.vmem [shape: bf16[2,128,32], index: 16, kind: input, shape index: {}]
  %s17 = inlined_call_operand.vmem [shape: f32[2,1,32], index: 17, kind: input, shape index: {}]
  %s18 = inlined_call_operand.vmem [shape: f32[2,1,32], index: 18, kind: input, shape index: {}]
  %s19 = inlined_call_operand.vmem [shape: f32[2,1,32], index: 19, kind: input, shape index: {}]
  %s20 = inlined_call_operand.hbm [shape: f32[16,32], index: 20, kind: output, shape index: {0}]
  %s21 = inlined_call_operand.hbm [shape: f32[2,8,32], index: 21, kind: output, shape index: {1}]
  %22 = xla_tuple %s20, %s21
  %s23 = sld [smem:[#allocation0]]
  $region102: #{tpu_custom_call.1} parent=0
    _
  %s25 = ssub.s32 1, %s23
  %s26 = scalar_select 0, %s25, %s23
  $region1: #{tpu_custom_call.1} parent=0
    #allocation2 [shape = 'u8[512]{0}', space=vmem, size = 0x400, scoped, tag = 'input window, operand 4, single buffered']
    #allocation3 [shape = 's32[1]{0}', space=sflag, size = 0x4, scoped, tag = 'scoped memory for tpu_custom_call.1']
    #allocation4 [shape = 's32[1]{0}', space=sflag, size = 0x4, scoped, tag = 'scoped memory for tpu_custom_call.1']
    #allocation5 [shape = 'u8[8192]{0}', space=vmem, size = 0x2000, scoped, tag = 'output window, operand 0, single buffered']
    #allocation6 [shape = 'u8[8192]{0}', space=vmem, size = 0x2000, scoped, tag = 'output window, operand 1, single buffered']
    #allocation7 [shape = 's32[1]{0}', space=sflag, size = 0x4, scoped, tag = 'scoped memory for tpu_custom_call.1']
    %27 = vsyncpa [#allocation3], 0
    %28 = vsyncpa [#allocation4], 0
    %29 = vsyncpa [#allocation7], 0
    // Predicated region
    $region2: #{tpu_custom_call.1} parent=1 // pred_check
      _
    $region3: #{tpu_custom_call.1} parent=1 // pred_check_branch
      %31 = sbr.rel (0) target = $region5
    $region4: #{tpu_custom_call.1} parent=1 // pred_region
      _
    $region5: #{tpu_custom_call.1} parent=1 // pred_fallthru
      _
    // Predicated region
    $region6: #{tpu_custom_call.1} parent=1 // pred_check
      _
    $region7: #{tpu_custom_call.1} parent=1 // pred_check_branch
      %33 = sbr.rel (0) target = $region9
    $region8: #{tpu_custom_call.1} parent=1 // pred_region
      _
    $region9: #{tpu_custom_call.1} parent=1 // pred_fallthru
      _
    // Predicated region
    $region10: #{tpu_custom_call.1} parent=1 // pred_check
      _
    $region11: #{tpu_custom_call.1} parent=1 // pred_check_branch
      %35 = sbr.rel (0) target = $region13
    $region12: #{tpu_custom_call.1} parent=1 // pred_region
      _
    $region13: #{tpu_custom_call.1} parent=1 // pred_fallthru
      _
    // Predicated region
    $region14: #{tpu_custom_call.1} parent=1 // pred_check
      _
    $region15: #{tpu_custom_call.1} parent=1 // pred_check_branch
      %37 = sbr.rel (0) target = $region17
    $region16: #{tpu_custom_call.1} parent=1 // pred_region
      _
    $region17: #{tpu_custom_call.1} parent=1 // pred_fallthru
      _
    // Predicated region
    $region18: #{tpu_custom_call.1} parent=1 // pred_check
      _
    $region19: #{tpu_custom_call.1} parent=1 // pred_check_branch
      %39 = sbr.rel (0) target = $region21
    $region20: #{tpu_custom_call.1} parent=1 // pred_region
      %s41 = ssub.s32 16, 16
      %42 = vsyncadd [#allocation3], %s41
      %s44 = sshll.u32 [#allocation2], 4
      %s45 = int_to_ptr.vmem [resolvable:$true] %s44
      %47 = dma.hbm_to_vmem [thread:$0]  %s4, 16, %s45, [#allocation3]
    $region21: #{tpu_custom_call.1} parent=1 // pred_fallthru
      _
    // Predicated region
    $region22: #{tpu_custom_call.1} parent=1 // pred_check
      _
    $region23: #{tpu_custom_call.1} parent=1 // pred_check_branch
      %49 = sbr.rel (0) target = $region25
    $region24: #{tpu_custom_call.1} parent=1 // pred_region
      _
    $region25: #{tpu_custom_call.1} parent=1 // pred_fallthru
      _
    // Predicated region
    $region26: #{tpu_custom_call.1} parent=1 // pred_check
      _
    $region27: #{tpu_custom_call.1} parent=1 // pred_check_branch
      %51 = sbr.rel (0) target = $region29
    $region28: #{tpu_custom_call.1} parent=1 // pred_region
      _
    $region29: #{tpu_custom_call.1} parent=1 // pred_fallthru
      _
    // Predicated region
    $region30: #{tpu_custom_call.1} parent=1 // pred_check
      _
    $region31: #{tpu_custom_call.1} parent=1 // pred_check_branch
      %53 = sbr.rel (0) target = $region33
    $region32: #{tpu_custom_call.1} parent=1 // pred_region
      _
    $region33: #{tpu_custom_call.1} parent=1 // pred_fallthru
      _
    // Predicated region
    $region34: #{tpu_custom_call.1} parent=1 // pred_check
      _
    $region35: #{tpu_custom_call.1} parent=1 // pred_check_branch
      %55 = sbr.rel (0) target = $region37
    $region36: #{tpu_custom_call.1} parent=1 // pred_region
      _
    $region37: #{tpu_custom_call.1} parent=1 // pred_fallthru
      _
    // Predicated region
    $region38: #{tpu_custom_call.1} parent=1 // pred_check
      _
    $region39: #{tpu_custom_call.1} parent=1 // pred_check_branch
      %57 = sbr.rel (0) target = $region41
    $region40: #{tpu_custom_call.1} parent=1 // pred_region
      _
    $region41: #{tpu_custom_call.1} parent=1 // pred_fallthru
      _
    // Predicated region
    $region42: #{tpu_custom_call.1} parent=1 // pred_check
      _
    $region43: #{tpu_custom_call.1} parent=1 // pred_check_branch
      %59 = sbr.rel (0) target = $region45
    $region44: #{tpu_custom_call.1} parent=1 // pred_region
      _
    $region45: #{tpu_custom_call.1} parent=1 // pred_fallthru
      _
    // Predicated region
    $region46: #{tpu_custom_call.1} parent=1 // pred_check
      _
    $region47: #{tpu_custom_call.1} parent=1 // pred_check_branch
      %61 = sbr.rel (0) target = $region49
    $region48: #{tpu_custom_call.1} parent=1 // pred_region
      _
    $region49: #{tpu_custom_call.1} parent=1 // pred_fallthru
      _
    // Predicated region
    $region50: #{tpu_custom_call.1} parent=1 // pred_check
      _
    $region51: #{tpu_custom_call.1} parent=1 // pred_check_branch
      %63 = sbr.rel (0) target = $region53
    $region52: #{tpu_custom_call.1} parent=1 // pred_region
      _
    $region53: #{tpu_custom_call.1} parent=1 // pred_fallthru
      _
    // Predicated region
    $region54: #{tpu_custom_call.1} parent=1 // pred_check
      _
    $region55: #{tpu_custom_call.1} parent=1 // pred_check_branch
      %65 = sbr.rel (0) target = $region57
    $region56: #{tpu_custom_call.1} parent=1 // pred_region
      _
    $region57: #{tpu_custom_call.1} parent=1 // pred_fallthru
      _
    // Predicated region
    $region58: #{tpu_custom_call.1} parent=1 // pred_check
      _
    $region59: #{tpu_custom_call.1} parent=1 // pred_check_branch
      %67 = sbr.rel (0) target = $region61
    $region60: #{tpu_custom_call.1} parent=1 // pred_region
      _
    $region61: #{tpu_custom_call.1} parent=1 // pred_fallthru
      _
    // Predicated region
    $region62: #{tpu_custom_call.1} parent=1 // pred_check
      _
    $region63: #{tpu_custom_call.1} parent=1 // pred_check_branch
      %69 = sbr.rel (0) target = $region65
    $region64: #{tpu_custom_call.1} parent=1 // pred_region
      _
    $region65: #{tpu_custom_call.1} parent=1 // pred_fallthru
      _
    // Predicated region
    $region66: #{tpu_custom_call.1} parent=1 // pred_check
      _
    $region67: #{tpu_custom_call.1} parent=1 // pred_check_branch
      %71 = sbr.rel (0) target = $region69
    $region68: #{tpu_custom_call.1} parent=1 // pred_region
      _
    $region69: #{tpu_custom_call.1} parent=1 // pred_fallthru
      _
    // Predicated region
    $region70: #{tpu_custom_call.1} parent=1 // pred_check
      _
    $region71: #{tpu_custom_call.1} parent=1 // pred_check_branch
      %73 = sbr.rel (0) target = $region73
    $region72: #{tpu_custom_call.1} parent=1 // pred_region
      _
    $region73: #{tpu_custom_call.1} parent=1 // pred_fallthru
      _
    // Predicated region
    $region74: #{tpu_custom_call.1} parent=1 // pred_check
      _
    $region75: #{tpu_custom_call.1} parent=1 // pred_check_branch
      %75 = sbr.rel (0) target = $region77
    $region76: #{tpu_custom_call.1} parent=1 // pred_region
      _
    $region77: #{tpu_custom_call.1} parent=1 // pred_fallthru
      _
    // Predicated region
    $region78: #{tpu_custom_call.1} parent=1 // pred_check
      _
    $region79: #{tpu_custom_call.1} parent=1 // pred_check_branch
      %77 = sbr.rel (0) target = $region81
    $region80: #{tpu_custom_call.1} parent=1 // pred_region
      _
    $region81: #{tpu_custom_call.1} parent=1 // pred_fallthru
      _
    // Predicated region
    $region82: #{tpu_custom_call.1} parent=1 // pred_check
      _
    $region83: #{tpu_custom_call.1} parent=1 // pred_check_branch
      %79 = sbr.rel (0) target = $region85
    $region84: #{tpu_custom_call.1} parent=1 // pred_region
      %80 = dma.done [#allocation3], 16
    $region85: #{tpu_custom_call.1} parent=1 // pred_fallthru
      _
    %v82 = vld [vmem:[%s1] sm:$0x7f]
    %v83 = vld [vmem:[%s0] sm:$0xff]
    %v84 = vld [vmem:[%s0 + $0x8] sm:$0xff]
    %vm85 = vcmask 130048
    %v87 = vsel %vm85, %v82, 0
    %89 = vmatprep.subr.mxu0 0.0
    %90 = vmatpush1.msra.mxu0 %v83
    %91 = vmatprep.subr.mxu0 0.0
    %92 = vmatpush1.msra.mxu0 %v84
    %93 = vmatprep.subr.mxu0 0.0
    %94 = vmatpush1.msra.mxu0 0.0
    %95 = vmatprep.subr.mxu0 0.0
    %96 = vmatpush1.msra.mxu0 0.0
    %97 = vmatprep.subr.mxu0 0.0
    %98 = vmatpush1.msra.mxu0 0.0
    %99 = vmatprep.subr.mxu0 0.0
    %100 = vmatpush1.msra.mxu0 0.0
    %101 = vmatprep.subr.mxu0 0.0
    %102 = vmatpush1.msra.mxu0 0.0
    %103 = vmatprep.subr.mxu0 0.0
    %104 = vmatpush1.msra.mxu0 0.0
    %105 = vmatprep.subr.mxu0 0.0
    %106 = vmatpush1.msra.mxu0 0.0
    %107 = vmatprep.subr.mxu0 0.0
    %108 = vmatpush1.msra.mxu0 0.0
    %109 = vmatprep.subr.mxu0 0.0
    %110 = vmatpush1.msra.mxu0 0.0
    %111 = vmatprep.subr.mxu0 0.0
    %112 = vmatpush1.msra.mxu0 0.0
    %113 = vmatprep.subr.mxu0 0.0
    %114 = vmatpush1.msra.mxu0 0.0
    %115 = vmatprep.subr.mxu0 0.0
    %116 = vmatpush1.msra.mxu0 0.0
    %117 = vmatprep.subr.mxu0 0.0
    %118 = vmatpush1.msra.mxu0 0.0
    %119 = vmatprep.subr.mxu0 0.0
    %120 = vmatpush1.msra.mxu0 0.0
    %121 = vmatprep.subr.mxu0 0.0
    %122 = vmatpush1.msra.mxu0 0.0
    %123 = vmatprep.subr.mxu0 0.0
    %124 = vmatpush1.msra.mxu0 0.0
    %125 = vmatprep.subr.mxu0 0.0
    %126 = vmatpush1.msra.mxu0 0.0
    %127 = vmatprep.subr.mxu0 0.0
    %128 = vmatpush1.msra.mxu0 0.0
    %129 = vmatprep.subr.mxu0 0.0
    %130 = vmatpush1.msra.mxu0 0.0
    %131 = vmatprep.subr.mxu0 0.0
    %132 = vmatpush1.msra.mxu0 0.0
    %133 = vmatprep.subr.mxu0 0.0
    %134 = vmatpush1.msra.mxu0 0.0
    %135 = vmatprep.subr.mxu0 0.0
    %136 = vmatpush1.msra.mxu0 0.0
    %137 = vmatprep.subr.mxu0 0.0
    %138 = vmatpush1.msra.mxu0 0.0
    %139 = vmatprep.subr.mxu0 0.0
    %140 = vmatpush1.msra.mxu0 0.0
    %141 = vmatprep.subr.mxu0 0.0
    %142 = vmatpush1.msra.mxu0 0.0
    %143 = vmatprep.subr.mxu0 0.0
    %144 = vmatpush1.msra.mxu0 0.0
    %145 = vmatprep.subr.mxu0 0.0
    %146 = vmatpush1.msra.mxu0 0.0
    %147 = vmatprep.subr.mxu0 0.0
    %148 = vmatpush1.msra.mxu0 0.0
    %149 = vmatprep.subr.mxu0 0.0
    %150 = vmatpush1.msra.mxu0 0.0
    %151 = vmatprep.subr.mxu0 0.0
    %152 = vmatpush1.msra.mxu0 0.0
    %153 = vmatprep.mubr.f32.mxu0 0.0
    %154 = vmatmul.mubr.f32.gmra.mrb[0].mxu0 %v87
    %v155 = vpop.f32.mrb[0].mxu0
    %v156 = vadd.f32 0.0, %v155
    %v157 = vpop.f32.mrb[0].mxu0
    %158 = vdwg.mxu0
    %vm159 = vcmask 129024
    %v160 = vsel %vm159, %v82, 0.0
    %161 = vadd.xlane.f32.xlu0 %v160
    %v162 = vpop.xlane.xlu0 %161
    %vm163 = vcmp.eq.f32.partialorder %v162, 0.0
    %v164 = vsel %vm163, 1.0, %v162
    %v165 = vrcp.pop %v164
    %v166 = vmul.f32 %v156, %v165
    %v167 = vpack.c.bf16 %v166, %v166
    %v168 = vld [vmem:[%s3] sm:$0xf]
    %v169 = vld [vmem:[%s3 + $0x4] sm:$0xf]
    %v170 = vld [vmem:[#allocation2] sm:$0x1]
    %v172 = vlaneseq
    %v173 = vshrl.u32 %v172, 7
    %v174 = vsub.s32 0, %v173
    %v175 = vrot.slane %v170, %v174
    %v179 = vunpack.c.l.b16 %v168
    %v180 = vunpack.c.l.b16 %v169
    %v181 = vpack.c.b16 %v180, %v179
    %v184 = vsel %vm85, %v167, 0
    %186 = vmatprep.subr.bf16.mxu0 0
    %187 = vmatpush1.bf16.msra.mxu0 %v181
    %188 = vmatprep.subr.bf16.mxu0 0
    %189 = vmatpush1.bf16.msra.mxu0 0
    %190 = vmatprep.subr.bf16.mxu0 0
    %191 = vmatpush1.bf16.msra.mxu0 0
    %192 = vmatprep.subr.bf16.mxu0 0
    %193 = vmatpush1.bf16.msra.mxu0 0
    %194 = vmatprep.subr.bf16.mxu0 0
    %195 = vmatpush1.bf16.msra.mxu0 0
    %196 = vmatprep.subr.bf16.mxu0 0
    %197 = vmatpush1.bf16.msra.mxu0 0
    %198 = vmatprep.subr.bf16.mxu0 0
    %199 = vmatpush1.bf16.msra.mxu0 0
    %200 = vmatprep.subr.bf16.mxu0 0
    %201 = vmatpush1.bf16.msra.mxu0 0
    %202 = vmatprep.subr.bf16.mxu0 0
    %203 = vmatpush1.bf16.msra.mxu0 0
    %204 = vmatprep.subr.bf16.mxu0 0
    %205 = vmatpush1.bf16.msra.mxu0 0
    %206 = vmatprep.subr.bf16.mxu0 0
    %207 = vmatpush1.bf16.msra.mxu0 0
    %208 = vmatprep.subr.bf16.mxu0 0
    %209 = vmatpush1.bf16.msra.mxu0 0
    %210 = vmatprep.subr.bf16.mxu0 0
    %211 = vmatpush1.bf16.msra.mxu0 0
    %212 = vmatprep.subr.bf16.mxu0 0
    %213 = vmatpush1.bf16.msra.mxu0 0
    %214 = vmatprep.subr.bf16.mxu0 0
    %215 = vmatpush1.bf16.msra.mxu0 0
    %216 = vmatprep.subr.bf16.mxu0 0
    %217 = vmatpush1.bf16.msra.mxu0 0
    %218 = vmatprep.mubr.bf16.mxu0 0
    %219 = vmatmul.mubr.bf16.gmra.mrb[0].mxu0 %v184
    %v220 = vpop.f32.mrb[0].mxu0
    %v221 = vadd.f32 %v175, %v220
    %v222 = vpop.f32.mrb[0].mxu0
    %v223 = vpop.f32.mrb[0].mxu0
    %v224 = vpop.f32.mrb[0].mxu0
    %225 = vdwg.mxu0
    %v226 = vld [vmem:[%s2] sm:$0x1]
    %v228 = vrot.slane %v221, 7
    %vm230 = vcmask 1040384
    %v231 = vsel %vm230, %v226, %v228
    %v232 = vld [vmem:[%s5] sm:$0xff]
    %v233 = vadd.f32 %v231, %v232
    %s234 = scalar_lea.vmem %s1, 8
    %v235 = vld [vmem:[%s234] sm:$0x7f]
    %s236 = scalar_lea.vmem %s0, 16
    %v237 = vld [vmem:[%s236] sm:$0xff]
    %v238 = vld [vmem:[%s236 + $0x8] sm:$0xff]
    %v240 = vsel %vm85, %v235, 0
    %242 = vmatprep.subr.mxu0 0.0
    %243 = vmatpush1.msra.mxu0 %v237
    %244 = vmatprep.subr.mxu0 0.0
    %245 = vmatpush1.msra.mxu0 %v238
    %246 = vmatprep.subr.mxu0 0.0
    %247 = vmatpush1.msra.mxu0 0.0
    %248 = vmatprep.subr.mxu0 0.0
    %249 = vmatpush1.msra.mxu0 0.0
    %250 = vmatprep.subr.mxu0 0.0
    %251 = vmatpush1.msra.mxu0 0.0
    %252 = vmatprep.subr.mxu0 0.0
    %253 = vmatpush1.msra.mxu0 0.0
    %254 = vmatprep.subr.mxu0 0.0
    %255 = vmatpush1.msra.mxu0 0.0
    %256 = vmatprep.subr.mxu0 0.0
    %257 = vmatpush1.msra.mxu0 0.0
    %258 = vmatprep.subr.mxu0 0.0
    %259 = vmatpush1.msra.mxu0 0.0
    %260 = vmatprep.subr.mxu0 0.0
    %261 = vmatpush1.msra.mxu0 0.0
    %262 = vmatprep.subr.mxu0 0.0
    %263 = vmatpush1.msra.mxu0 0.0
    %264 = vmatprep.subr.mxu0 0.0
    %265 = vmatpush1.msra.mxu0 0.0
    %266 = vmatprep.subr.mxu0 0.0
    %267 = vmatpush1.msra.mxu0 0.0
    %268 = vmatprep.subr.mxu0 0.0
    %269 = vmatpush1.msra.mxu0 0.0
    %270 = vmatprep.subr.mxu0 0.0
    %271 = vmatpush1.msra.mxu0 0.0
    %272 = vmatprep.subr.mxu0 0.0
    %273 = vmatpush1.msra.mxu0 0.0
    %274 = vmatprep.subr.mxu0 0.0
    %275 = vmatpush1.msra.mxu0 0.0
    %276 = vmatprep.subr.mxu0 0.0
    %277 = vmatpush1.msra.mxu0 0.0
    %278 = vmatprep.subr.mxu0 0.0
    %279 = vmatpush1.msra.mxu0 0.0
    %280 = vmatprep.subr.mxu0 0.0
    %281 = vmatpush1.msra.mxu0 0.0
    %282 = vmatprep.subr.mxu0 0.0
    %283 = vmatpush1.msra.mxu0 0.0
    %284 = vmatprep.subr.mxu0 0.0
    %285 = vmatpush1.msra.mxu0 0.0
    %286 = vmatprep.subr.mxu0 0.0
    %287 = vmatpush1.msra.mxu0 0.0
    %288 = vmatprep.subr.mxu0 0.0
    %289 = vmatpush1.msra.mxu0 0.0
    %290 = vmatprep.subr.mxu0 0.0
    %291 = vmatpush1.msra.mxu0 0.0
    %292 = vmatprep.subr.mxu0 0.0
    %293 = vmatpush1.msra.mxu0 0.0
    %294 = vmatprep.subr.mxu0 0.0
    %295 = vmatpush1.msra.mxu0 0.0
    %296 = vmatprep.subr.mxu0 0.0
    %297 = vmatpush1.msra.mxu0 0.0
    %298 = vmatprep.subr.mxu0 0.0
    %299 = vmatpush1.msra.mxu0 0.0
    %300 = vmatprep.subr.mxu0 0.0
    %301 = vmatpush1.msra.mxu0 0.0
    %302 = vmatprep.subr.mxu0 0.0
    %303 = vmatpush1.msra.mxu0 0.0
    %304 = vmatprep.subr.mxu0 0.0
    %305 = vmatpush1.msra.mxu0 0.0
    %306 = vmatprep.mubr.f32.mxu0 0.0
    %307 = vmatmul.mubr.f32.gmra.mrb[0].mxu0 %v240
    %v308 = vpop.f32.mrb[0].mxu0
    %v309 = vadd.f32 0.0, %v308
    %v310 = vpop.f32.mrb[0].mxu0
    %311 = vdwg.mxu0
    %v312 = vsel %vm159, %v235, 0.0
    %313 = vadd.xlane.f32.xlu0 %v312
    %v314 = vpop.xlane.xlu0 %313
    %vm315 = vcmp.eq.f32.partialorder %v314, 0.0
    %v316 = vsel %vm315, 1.0, %v314
    %v317 = vrcp.pop %v316
    %v318 = vmul.f32 %v309, %v317
    %v319 = vpack.c.bf16 %v318, %v318
    %v321 = vsel %vm85, %v319, 0
    %323 = vmatprep.subr.bf16.mxu0 0
    %324 = vmatpush1.bf16.msra.mxu0 %v181
    %325 = vmatprep.subr.bf16.mxu0 0
    %326 = vmatpush1.bf16.msra.mxu0 0
    %327 = vmatprep.subr.bf16.mxu0 0
    %328 = vmatpush1.bf16.msra.mxu0 0
    %329 = vmatprep.subr.bf16.mxu0 0
    %330 = vmatpush1.bf16.msra.mxu0 0
    %331 = vmatprep.subr.bf16.mxu0 0
    %332 = vmatpush1.bf16.msra.mxu0 0
    %333 = vmatprep.subr.bf16.mxu0 0
    %334 = vmatpush1.bf16.msra.mxu0 0
    %335 = vmatprep.subr.bf16.mxu0 0
    %336 = vmatpush1.bf16.msra.mxu0 0
    %337 = vmatprep.subr.bf16.mxu0 0
    %338 = vmatpush1.bf16.msra.mxu0 0
    %339 = vmatprep.subr.bf16.mxu0 0
    %340 = vmatpush1.bf16.msra.mxu0 0
    %341 = vmatprep.subr.bf16.mxu0 0
    %342 = vmatpush1.bf16.msra.mxu0 0
    %343 = vmatprep.subr.bf16.mxu0 0
    %344 = vmatpush1.bf16.msra.mxu0 0
    %345 = vmatprep.subr.bf16.mxu0 0
    %346 = vmatpush1.bf16.msra.mxu0 0
    %347 = vmatprep.subr.bf16.mxu0 0
    %348 = vmatpush1.bf16.msra.mxu0 0
    %349 = vmatprep.subr.bf16.mxu0 0
    %350 = vmatpush1.bf16.msra.mxu0 0
    %351 = vmatprep.subr.bf16.mxu0 0
    %352 = vmatpush1.bf16.msra.mxu0 0
    %353 = vmatprep.subr.bf16.mxu0 0
    %354 = vmatpush1.bf16.msra.mxu0 0
    %355 = vmatprep.mubr.bf16.mxu0 0
    %356 = vmatmul.mubr.bf16.gmra.mrb[0].mxu0 %v321
    %v357 = vpop.f32.mrb[0].mxu0
    %v358 = vadd.f32 %v175, %v357
    %v359 = vpop.f32.mrb[0].mxu0
    %v360 = vpop.f32.mrb[0].mxu0
    %v361 = vpop.f32.mrb[0].mxu0
    %362 = vdwg.mxu0
    %s363 = scalar_lea.vmem %s2, 1
    %v364 = vld [vmem:[%s363] sm:$0x1]
    %v366 = vrot.slane %v358, 7
    %v368 = vsel %vm230, %v364, %v366
    %v369 = vadd.f32 %v368, %v232
    %v370 = vpack.c.bf16 %v369, %v233
    %v371 = vld [vmem:[%s7] sm:$0xf]
    %v372 = vld [vmem:[%s7 + $0x4] sm:$0xf]
    %v373 = vld [vmem:[%s7 + $0x8] sm:$0xf]
    %v374 = vld [vmem:[%s7 + $0xc] sm:$0xf]
    %v375 = vld [vmem:[%s8] sm:$0x1]
    %v377 = vlaneseq
    %v378 = vshrl.u32 %v377, 7
    %v379 = vsub.s32 0, %v378
    %v380 = vrot.slane %v375, %v379
    %v386 = vunpack.c.l.b16 %v371
    %v387 = vunpack.c.l.b16 %v372
    %v388 = vunpack.c.l.b16 %v373
    %v389 = vunpack.c.l.b16 %v374
    %v390 = vpack.c.b16 %v387, %v386
    %v391 = vpack.c.b16 %v389, %v388
    %vm394 = vcmask 261120
    %v396 = vsel %vm394, %v370, 0
    %398 = vmatprep.subr.bf16.mxu0 0
    %399 = vmatpush1.bf16.msra.mxu0 %v390
    %400 = vmatprep.subr.bf16.mxu0 0
    %401 = vmatpush1.bf16.msra.mxu0 %v391
    %402 = vmatprep.subr.bf16.mxu0 0
    %403 = vmatpush1.bf16.msra.mxu0 0
    %404 = vmatprep.subr.bf16.mxu0 0
    %405 = vmatpush1.bf16.msra.mxu0 0
    %406 = vmatprep.subr.bf16.mxu0 0
    %407 = vmatpush1.bf16.msra.mxu0 0
    %408 = vmatprep.subr.bf16.mxu0 0
    %409 = vmatpush1.bf16.msra.mxu0 0
    %410 = vmatprep.subr.bf16.mxu0 0
    %411 = vmatpush1.bf16.msra.mxu0 0
    %412 = vmatprep.subr.bf16.mxu0 0
    %413 = vmatpush1.bf16.msra.mxu0 0
    %414 = vmatprep.subr.bf16.mxu0 0
    %415 = vmatpush1.bf16.msra.mxu0 0
    %416 = vmatprep.subr.bf16.mxu0 0
    %417 = vmatpush1.bf16.msra.mxu0 0
    %418 = vmatprep.subr.bf16.mxu0 0
    %419 = vmatpush1.bf16.msra.mxu0 0
    %420 = vmatprep.subr.bf16.mxu0 0
    %421 = vmatpush1.bf16.msra.mxu0 0
    %422 = vmatprep.subr.bf16.mxu0 0
    %423 = vmatpush1.bf16.msra.mxu0 0
    %424 = vmatprep.subr.bf16.mxu0 0
    %425 = vmatpush1.bf16.msra.mxu0 0
    %426 = vmatprep.subr.bf16.mxu0 0
    %427 = vmatpush1.bf16.msra.mxu0 0
    %428 = vmatprep.subr.bf16.mxu0 0
    %429 = vmatpush1.bf16.msra.mxu0 0
    %430 = vmatprep.mubr.bf16.mxu0 0
    %431 = vmatmul.mubr.bf16.gmra.mrb[0].mxu0 %v396
    %v432 = vpop.f32.mrb[0].mxu0
    %v433 = vadd.f32 %v380, %v432
    %v434 = vpop.f32.mrb[0].mxu0
    %v435 = vpop.f32.mrb[0].mxu0
    %v436 = vadd.f32 %v380, %v435
    %v437 = vpop.f32.mrb[0].mxu0
    %438 = vdwg.mxu0
    %v439 = vld [vmem:[%s6] sm:$0x1]
    %v441 = vlaneseq
    %v442 = vshrl.u32 %v441, 7
    %v443 = vsub.s32 0, %v442
    %v444 = vrot.slane %v439, %v443
    %v446 = vpack.c.bf16 %v433, %v433
    %448 = vrot.lane.b32.xlu0 %v446, 96
    %v449 = vpop.permute.xlu0 %448
    %vm450 = vcmask 64512
    %v452 = vsel %vm450, %v446, 0
    %v455 = vsel %vm450, %v449, 0
    %457 = vmatprep.subr.bf16.mxu0 0
    %458 = vmatpush1.bf16.xpose.msra.mxu0 %v455
    %459 = vmatprep.subr.bf16.mxu0 0
    %460 = vmatpush1.bf16.xpose.msra.mxu0 0
    %461 = vmatprep.subr.bf16.mxu0 0
    %462 = vmatpush1.bf16.xpose.msra.mxu0 0
    %463 = vmatprep.subr.bf16.mxu0 0
    %464 = vmatpush1.bf16.xpose.msra.mxu0 0
    %465 = vmatprep.subr.bf16.mxu0 0
    %466 = vmatpush1.bf16.xpose.msra.mxu0 0
    %467 = vmatprep.subr.bf16.mxu0 0
    %468 = vmatpush1.bf16.xpose.msra.mxu0 0
    %469 = vmatprep.subr.bf16.mxu0 0
    %470 = vmatpush1.bf16.xpose.msra.mxu0 0
    %471 = vmatprep.subr.bf16.mxu0 0
    %472 = vmatpush1.bf16.xpose.msra.mxu0 0
    %473 = vmatprep.subr.bf16.mxu0 0
    %474 = vmatpush1.bf16.xpose.msra.mxu0 0
    %475 = vmatprep.subr.bf16.mxu0 0
    %476 = vmatpush1.bf16.xpose.msra.mxu0 0
    %477 = vmatprep.subr.bf16.mxu0 0
    %478 = vmatpush1.bf16.xpose.msra.mxu0 0
    %479 = vmatprep.subr.bf16.mxu0 0
    %480 = vmatpush1.bf16.xpose.msra.mxu0 0
    %481 = vmatprep.subr.bf16.mxu0 0
    %482 = vmatpush1.bf16.xpose.msra.mxu0 0
    %483 = vmatprep.subr.bf16.mxu0 0
    %484 = vmatpush1.bf16.xpose.msra.mxu0 0
    %485 = vmatprep.subr.bf16.mxu0 0
    %486 = vmatpush1.bf16.xpose.msra.mxu0 0
    %487 = vmatprep.subr.bf16.mxu0 0
    %488 = vmatpush1.bf16.xpose.msra.mxu0 0
    %489 = vmatprep.mubr.bf16.mxu0 0
    %490 = vmatmul.mubr.bf16.gmra.mrb[0].mxu0 %v452
    %v491 = vpop.f32.mrb[0].mxu0
    %v492 = vadd.f32 0.0, %v491
    %v493 = vpop.f32.mrb[0].mxu0
    %v494 = vpop.f32.mrb[0].mxu0
    %v495 = vpop.f32.mrb[0].mxu0
    %496 = vdwg.mxu0
    %vm497 = vcmp.gt.f32.partialorder %v444, 0.0
    %v498 = vsel %vm497, %v492, -1e+09
    %v499 = vsel %vm450, %v498, -inf
    %500 = vmax.xlane.f32.xlu0 %v499
    %v501 = vpop.xlane.xlu0 %500
    %v502 = vsub.f32 %v498, %v501
    %v503 = vmul.f32 %v502, 1.442695
    %v504 = vpow.pop %v503
    %v505 = vsel %vm450, %v504, 0.0
    %506 = vadd.xlane.f32.xlu0 %v505
    %v507 = vpop.xlane.xlu0 %506
    %v508 = vrcp.pop %v507
    %v509 = vmul.f32 %v504, %v508
    %v510 = vpack.c.bf16 %v509, %v509
    %511 = vrot.lane.b32.xlu0 %v446, 64
    %v512 = vpop.permute.xlu0 %511
    %v514 = vsel %vm450, %v510, 0
    %vm516 = vcmask 1043456
    %v518 = vsel %vm516, %v512, 0
    %520 = vmatprep.subr.bf16.mxu0 0
    %521 = vmatpush1.bf16.msra.mxu0 %v518
    %522 = vmatprep.subr.bf16.mxu0 0
    %523 = vmatpush1.bf16.msra.mxu0 0
    %524 = vmatprep.subr.bf16.mxu0 0
    %525 = vmatpush1.bf16.msra.mxu0 0
    %526 = vmatprep.subr.bf16.mxu0 0
    %527 = vmatpush1.bf16.msra.mxu0 0
    %528 = vmatprep.subr.bf16.mxu0 0
    %529 = vmatpush1.bf16.msra.mxu0 0
    %530 = vmatprep.subr.bf16.mxu0 0
    %531 = vmatpush1.bf16.msra.mxu0 0
    %532 = vmatprep.subr.bf16.mxu0 0
    %533 = vmatpush1.bf16.msra.mxu0 0
    %534 = vmatprep.subr.bf16.mxu0 0
    %535 = vmatpush1.bf16.msra.mxu0 0
    %536 = vmatprep.subr.bf16.mxu0 0
    %537 = vmatpush1.bf16.msra.mxu0 0
    %538 = vmatprep.subr.bf16.mxu0 0
    %539 = vmatpush1.bf16.msra.mxu0 0
    %540 = vmatprep.subr.bf16.mxu0 0
    %541 = vmatpush1.bf16.msra.mxu0 0
    %542 = vmatprep.subr.bf16.mxu0 0
    %543 = vmatpush1.bf16.msra.mxu0 0
    %544 = vmatprep.subr.bf16.mxu0 0
    %545 = vmatpush1.bf16.msra.mxu0 0
    %546 = vmatprep.subr.bf16.mxu0 0
    %547 = vmatpush1.bf16.msra.mxu0 0
    %548 = vmatprep.subr.bf16.mxu0 0
    %549 = vmatpush1.bf16.msra.mxu0 0
    %550 = vmatprep.subr.bf16.mxu0 0
    %551 = vmatpush1.bf16.msra.mxu0 0
    %552 = vmatprep.mubr.bf16.mxu0 0
    %553 = vmatmul.mubr.bf16.gmra.mrb[0].mxu0 %v514
    %v554 = vpop.f32.mrb[0].mxu0
    %v555 = vadd.f32 0.0, %v554
    %v556 = vpop.f32.mrb[0].mxu0
    %v557 = vpop.f32.mrb[0].mxu0
    %v558 = vpop.f32.mrb[0].mxu0
    %559 = vdwg.mxu0
    %560 = vrot.lane.b32.xlu0 %v446, 120
    %v561 = vpop.permute.xlu0 %560
    %562 = vrot.lane.b32.xlu0 %v446, 88
    %v563 = vpop.permute.xlu0 %562
    %v565 = vsel %vm450, %v561, 0
    %v568 = vsel %vm450, %v563, 0
    %570 = vmatprep.subr.bf16.mxu0 0
    %571 = vmatpush1.bf16.xpose.msra.mxu0 %v568
    %572 = vmatprep.subr.bf16.mxu0 0
    %573 = vmatpush1.bf16.xpose.msra.mxu0 0
    %574 = vmatprep.subr.bf16.mxu0 0
    %575 = vmatpush1.bf16.xpose.msra.mxu0 0
    %576 = vmatprep.subr.bf16.mxu0 0
    %577 = vmatpush1.bf16.xpose.msra.mxu0 0
    %578 = vmatprep.subr.bf16.mxu0 0
    %579 = vmatpush1.bf16.xpose.msra.mxu0 0
    %580 = vmatprep.subr.bf16.mxu0 0
    %581 = vmatpush1.bf16.xpose.msra.mxu0 0
    %582 = vmatprep.subr.bf16.mxu0 0
    %583 = vmatpush1.bf16.xpose.msra.mxu0 0
    %584 = vmatprep.subr.bf16.mxu0 0
    %585 = vmatpush1.bf16.xpose.msra.mxu0 0
    %586 = vmatprep.subr.bf16.mxu0 0
    %587 = vmatpush1.bf16.xpose.msra.mxu0 0
    %588 = vmatprep.subr.bf16.mxu0 0
    %589 = vmatpush1.bf16.xpose.msra.mxu0 0
    %590 = vmatprep.subr.bf16.mxu0 0
    %591 = vmatpush1.bf16.xpose.msra.mxu0 0
    %592 = vmatprep.subr.bf16.mxu0 0
    %593 = vmatpush1.bf16.xpose.msra.mxu0 0
    %594 = vmatprep.subr.bf16.mxu0 0
    %595 = vmatpush1.bf16.xpose.msra.mxu0 0
    %596 = vmatprep.subr.bf16.mxu0 0
    %597 = vmatpush1.bf16.xpose.msra.mxu0 0
    %598 = vmatprep.subr.bf16.mxu0 0
    %599 = vmatpush1.bf16.xpose.msra.mxu0 0
    %600 = vmatprep.subr.bf16.mxu0 0
    %601 = vmatpush1.bf16.xpose.msra.mxu0 0
    %602 = vmatprep.mubr.bf16.mxu0 0
    %603 = vmatmul.mubr.bf16.gmra.mrb[0].mxu0 %v565
    %v604 = vpop.f32.mrb[0].mxu0
    %v605 = vadd.f32 0.0, %v604
    %v606 = vpop.f32.mrb[0].mxu0
    %v607 = vpop.f32.mrb[0].mxu0
    %v608 = vpop.f32.mrb[0].mxu0
    %609 = vdwg.mxu0
    %v610 = vsel %vm497, %v605, -1e+09
    %v611 = vsel %vm450, %v610, -inf
    %612 = vmax.xlane.f32.xlu0 %v611
    %v613 = vpop.xlane.xlu0 %612
    %v614 = vsub.f32 %v610, %v613
    %v615 = vmul.f32 %v614, 1.442695
    %v616 = vpow.pop %v615
    %v617 = vsel %vm450, %v616, 0.0
    %618 = vadd.xlane.f32.xlu0 %v617
    %v619 = vpop.xlane.xlu0 %618
    %v620 = vrcp.pop %v619
    %v621 = vmul.f32 %v616, %v620
    %v622 = vpack.c.bf16 %v621, %v621
    %623 = vrot.lane.b32.xlu0 %v446, 56
    %v624 = vpop.permute.xlu0 %623
    %v626 = vsel %vm450, %v622, 0
    %v629 = vsel %vm516, %v624, 0
    %631 = vmatprep.subr.bf16.mxu0 0
    %632 = vmatpush1.bf16.msra.mxu0 %v629
    %633 = vmatprep.subr.bf16.mxu0 0
    %634 = vmatpush1.bf16.msra.mxu0 0
    %635 = vmatprep.subr.bf16.mxu0 0
    %636 = vmatpush1.bf16.msra.mxu0 0
    %637 = vmatprep.subr.bf16.mxu0 0
    %638 = vmatpush1.bf16.msra.mxu0 0
    %639 = vmatprep.subr.bf16.mxu0 0
    %640 = vmatpush1.bf16.msra.mxu0 0
    %641 = vmatprep.subr.bf16.mxu0 0
    %642 = vmatpush1.bf16.msra.mxu0 0
    %643 = vmatprep.subr.bf16.mxu0 0
    %644 = vmatpush1.bf16.msra.mxu0 0
    %645 = vmatprep.subr.bf16.mxu0 0
    %646 = vmatpush1.bf16.msra.mxu0 0
    %647 = vmatprep.subr.bf16.mxu0 0
    %648 = vmatpush1.bf16.msra.mxu0 0
    %649 = vmatprep.subr.bf16.mxu0 0
    %650 = vmatpush1.bf16.msra.mxu0 0
    %651 = vmatprep.subr.bf16.mxu0 0
    %652 = vmatpush1.bf16.msra.mxu0 0
    %653 = vmatprep.subr.bf16.mxu0 0
    %654 = vmatpush1.bf16.msra.mxu0 0
    %655 = vmatprep.subr.bf16.mxu0 0
    %656 = vmatpush1.bf16.msra.mxu0 0
    %657 = vmatprep.subr.bf16.mxu0 0
    %658 = vmatpush1.bf16.msra.mxu0 0
    %659 = vmatprep.subr.bf16.mxu0 0
    %660 = vmatpush1.bf16.msra.mxu0 0
    %661 = vmatprep.subr.bf16.mxu0 0
    %662 = vmatpush1.bf16.msra.mxu0 0
    %663 = vmatprep.mubr.bf16.mxu0 0
    %664 = vmatmul.mubr.bf16.gmra.mrb[0].mxu0 %v626
    %v665 = vpop.f32.mrb[0].mxu0
    %v666 = vadd.f32 0.0, %v665
    %v667 = vpop.f32.mrb[0].mxu0
    %v668 = vpop.f32.mrb[0].mxu0
    %v669 = vpop.f32.mrb[0].mxu0
    %670 = vdwg.mxu0
    %671 = vrot.lane.b32.xlu0 %v446, 112
    %v672 = vpop.permute.xlu0 %671
    %673 = vrot.lane.b32.xlu0 %v446, 80
    %v674 = vpop.permute.xlu0 %673
    %v676 = vsel %vm450, %v672, 0
    %v679 = vsel %vm450, %v674, 0
    %681 = vmatprep.subr.bf16.mxu0 0
    %682 = vmatpush1.bf16.xpose.msra.mxu0 %v679
    %683 = vmatprep.subr.bf16.mxu0 0
    %684 = vmatpush1.bf16.xpose.msra.mxu0 0
    %685 = vmatprep.subr.bf16.mxu0 0
    %686 = vmatpush1.bf16.xpose.msra.mxu0 0
    %687 = vmatprep.subr.bf16.mxu0 0
    %688 = vmatpush1.bf16.xpose.msra.mxu0 0
    %689 = vmatprep.subr.bf16.mxu0 0
    %690 = vmatpush1.bf16.xpose.msra.mxu0 0
    %691 = vmatprep.subr.bf16.mxu0 0
    %692 = vmatpush1.bf16.xpose.msra.mxu0 0
    %693 = vmatprep.subr.bf16.mxu0 0
    %694 = vmatpush1.bf16.xpose.msra.mxu0 0
    %695 = vmatprep.subr.bf16.mxu0 0
    %696 = vmatpush1.bf16.xpose.msra.mxu0 0
    %697 = vmatprep.subr.bf16.mxu0 0
    %698 = vmatpush1.bf16.xpose.msra.mxu0 0
    %699 = vmatprep.subr.bf16.mxu0 0
    %700 = vmatpush1.bf16.xpose.msra.mxu0 0
    %701 = vmatprep.subr.bf16.mxu0 0
    %702 = vmatpush1.bf16.xpose.msra.mxu0 0
    %703 = vmatprep.subr.bf16.mxu0 0
    %704 = vmatpush1.bf16.xpose.msra.mxu0 0
    %705 = vmatprep.subr.bf16.mxu0 0
    %706 = vmatpush1.bf16.xpose.msra.mxu0 0
    %707 = vmatprep.subr.bf16.mxu0 0
    %708 = vmatpush1.bf16.xpose.msra.mxu0 0
    %709 = vmatprep.subr.bf16.mxu0 0
    %710 = vmatpush1.bf16.xpose.msra.mxu0 0
    %711 = vmatprep.subr.bf16.mxu0 0
    %712 = vmatpush1.bf16.xpose.msra.mxu0 0
    %713 = vmatprep.mubr.bf16.mxu0 0
    %714 = vmatmul.mubr.bf16.gmra.mrb[0].mxu0 %v676
    %v715 = vpop.f32.mrb[0].mxu0
    %v716 = vadd.f32 0.0, %v715
    %v717 = vpop.f32.mrb[0].mxu0
    %v718 = vpop.f32.mrb[0].mxu0
    %v719 = vpop.f32.mrb[0].mxu0
    %720 = vdwg.mxu0
    %v721 = vsel %vm497, %v716, -1e+09
    %v722 = vsel %vm450, %v721, -inf
    %723 = vmax.xlane.f32.xlu0 %v722
    %v724 = vpop.xlane.xlu0 %723
    %v725 = vsub.f32 %v721, %v724
    %v726 = vmul.f32 %v725, 1.442695
    %v727 = vpow.pop %v726
    %v728 = vsel %vm450, %v727, 0.0
    %729 = vadd.xlane.f32.xlu0 %v728
    %v730 = vpop.xlane.xlu0 %729
    %v731 = vrcp.pop %v730
    %v732 = vmul.f32 %v727, %v731
    %v733 = vpack.c.bf16 %v732, %v732
    %734 = vrot.lane.b32.xlu0 %v446, 48
    %v735 = vpop.permute.xlu0 %734
    %v737 = vsel %vm450, %v733, 0
    %v740 = vsel %vm516, %v735, 0
    %742 = vmatprep.subr.bf16.mxu0 0
    %743 = vmatpush1.bf16.msra.mxu0 %v740
    %744 = vmatprep.subr.bf16.mxu0 0
    %745 = vmatpush1.bf16.msra.mxu0 0
    %746 = vmatprep.subr.bf16.mxu0 0
    %747 = vmatpush1.bf16.msra.mxu0 0
    %748 = vmatprep.subr.bf16.mxu0 0
    %749 = vmatpush1.bf16.msra.mxu0 0
    %750 = vmatprep.subr.bf16.mxu0 0
    %751 = vmatpush1.bf16.msra.mxu0 0
    %752 = vmatprep.subr.bf16.mxu0 0
    %753 = vmatpush1.bf16.msra.mxu0 0
    %754 = vmatprep.subr.bf16.mxu0 0
    %755 = vmatpush1.bf16.msra.mxu0 0
    %756 = vmatprep.subr.bf16.mxu0 0
    %757 = vmatpush1.bf16.msra.mxu0 0
    %758 = vmatprep.subr.bf16.mxu0 0
    %759 = vmatpush1.bf16.msra.mxu0 0
    %760 = vmatprep.subr.bf16.mxu0 0
    %761 = vmatpush1.bf16.msra.mxu0 0
    %762 = vmatprep.subr.bf16.mxu0 0
    %763 = vmatpush1.bf16.msra.mxu0 0
    %764 = vmatprep.subr.bf16.mxu0 0
    %765 = vmatpush1.bf16.msra.mxu0 0
    %766 = vmatprep.subr.bf16.mxu0 0
    %767 = vmatpush1.bf16.msra.mxu0 0
    %768 = vmatprep.subr.bf16.mxu0 0
    %769 = vmatpush1.bf16.msra.mxu0 0
    %770 = vmatprep.subr.bf16.mxu0 0
    %771 = vmatpush1.bf16.msra.mxu0 0
    %772 = vmatprep.subr.bf16.mxu0 0
    %773 = vmatpush1.bf16.msra.mxu0 0
    %774 = vmatprep.mubr.bf16.mxu0 0
    %775 = vmatmul.mubr.bf16.gmra.mrb[0].mxu0 %v737
    %v776 = vpop.f32.mrb[0].mxu0
    %v777 = vadd.f32 0.0, %v776
    %v778 = vpop.f32.mrb[0].mxu0
    %v779 = vpop.f32.mrb[0].mxu0
    %v780 = vpop.f32.mrb[0].mxu0
    %781 = vdwg.mxu0
    %782 = vrot.lane.b32.xlu0 %v446, 104
    %v783 = vpop.permute.xlu0 %782
    %784 = vrot.lane.b32.xlu0 %v446, 72
    %v785 = vpop.permute.xlu0 %784
    %v787 = vsel %vm450, %v783, 0
    %v790 = vsel %vm450, %v785, 0
    %792 = vmatprep.subr.bf16.mxu0 0
    %793 = vmatpush1.bf16.xpose.msra.mxu0 %v790
    %794 = vmatprep.subr.bf16.mxu0 0
    %795 = vmatpush1.bf16.xpose.msra.mxu0 0
    %796 = vmatprep.subr.bf16.mxu0 0
    %797 = vmatpush1.bf16.xpose.msra.mxu0 0
    %798 = vmatprep.subr.bf16.mxu0 0
    %799 = vmatpush1.bf16.xpose.msra.mxu0 0
    %800 = vmatprep.subr.bf16.mxu0 0
    %801 = vmatpush1.bf16.xpose.msra.mxu0 0
    %802 = vmatprep.subr.bf16.mxu0 0
    %803 = vmatpush1.bf16.xpose.msra.mxu0 0
    %804 = vmatprep.subr.bf16.mxu0 0
    %805 = vmatpush1.bf16.xpose.msra.mxu0 0
    %806 = vmatprep.subr.bf16.mxu0 0
    %807 = vmatpush1.bf16.xpose.msra.mxu0 0
    %808 = vmatprep.subr.bf16.mxu0 0
    %809 = vmatpush1.bf16.xpose.msra.mxu0 0
    %810 = vmatprep.subr.bf16.mxu0 0
    %811 = vmatpush1.bf16.xpose.msra.mxu0 0
    %812 = vmatprep.subr.bf16.mxu0 0
    %813 = vmatpush1.bf16.xpose.msra.mxu0 0
    %814 = vmatprep.subr.bf16.mxu0 0
    %815 = vmatpush1.bf16.xpose.msra.mxu0 0
    %816 = vmatprep.subr.bf16.mxu0 0
    %817 = vmatpush1.bf16.xpose.msra.mxu0 0
    %818 = vmatprep.subr.bf16.mxu0 0
    %819 = vmatpush1.bf16.xpose.msra.mxu0 0
    %820 = vmatprep.subr.bf16.mxu0 0
    %821 = vmatpush1.bf16.xpose.msra.mxu0 0
    %822 = vmatprep.subr.bf16.mxu0 0
    %823 = vmatpush1.bf16.xpose.msra.mxu0 0
    %824 = vmatprep.mubr.bf16.mxu0 0
    %825 = vmatmul.mubr.bf16.gmra.mrb[0].mxu0 %v787
    %v826 = vpop.f32.mrb[0].mxu0
    %v827 = vadd.f32 0.0, %v826
    %v828 = vpop.f32.mrb[0].mxu0
    %v829 = vpop.f32.mrb[0].mxu0
    %v830 = vpop.f32.mrb[0].mxu0
    %831 = vdwg.mxu0
    %v832 = vsel %vm497, %v827, -1e+09
    %v833 = vsel %vm450, %v832, -inf
    %834 = vmax.xlane.f32.xlu0 %v833
    %v835 = vpop.xlane.xlu0 %834
    %v836 = vsub.f32 %v832, %v835
    %v837 = vmul.f32 %v836, 1.442695
    %v838 = vpow.pop %v837
    %v839 = vsel %vm450, %v838, 0.0
    %840 = vadd.xlane.f32.xlu0 %v839
    %v841 = vpop.xlane.xlu0 %840
    %v842 = vrcp.pop %v841
    %v843 = vmul.f32 %v838, %v842
    %v844 = vpack.c.bf16 %v843, %v843
    %845 = vrot.lane.b32.xlu0 %v446, 40
    %v846 = vpop.permute.xlu0 %845
    %v848 = vsel %vm450, %v844, 0
    %v851 = vsel %vm516, %v846, 0
    %853 = vmatprep.subr.bf16.mxu0 0
    %854 = vmatpush1.bf16.msra.mxu0 %v851
    %855 = vmatprep.subr.bf16.mxu0 0
    %856 = vmatpush1.bf16.msra.mxu0 0
    %857 = vmatprep.subr.bf16.mxu0 0
    %858 = vmatpush1.bf16.msra.mxu0 0
    %859 = vmatprep.subr.bf16.mxu0 0
    %860 = vmatpush1.bf16.msra.mxu0 0
    %861 = vmatprep.subr.bf16.mxu0 0
    %862 = vmatpush1.bf16.msra.mxu0 0
    %863 = vmatprep.subr.bf16.mxu0 0
    %864 = vmatpush1.bf16.msra.mxu0 0
    %865 = vmatprep.subr.bf16.mxu0 0
    %866 = vmatpush1.bf16.msra.mxu0 0
    %867 = vmatprep.subr.bf16.mxu0 0
    %868 = vmatpush1.bf16.msra.mxu0 0
    %869 = vmatprep.subr.bf16.mxu0 0
    %870 = vmatpush1.bf16.msra.mxu0 0
    %871 = vmatprep.subr.bf16.mxu0 0
    %872 = vmatpush1.bf16.msra.mxu0 0
    %873 = vmatprep.subr.bf16.mxu0 0
    %874 = vmatpush1.bf16.msra.mxu0 0
    %875 = vmatprep.subr.bf16.mxu0 0
    %876 = vmatpush1.bf16.msra.mxu0 0
    %877 = vmatprep.subr.bf16.mxu0 0
    %878 = vmatpush1.bf16.msra.mxu0 0
    %879 = vmatprep.subr.bf16.mxu0 0
    %880 = vmatpush1.bf16.msra.mxu0 0
    %881 = vmatprep.subr.bf16.mxu0 0
    %882 = vmatpush1.bf16.msra.mxu0 0
    %883 = vmatprep.subr.bf16.mxu0 0
    %884 = vmatpush1.bf16.msra.mxu0 0
    %885 = vmatprep.mubr.bf16.mxu0 0
    %886 = vmatmul.mubr.bf16.gmra.mrb[0].mxu0 %v848
    %v887 = vpop.f32.mrb[0].mxu0
    %v888 = vadd.f32 0.0, %v887
    %v889 = vpop.f32.mrb[0].mxu0
    %v890 = vpop.f32.mrb[0].mxu0
    %v891 = vpop.f32.mrb[0].mxu0
    %892 = vdwg.mxu0
    %894 = vrot.lane.b32.xlu0 %v666, 8
    %v895 = vpop.permute.xlu0 %894
    %898 = vrot.lane.b32.xlu0 %v777, 16
    %v899 = vpop.permute.xlu0 %898
    %902 = vrot.lane.b32.xlu0 %v888, 24
    %v903 = vpop.permute.xlu0 %902
    %v905 = vsel %vm450, %v555, %v895
    %v906 = vsel %vm85, %v905, %v899
    %vm907 = vcmask 195584
    %v908 = vsel %vm907, %v906, %v903
    %s909 = scalar_lea.vmem %s6, 1
    %v910 = vld [vmem:[%s909] sm:$0x1]
    %v912 = vlaneseq
    %v913 = vshrl.u32 %v912, 7
    %v914 = vsub.s32 0, %v913
    %v915 = vrot.slane %v910, %v914
    %v917 = vpack.c.bf16 %v436, %v436
    %919 = vrot.lane.b32.xlu0 %v917, 96
    %v920 = vpop.permute.xlu0 %919
    %v922 = vsel %vm450, %v917, 0
    %v925 = vsel %vm450, %v920, 0
    %927 = vmatprep.subr.bf16.mxu0 0
    %928 = vmatpush1.bf16.xpose.msra.mxu0 %v925
    %929 = vmatprep.subr.bf16.mxu0 0
    %930 = vmatpush1.bf16.xpose.msra.mxu0 0
    %931 = vmatprep.subr.bf16.mxu0 0
    %932 = vmatpush1.bf16.xpose.msra.mxu0 0
    %933 = vmatprep.subr.bf16.mxu0 0
    %934 = vmatpush1.bf16.xpose.msra.mxu0 0
    %935 = vmatprep.subr.bf16.mxu0 0
    %936 = vmatpush1.bf16.xpose.msra.mxu0 0
    %937 = vmatprep.subr.bf16.mxu0 0
    %938 = vmatpush1.bf16.xpose.msra.mxu0 0
    %939 = vmatprep.subr.bf16.mxu0 0
    %940 = vmatpush1.bf16.xpose.msra.mxu0 0
    %941 = vmatprep.subr.bf16.mxu0 0
    %942 = vmatpush1.bf16.xpose.msra.mxu0 0
    %943 = vmatprep.subr.bf16.mxu0 0
    %944 = vmatpush1.bf16.xpose.msra.mxu0 0
    %945 = vmatprep.subr.bf16.mxu0 0
    %946 = vmatpush1.bf16.xpose.msra.mxu0 0
    %947 = vmatprep.subr.bf16.mxu0 0
    %948 = vmatpush1.bf16.xpose.msra.mxu0 0
    %949 = vmatprep.subr.bf16.mxu0 0
    %950 = vmatpush1.bf16.xpose.msra.mxu0 0
    %951 = vmatprep.subr.bf16.mxu0 0
    %952 = vmatpush1.bf16.xpose.msra.mxu0 0
    %953 = vmatprep.subr.bf16.mxu0 0
    %954 = vmatpush1.bf16.xpose.msra.mxu0 0
    %955 = vmatprep.subr.bf16.mxu0 0
    %956 = vmatpush1.bf16.xpose.msra.mxu0 0
    %957 = vmatprep.subr.bf16.mxu0 0
    %958 = vmatpush1.bf16.xpose.msra.mxu0 0
    %959 = vmatprep.mubr.bf16.mxu0 0
    %960 = vmatmul.mubr.bf16.gmra.mrb[0].mxu0 %v922
    %v961 = vpop.f32.mrb[0].mxu0
    %v962 = vadd.f32 0.0, %v961
    %v963 = vpop.f32.mrb[0].mxu0
    %v964 = vpop.f32.mrb[0].mxu0
    %v965 = vpop.f32.mrb[0].mxu0
    %966 = vdwg.mxu0
    %vm967 = vcmp.gt.f32.partialorder %v915, 0.0
    %v968 = vsel %vm967, %v962, -1e+09
    %v969 = vsel %vm450, %v968, -inf
    %970 = vmax.xlane.f32.xlu0 %v969
    %v971 = vpop.xlane.xlu0 %970
    %v972 = vsub.f32 %v968, %v971
    %v973 = vmul.f32 %v972, 1.442695
    %v974 = vpow.pop %v973
    %v975 = vsel %vm450, %v974, 0.0
    %976 = vadd.xlane.f32.xlu0 %v975
    %v977 = vpop.xlane.xlu0 %976
    %v978 = vrcp.pop %v977
    %v979 = vmul.f32 %v974, %v978
    %v980 = vpack.c.bf16 %v979, %v979
    %981 = vrot.lane.b32.xlu0 %v917, 64
    %v982 = vpop.permute.xlu0 %981
    %v984 = vsel %vm450, %v980, 0
    %v987 = vsel %vm516, %v982, 0
    %989 = vmatprep.subr.bf16.mxu0 0
    %990 = vmatpush1.bf16.msra.mxu0 %v987
    %991 = vmatprep.subr.bf16.mxu0 0
    %992 = vmatpush1.bf16.msra.mxu0 0
    %993 = vmatprep.subr.bf16.mxu0 0
    %994 = vmatpush1.bf16.msra.mxu0 0
    %995 = vmatprep.subr.bf16.mxu0 0
    %996 = vmatpush1.bf16.msra.mxu0 0
    %997 = vmatprep.subr.bf16.mxu0 0
    %998 = vmatpush1.bf16.msra.mxu0 0
    %999 = vmatprep.subr.bf16.mxu0 0
    %1000 = vmatpush1.bf16.msra.mxu0 0
    %1001 = vmatprep.subr.bf16.mxu0 0
    %1002 = vmatpush1.bf16.msra.mxu0 0
    %1003 = vmatprep.subr.bf16.mxu0 0
    %1004 = vmatpush1.bf16.msra.mxu0 0
    %1005 = vmatprep.subr.bf16.mxu0 0
    %1006 = vmatpush1.bf16.msra.mxu0 0
    %1007 = vmatprep.subr.bf16.mxu0 0
    %1008 = vmatpush1.bf16.msra.mxu0 0
    %1009 = vmatprep.subr.bf16.mxu0 0
    %1010 = vmatpush1.bf16.msra.mxu0 0
    %1011 = vmatprep.subr.bf16.mxu0 0
    %1012 = vmatpush1.bf16.msra.mxu0 0
    %1013 = vmatprep.subr.bf16.mxu0 0
    %1014 = vmatpush1.bf16.msra.mxu0 0
    %1015 = vmatprep.subr.bf16.mxu0 0
    %1016 = vmatpush1.bf16.msra.mxu0 0
    %1017 = vmatprep.subr.bf16.mxu0 0
    %1018 = vmatpush1.bf16.msra.mxu0 0
    %1019 = vmatprep.subr.bf16.mxu0 0
    %1020 = vmatpush1.bf16.msra.mxu0 0
    %1021 = vmatprep.mubr.bf16.mxu0 0
    %1022 = vmatmul.mubr.bf16.gmra.mrb[0].mxu0 %v984
    %v1023 = vpop.f32.mrb[0].mxu0
    %v1024 = vadd.f32 0.0, %v1023
    %v1025 = vpop.f32.mrb[0].mxu0
    %v1026 = vpop.f32.mrb[0].mxu0
    %v1027 = vpop.f32.mrb[0].mxu0
    %1028 = vdwg.mxu0
    %1029 = vrot.lane.b32.xlu0 %v917, 120
    %v1030 = vpop.permute.xlu0 %1029
    %1031 = vrot.lane.b32.xlu0 %v917, 88
    %v1032 = vpop.permute.xlu0 %1031
    %v1034 = vsel %vm450, %v1030, 0
    %v1037 = vsel %vm450, %v1032, 0
    %1039 = vmatprep.subr.bf16.mxu0 0
    %1040 = vmatpush1.bf16.xpose.msra.mxu0 %v1037
    %1041 = vmatprep.subr.bf16.mxu0 0
    %1042 = vmatpush1.bf16.xpose.msra.mxu0 0
    %1043 = vmatprep.subr.bf16.mxu0 0
    %1044 = vmatpush1.bf16.xpose.msra.mxu0 0
    %1045 = vmatprep.subr.bf16.mxu0 0
    %1046 = vmatpush1.bf16.xpose.msra.mxu0 0
    %1047 = vmatprep.subr.bf16.mxu0 0
    %1048 = vmatpush1.bf16.xpose.msra.mxu0 0
    %1049 = vmatprep.subr.bf16.mxu0 0
    %1050 = vmatpush1.bf16.xpose.msra.mxu0 0
    %1051 = vmatprep.subr.bf16.mxu0 0
    %1052 = vmatpush1.bf16.xpose.msra.mxu0 0
    %1053 = vmatprep.subr.bf16.mxu0 0
    %1054 = vmatpush1.bf16.xpose.msra.mxu0 0
    %1055 = vmatprep.subr.bf16.mxu0 0
    %1056 = vmatpush1.bf16.xpose.msra.mxu0 0
    %1057 = vmatprep.subr.bf16.mxu0 0
    %1058 = vmatpush1.bf16.xpose.msra.mxu0 0
    %1059 = vmatprep.subr.bf16.mxu0 0
    %1060 = vmatpush1.bf16.xpose.msra.mxu0 0
    %1061 = vmatprep.subr.bf16.mxu0 0
    %1062 = vmatpush1.bf16.xpose.msra.mxu0 0
    %1063 = vmatprep.subr.bf16.mxu0 0
    %1064 = vmatpush1.bf16.xpose.msra.mxu0 0
    %1065 = vmatprep.subr.bf16.mxu0 0
    %1066 = vmatpush1.bf16.xpose.msra.mxu0 0
    %1067 = vmatprep.subr.bf16.mxu0 0
    %1068 = vmatpush1.bf16.xpose.msra.mxu0 0
    %1069 = vmatprep.subr.bf16.mxu0 0
    %1070 = vmatpush1.bf16.xpose.msra.mxu0 0
    %1071 = vmatprep.mubr.bf16.mxu0 0
    %1072 = vmatmul.mubr.bf16.gmra.mrb[0].mxu0 %v1034
    %v1073 = vpop.f32.mrb[0].mxu0
    %v1074 = vadd.f32 0.0, %v1073
    %v1075 = vpop.f32.mrb[0].mxu0
    %v1076 = vpop.f32.mrb[0].mxu0
    %v1077 = vpop.f32.mrb[0].mxu0
    %1078 = vdwg.mxu0
    %v1079 = vsel %vm967, %v1074, -1e+09
    %v1080 = vsel %vm450, %v1079, -inf
    %1081 = vmax.xlane.f32.xlu0 %v1080
    %v1082 = vpop.xlane.xlu0 %1081
    %v1083 = vsub.f32 %v1079, %v1082
    %v1084 = vmul.f32 %v1083, 1.442695
    %v1085 = vpow.pop %v1084
    %v1086 = vsel %vm450, %v1085, 0.0
    %1087 = vadd.xlane.f32.xlu0 %v1086
    %v1088 = vpop.xlane.xlu0 %1087
    %v1089 = vrcp.pop %v1088
    %v1090 = vmul.f32 %v1085, %v1089
    %v1091 = vpack.c.bf16 %v1090, %v1090
    %1092 = vrot.lane.b32.xlu0 %v917, 56
    %v1093 = vpop.permute.xlu0 %1092
    %v1095 = vsel %vm450, %v1091, 0
    %v1098 = vsel %vm516, %v1093, 0
    %1100 = vmatprep.subr.bf16.mxu0 0
    %1101 = vmatpush1.bf16.msra.mxu0 %v1098
    %1102 = vmatprep.subr.bf16.mxu0 0
    %1103 = vmatpush1.bf16.msra.mxu0 0
    %1104 = vmatprep.subr.bf16.mxu0 0
    %1105 = vmatpush1.bf16.msra.mxu0 0
    %1106 = vmatprep.subr.bf16.mxu0 0
    %1107 = vmatpush1.bf16.msra.mxu0 0
    %1108 = vmatprep.subr.bf16.mxu0 0
    %1109 = vmatpush1.bf16.msra.mxu0 0
    %1110 = vmatprep.subr.bf16.mxu0 0
    %1111 = vmatpush1.bf16.msra.mxu0 0
    %1112 = vmatprep.subr.bf16.mxu0 0
    %1113 = vmatpush1.bf16.msra.mxu0 0
    %1114 = vmatprep.subr.bf16.mxu0 0
    %1115 = vmatpush1.bf16.msra.mxu0 0
    %1116 = vmatprep.subr.bf16.mxu0 0
    %1117 = vmatpush1.bf16.msra.mxu0 0
    %1118 = vmatprep.subr.bf16.mxu0 0
    %1119 = vmatpush1.bf16.msra.mxu0 0
    %1120 = vmatprep.subr.bf16.mxu0 0
    %1121 = vmatpush1.bf16.msra.mxu0 0
    %1122 = vmatprep.subr.bf16.mxu0 0
    %1123 = vmatpush1.bf16.msra.mxu0 0
    %1124 = vmatprep.subr.bf16.mxu0 0
    %1125 = vmatpush1.bf16.msra.mxu0 0
    %1126 = vmatprep.subr.bf16.mxu0 0
    %1127 = vmatpush1.bf16.msra.mxu0 0
    %1128 = vmatprep.subr.bf16.mxu0 0
    %1129 = vmatpush1.bf16.msra.mxu0 0
    %1130 = vmatprep.subr.bf16.mxu0 0
    %1131 = vmatpush1.bf16.msra.mxu0 0
    %1132 = vmatprep.mubr.bf16.mxu0 0
    %1133 = vmatmul.mubr.bf16.gmra.mrb[0].mxu0 %v1095
    %v1134 = vpop.f32.mrb[0].mxu0
    %v1135 = vadd.f32 0.0, %v1134
    %v1136 = vpop.f32.mrb[0].mxu0
    %v1137 = vpop.f32.mrb[0].mxu0
    %v1138 = vpop.f32.mrb[0].mxu0
    %1139 = vdwg.mxu0
    %1140 = vrot.lane.b32.xlu0 %v917, 112
    %v1141 = vpop.permute.xlu0 %1140
    %1142 = vrot.lane.b32.xlu0 %v917, 80
    %v1143 = vpop.permute.xlu0 %1142
    %v1145 = vsel %vm450, %v1141, 0
    %v1148 = vsel %vm450, %v1143, 0
    %1150 = vmatprep.subr.bf16.mxu0 0
    %1151 = vmatpush1.bf16.xpose.msra.mxu0 %v1148
    %1152 = vmatprep.subr.bf16.mxu0 0
    %1153 = vmatpush1.bf16.xpose.msra.mxu0 0
    %1154 = vmatprep.subr.bf16.mxu0 0
    %1155 = vmatpush1.bf16.xpose.msra.mxu0 0
    %1156 = vmatprep.subr.bf16.mxu0 0
    %1157 = vmatpush1.bf16.xpose.msra.mxu0 0
    %1158 = vmatprep.subr.bf16.mxu0 0
    %1159 = vmatpush1.bf16.xpose.msra.mxu0 0
    %1160 = vmatprep.subr.bf16.mxu0 0
    %1161 = vmatpush1.bf16.xpose.msra.mxu0 0
    %1162 = vmatprep.subr.bf16.mxu0 0
    %1163 = vmatpush1.bf16.xpose.msra.mxu0 0
    %1164 = vmatprep.subr.bf16.mxu0 0
    %1165 = vmatpush1.bf16.xpose.msra.mxu0 0
    %1166 = vmatprep.subr.bf16.mxu0 0
    %1167 = vmatpush1.bf16.xpose.msra.mxu0 0
    %1168 = vmatprep.subr.bf16.mxu0 0
    %1169 = vmatpush1.bf16.xpose.msra.mxu0 0
    %1170 = vmatprep.subr.bf16.mxu0 0
    %1171 = vmatpush1.bf16.xpose.msra.mxu0 0
    %1172 = vmatprep.subr.bf16.mxu0 0
    %1173 = vmatpush1.bf16.xpose.msra.mxu0 0
    %1174 = vmatprep.subr.bf16.mxu0 0
    %1175 = vmatpush1.bf16.xpose.msra.mxu0 0
    %1176 = vmatprep.subr.bf16.mxu0 0
    %1177 = vmatpush1.bf16.xpose.msra.mxu0 0
    %1178 = vmatprep.subr.bf16.mxu0 0
    %1179 = vmatpush1.bf16.xpose.msra.mxu0 0
    %1180 = vmatprep.subr.bf16.mxu0 0
    %1181 = vmatpush1.bf16.xpose.msra.mxu0 0
    %1182 = vmatprep.mubr.bf16.mxu0 0
    %1183 = vmatmul.mubr.bf16.gmra.mrb[0].mxu0 %v1145
    %v1184 = vpop.f32.mrb[0].mxu0
    %v1185 = vadd.f32 0.0, %v1184
    %v1186 = vpop.f32.mrb[0].mxu0
    %v1187 = vpop.f32.mrb[0].mxu0
    %v1188 = vpop.f32.mrb[0].mxu0
    %1189 = vdwg.mxu0
    %v1190 = vsel %vm967, %v1185, -1e+09
    %v1191 = vsel %vm450, %v1190, -inf
    %1192 = vmax.xlane.f32.xlu0 %v1191
    %v1193 = vpop.xlane.xlu0 %1192
    %v1194 = vsub.f32 %v1190, %v1193
    %v1195 = vmul.f32 %v1194, 1.442695
    %v1196 = vpow.pop %v1195
    %v1197 = vsel %vm450, %v1196, 0.0
    %1198 = vadd.xlane.f32.xlu0 %v1197
    %v1199 = vpop.xlane.xlu0 %1198
    %v1200 = vrcp.pop %v1199
    %v1201 = vmul.f32 %v1196, %v1200
    %v1202 = vpack.c.bf16 %v1201, %v1201
    %1203 = vrot.lane.b32.xlu0 %v917, 48
    %v1204 = vpop.permute.xlu0 %1203
    %v1206 = vsel %vm450, %v1202, 0
    %v1209 = vsel %vm516, %v1204, 0
    %1211 = vmatprep.subr.bf16.mxu0 0
    %1212 = vmatpush1.bf16.msra.mxu0 %v1209
    %1213 = vmatprep.subr.bf16.mxu0 0
    %1214 = vmatpush1.bf16.msra.mxu0 0
    %1215 = vmatprep.subr.bf16.mxu0 0
    %1216 = vmatpush1.bf16.msra.mxu0 0
    %1217 = vmatprep.subr.bf16.mxu0 0
    %1218 = vmatpush1.bf16.msra.mxu0 0
    %1219 = vmatprep.subr.bf16.mxu0 0
    %1220 = vmatpush1.bf16.msra.mxu0 0
    %1221 = vmatprep.subr.bf16.mxu0 0
    %1222 = vmatpush1.bf16.msra.mxu0 0
    %1223 = vmatprep.subr.bf16.mxu0 0
    %1224 = vmatpush1.bf16.msra.mxu0 0
    %1225 = vmatprep.subr.bf16.mxu0 0
    %1226 = vmatpush1.bf16.msra.mxu0 0
    %1227 = vmatprep.subr.bf16.mxu0 0
    %1228 = vmatpush1.bf16.msra.mxu0 0
    %1229 = vmatprep.subr.bf16.mxu0 0
    %1230 = vmatpush1.bf16.msra.mxu0 0
    %1231 = vmatprep.subr.bf16.mxu0 0
    %1232 = vmatpush1.bf16.msra.mxu0 0
    %1233 = vmatprep.subr.bf16.mxu0 0
    %1234 = vmatpush1.bf16.msra.mxu0 0
    %1235 = vmatprep.subr.bf16.mxu0 0
    %1236 = vmatpush1.bf16.msra.mxu0 0
    %1237 = vmatprep.subr.bf16.mxu0 0
    %1238 = vmatpush1.bf16.msra.mxu0 0
    %1239 = vmatprep.subr.bf16.mxu0 0
    %1240 = vmatpush1.bf16.msra.mxu0 0
    %1241 = vmatprep.subr.bf16.mxu0 0
    %1242 = vmatpush1.bf16.msra.mxu0 0
    %1243 = vmatprep.mubr.bf16.mxu0 0
    %1244 = vmatmul.mubr.bf16.gmra.mrb[0].mxu0 %v1206
    %v1245 = vpop.f32.mrb[0].mxu0
    %v1246 = vadd.f32 0.0, %v1245
    %v1247 = vpop.f32.mrb[0].mxu0
    %v1248 = vpop.f32.mrb[0].mxu0
    %v1249 = vpop.f32.mrb[0].mxu0
    %1250 = vdwg.mxu0
    %1251 = vrot.lane.b32.xlu0 %v917, 104
    %v1252 = vpop.permute.xlu0 %1251
    %1253 = vrot.lane.b32.xlu0 %v917, 72
    %v1254 = vpop.permute.xlu0 %1253
    %v1256 = vsel %vm450, %v1252, 0
    %v1259 = vsel %vm450, %v1254, 0
    %1261 = vmatprep.subr.bf16.mxu0 0
    %1262 = vmatpush1.bf16.xpose.msra.mxu0 %v1259
    %1263 = vmatprep.subr.bf16.mxu0 0
    %1264 = vmatpush1.bf16.xpose.msra.mxu0 0
    %1265 = vmatprep.subr.bf16.mxu0 0
    %1266 = vmatpush1.bf16.xpose.msra.mxu0 0
    %1267 = vmatprep.subr.bf16.mxu0 0
    %1268 = vmatpush1.bf16.xpose.msra.mxu0 0
    %1269 = vmatprep.subr.bf16.mxu0 0
    %1270 = vmatpush1.bf16.xpose.msra.mxu0 0
    %1271 = vmatprep.subr.bf16.mxu0 0
    %1272 = vmatpush1.bf16.xpose.msra.mxu0 0
    %1273 = vmatprep.subr.bf16.mxu0 0
    %1274 = vmatpush1.bf16.xpose.msra.mxu0 0
    %1275 = vmatprep.subr.bf16.mxu0 0
    %1276 = vmatpush1.bf16.xpose.msra.mxu0 0
    %1277 = vmatprep.subr.bf16.mxu0 0
    %1278 = vmatpush1.bf16.xpose.msra.mxu0 0
    %1279 = vmatprep.subr.bf16.mxu0 0
    %1280 = vmatpush1.bf16.xpose.msra.mxu0 0
    %1281 = vmatprep.subr.bf16.mxu0 0
    %1282 = vmatpush1.bf16.xpose.msra.mxu0 0
    %1283 = vmatprep.subr.bf16.mxu0 0
    %1284 = vmatpush1.bf16.xpose.msra.mxu0 0
    %1285 = vmatprep.subr.bf16.mxu0 0
    %1286 = vmatpush1.bf16.xpose.msra.mxu0 0
    %1287 = vmatprep.subr.bf16.mxu0 0
    %1288 = vmatpush1.bf16.xpose.msra.mxu0 0
    %1289 = vmatprep.subr.bf16.mxu0 0
    %1290 = vmatpush1.bf16.xpose.msra.mxu0 0
    %1291 = vmatprep.subr.bf16.mxu0 0
    %1292 = vmatpush1.bf16.xpose.msra.mxu0 0
    %1293 = vmatprep.mubr.bf16.mxu0 0
    %1294 = vmatmul.mubr.bf16.gmra.mrb[0].mxu0 %v1256
    %v1295 = vpop.f32.mrb[0].mxu0
    %v1296 = vadd.f32 0.0, %v1295
    %v1297 = vpop.f32.mrb[0].mxu0
    %v1298 = vpop.f32.mrb[0].mxu0
    %v1299 = vpop.f32.mrb[0].mxu0
    %1300 = vdwg.mxu0
    %v1301 = vsel %vm967, %v1296, -1e+09
    %v1302 = vsel %vm450, %v1301, -inf
    %1303 = vmax.xlane.f32.xlu0 %v1302
    %v1304 = vpop.xlane.xlu0 %1303
    %v1305 = vsub.f32 %v1301, %v1304
    %v1306 = vmul.f32 %v1305, 1.442695
    %v1307 = vpow.pop %v1306
    %v1308 = vsel %vm450, %v1307, 0.0
    %1309 = vadd.xlane.f32.xlu0 %v1308
    %v1310 = vpop.xlane.xlu0 %1309
    %v1311 = vrcp.pop %v1310
    %v1312 = vmul.f32 %v1307, %v1311
    %v1313 = vpack.c.bf16 %v1312, %v1312
    %1314 = vrot.lane.b32.xlu0 %v917, 40
    %v1315 = vpop.permute.xlu0 %1314
    %v1317 = vsel %vm450, %v1313, 0
    %v1320 = vsel %vm516, %v1315, 0
    %1322 = vmatprep.subr.bf16.mxu0 0
    %1323 = vmatpush1.bf16.msra.mxu0 %v1320
    %1324 = vmatprep.subr.bf16.mxu0 0
    %1325 = vmatpush1.bf16.msra.mxu0 0
    %1326 = vmatprep.subr.bf16.mxu0 0
    %1327 = vmatpush1.bf16.msra.mxu0 0
    %1328 = vmatprep.subr.bf16.mxu0 0
    %1329 = vmatpush1.bf16.msra.mxu0 0
    %1330 = vmatprep.subr.bf16.mxu0 0
    %1331 = vmatpush1.bf16.msra.mxu0 0
    %1332 = vmatprep.subr.bf16.mxu0 0
    %1333 = vmatpush1.bf16.msra.mxu0 0
    %1334 = vmatprep.subr.bf16.mxu0 0
    %1335 = vmatpush1.bf16.msra.mxu0 0
    %1336 = vmatprep.subr.bf16.mxu0 0
    %1337 = vmatpush1.bf16.msra.mxu0 0
    %1338 = vmatprep.subr.bf16.mxu0 0
    %1339 = vmatpush1.bf16.msra.mxu0 0
    %1340 = vmatprep.subr.bf16.mxu0 0
    %1341 = vmatpush1.bf16.msra.mxu0 0
    %1342 = vmatprep.subr.bf16.mxu0 0
    %1343 = vmatpush1.bf16.msra.mxu0 0
    %1344 = vmatprep.subr.bf16.mxu0 0
    %1345 = vmatpush1.bf16.msra.mxu0 0
    %1346 = vmatprep.subr.bf16.mxu0 0
    %1347 = vmatpush1.bf16.msra.mxu0 0
    %1348 = vmatprep.subr.bf16.mxu0 0
    %1349 = vmatpush1.bf16.msra.mxu0 0
    %1350 = vmatprep.subr.bf16.mxu0 0
    %1351 = vmatpush1.bf16.msra.mxu0 0
    %1352 = vmatprep.subr.bf16.mxu0 0
    %1353 = vmatpush1.bf16.msra.mxu0 0
    %1354 = vmatprep.mubr.bf16.mxu0 0
    %1355 = vmatmul.mubr.bf16.gmra.mrb[0].mxu0 %v1317
    %v1356 = vpop.f32.mrb[0].mxu0
    %v1357 = vadd.f32 0.0, %v1356
    %v1358 = vpop.f32.mrb[0].mxu0
    %v1359 = vpop.f32.mrb[0].mxu0
    %v1360 = vpop.f32.mrb[0].mxu0
    %1361 = vdwg.mxu0
    %1363 = vrot.lane.b32.xlu0 %v1135, 8
    %v1364 = vpop.permute.xlu0 %1363
    %1367 = vrot.lane.b32.xlu0 %v1246, 16
    %v1368 = vpop.permute.xlu0 %1367
    %1371 = vrot.lane.b32.xlu0 %v1357, 24
    %v1372 = vpop.permute.xlu0 %1371
    %v1374 = vsel %vm450, %v1024, %v1364
    %v1375 = vsel %vm85, %v1374, %v1368
    %v1376 = vsel %vm907, %v1375, %v1372
    %v1377 = vld [vmem:[%s9] sm:$0xf]
    %v1378 = vld [vmem:[%s9 + $0x4] sm:$0xf]
    %v1379 = vld [vmem:[%s9 + $0x8] sm:$0xf]
    %v1380 = vld [vmem:[%s9 + $0xc] sm:$0xf]
    %v1381 = vpack.c.bf16 %v1376, %v908
    %v1382 = vld [vmem:[%s10] sm:$0xf]
    %v1383 = vld [vmem:[%s10 + $0x4] sm:$0xf]
    %v1384 = vld [vmem:[%s10 + $0x8] sm:$0xf]
    %v1385 = vld [vmem:[%s10 + $0xc] sm:$0xf]
    %v1390 = vunpack.c.l.b16 %v1382
    %v1391 = vunpack.c.l.b16 %v1383
    %v1392 = vunpack.c.l.b16 %v1384
    %v1393 = vunpack.c.l.b16 %v1385
    %v1394 = vpack.c.b16 %v1391, %v1390
    %v1395 = vpack.c.b16 %v1393, %v1392
    %v1399 = vsel %vm394, %v1381, 0
    %1401 = vmatprep.subr.bf16.mxu0 0
    %1402 = vmatpush1.bf16.msra.mxu0 %v1394
    %1403 = vmatprep.subr.bf16.mxu0 0
    %1404 = vmatpush1.bf16.msra.mxu0 %v1395
    %1405 = vmatprep.subr.bf16.mxu0 0
    %1406 = vmatpush1.bf16.msra.mxu0 0
    %1407 = vmatprep.subr.bf16.mxu0 0
    %1408 = vmatpush1.bf16.msra.mxu0 0
    %1409 = vmatprep.subr.bf16.mxu0 0
    %1410 = vmatpush1.bf16.msra.mxu0 0
    %1411 = vmatprep.subr.bf16.mxu0 0
    %1412 = vmatpush1.bf16.msra.mxu0 0
    %1413 = vmatprep.subr.bf16.mxu0 0
    %1414 = vmatpush1.bf16.msra.mxu0 0
    %1415 = vmatprep.subr.bf16.mxu0 0
    %1416 = vmatpush1.bf16.msra.mxu0 0
    %1417 = vmatprep.subr.bf16.mxu0 0
    %1418 = vmatpush1.bf16.msra.mxu0 0
    %1419 = vmatprep.subr.bf16.mxu0 0
    %1420 = vmatpush1.bf16.msra.mxu0 0
    %1421 = vmatprep.subr.bf16.mxu0 0
    %1422 = vmatpush1.bf16.msra.mxu0 0
    %1423 = vmatprep.subr.bf16.mxu0 0
    %1424 = vmatpush1.bf16.msra.mxu0 0
    %1425 = vmatprep.subr.bf16.mxu0 0
    %1426 = vmatpush1.bf16.msra.mxu0 0
    %1427 = vmatprep.subr.bf16.mxu0 0
    %1428 = vmatpush1.bf16.msra.mxu0 0
    %1429 = vmatprep.subr.bf16.mxu0 0
    %1430 = vmatpush1.bf16.msra.mxu0 0
    %1431 = vmatprep.subr.bf16.mxu0 0
    %1432 = vmatpush1.bf16.msra.mxu0 0
    %1433 = vmatprep.mubr.bf16.mxu0 0
    %1434 = vmatmul.mubr.bf16.gmra.mrb[0].mxu0 %v1399
    %v1435 = vpop.f32.mrb[0].mxu0
    %v1436 = vadd.f32 0.0, %v1435
    %v1437 = vpop.f32.mrb[0].mxu0
    %v1438 = vpop.f32.mrb[0].mxu0
    %v1439 = vadd.f32 0.0, %v1438
    %v1440 = vpop.f32.mrb[0].mxu0
    %1441 = vdwg.mxu0
    %v1446 = vunpack.c.l.b16 %v1377
    %v1447 = vunpack.c.l.b16 %v1378
    %v1448 = vunpack.c.l.b16 %v1379
    %v1449 = vunpack.c.l.b16 %v1380
    %v1450 = vpack.c.b16 %v1447, %v1446
    %v1451 = vpack.c.b16 %v1449, %v1448
    %1454 = vmatprep.subr.bf16.mxu0 0
    %1455 = vmatpush1.bf16.msra.mxu0 %v1450
    %1456 = vmatprep.subr.bf16.mxu0 0
    %1457 = vmatpush1.bf16.msra.mxu0 %v1451
    %1458 = vmatprep.subr.bf16.mxu0 0
    %1459 = vmatpush1.bf16.msra.mxu0 0
    %1460 = vmatprep.subr.bf16.mxu0 0
    %1461 = vmatpush1.bf16.msra.mxu0 0
    %1462 = vmatprep.subr.bf16.mxu0 0
    %1463 = vmatpush1.bf16.msra.mxu0 0
    %1464 = vmatprep.subr.bf16.mxu0 0
    %1465 = vmatpush1.bf16.msra.mxu0 0
    %1466 = vmatprep.subr.bf16.mxu0 0
    %1467 = vmatpush1.bf16.msra.mxu0 0
    %1468 = vmatprep.subr.bf16.mxu0 0
    %1469 = vmatpush1.bf16.msra.mxu0 0
    %1470 = vmatprep.subr.bf16.mxu0 0
    %1471 = vmatpush1.bf16.msra.mxu0 0
    %1472 = vmatprep.subr.bf16.mxu0 0
    %1473 = vmatpush1.bf16.msra.mxu0 0
    %1474 = vmatprep.subr.bf16.mxu0 0
    %1475 = vmatpush1.bf16.msra.mxu0 0
    %1476 = vmatprep.subr.bf16.mxu0 0
    %1477 = vmatpush1.bf16.msra.mxu0 0
    %1478 = vmatprep.subr.bf16.mxu0 0
    %1479 = vmatpush1.bf16.msra.mxu0 0
    %1480 = vmatprep.subr.bf16.mxu0 0
    %1481 = vmatpush1.bf16.msra.mxu0 0
    %1482 = vmatprep.subr.bf16.mxu0 0
    %1483 = vmatpush1.bf16.msra.mxu0 0
    %1484 = vmatprep.subr.bf16.mxu0 0
    %1485 = vmatpush1.bf16.msra.mxu0 0
    %1486 = vmatprep.mubr.bf16.mxu0 0
    %1487 = vmatmul.mubr.bf16.gmra.mrb[0].mxu0 %v396
    %v1488 = vpop.f32.mrb[0].mxu0
    %v1489 = vadd.f32 %v1436, %v1488
    %v1490 = vpop.f32.mrb[0].mxu0
    %v1491 = vpop.f32.mrb[0].mxu0
    %v1492 = vadd.f32 %v1439, %v1491
    %v1493 = vpop.f32.mrb[0].mxu0
    %1494 = vdwg.mxu0
    %v1495 = vld [vmem:[%s11] sm:$0x1]
    %v1497 = vlaneseq
    %v1498 = vshrl.u32 %v1497, 7
    %v1499 = vsub.s32 0, %v1498
    %v1500 = vrot.slane %v1495, %v1499
    %v1502 = vadd.f32 %v1489, %v1500
    %v1503 = vadd.f32 %v1492, %v1500
    %v1504 = vadd.f32 %v1502, %v233
    %v1505 = vadd.f32 %v1503, %v369
    %v1506 = vsel %vm394, %v1504, 0.0
    %1507 = vadd.xlane.f32.xlu0 %v1506
    %v1508 = vpop.xlane.xlu0 %1507
    %v1509 = vsel %vm394, %v1505, 0.0
    %1510 = vadd.xlane.f32.xlu0 %v1509
    %v1511 = vpop.xlane.xlu0 %1510
    %v1512 = vrcp.pop 32.0
    %v1513 = vmul.f32 %v1508, %v1512
    %v1514 = vmul.f32 %v1511, %v1512
    %v1515 = vsub.f32 %v1504, %v1513
    %v1516 = vsub.f32 %v1505, %v1514
    %v1517 = vmul.f32 %v1515, %v1515
    %v1518 = vmul.f32 %v1516, %v1516
    %v1519 = vsel %vm394, %v1517, 0.0
    %1520 = vadd.xlane.f32.xlu0 %v1519
    %v1521 = vpop.xlane.xlu0 %1520
    %v1522 = vsel %vm394, %v1518, 0.0
    %1523 = vadd.xlane.f32.xlu0 %v1522
    %v1524 = vpop.xlane.xlu0 %1523
    %v1525 = vmul.f32 %v1521, %v1512
    %v1526 = vmul.f32 %v1524, %v1512
    %v1527 = vadd.f32 %v1525, 1e-05
    %v1528 = vadd.f32 %v1526, 1e-05
    %v1529 = vrsqrt.pop %v1527
    %v1530 = vrsqrt.pop %v1528
    %v1531 = vmul.f32 %v1515, %v1529
    %v1532 = vmul.f32 %v1516, %v1530
    %v1533 = vld [vmem:[%s12] sm:$0x1]
    %v1535 = vlaneseq
    %v1536 = vshrl.u32 %v1535, 7
    %v1537 = vsub.s32 0, %v1536
    %v1538 = vrot.slane %v1533, %v1537
    %v1540 = vmul.f32 %v1531, %v1538
    %v1541 = vmul.f32 %v1532, %v1538
    %v1542 = vld [vmem:[%s13] sm:$0x1]
    %v1544 = vlaneseq
    %v1545 = vshrl.u32 %v1544, 7
    %v1546 = vsub.s32 0, %v1545
    %v1547 = vrot.slane %v1542, %v1546
    %v1549 = vadd.f32 %v1540, %v1547
    %v1550 = vadd.f32 %v1541, %v1547
    %v1551 = vpack.c.bf16 %v1550, %v1549
    %v1552 = vld [vmem:[%s14] sm:$0xf]
    %v1553 = vld [vmem:[%s14 + $0x4] sm:$0xf]
    %v1554 = vld [vmem:[%s14 + $0x8] sm:$0xf]
    %v1555 = vld [vmem:[%s14 + $0xc] sm:$0xf]
    %v1556 = vld [vmem:[%s15] sm:$0x1]
    %v1558 = vlaneseq
    %v1559 = vshrl.u32 %v1558, 7
    %v1560 = vsub.s32 0, %v1559
    %v1561 = vrot.slane %v1556, %v1560
    %v1567 = vunpack.c.l.b16 %v1552
    %v1568 = vunpack.c.l.b16 %v1553
    %v1569 = vunpack.c.l.b16 %v1554
    %v1570 = vunpack.c.l.b16 %v1555
    %v1571 = vpack.c.b16 %v1568, %v1567
    %v1572 = vpack.c.b16 %v1570, %v1569
    %v1576 = vsel %vm394, %v1551, 0
    %1578 = vmatprep.subr.bf16.mxu0 0
    %1579 = vmatpush1.bf16.msra.mxu0 %v1571
    %1580 = vmatprep.subr.bf16.mxu0 0
    %1581 = vmatpush1.bf16.msra.mxu0 %v1572
    %1582 = vmatprep.subr.bf16.mxu0 0
    %1583 = vmatpush1.bf16.msra.mxu0 0
    %1584 = vmatprep.subr.bf16.mxu0 0
    %1585 = vmatpush1.bf16.msra.mxu0 0
    %1586 = vmatprep.subr.bf16.mxu0 0
    %1587 = vmatpush1.bf16.msra.mxu0 0
    %1588 = vmatprep.subr.bf16.mxu0 0
    %1589 = vmatpush1.bf16.msra.mxu0 0
    %1590 = vmatprep.subr.bf16.mxu0 0
    %1591 = vmatpush1.bf16.msra.mxu0 0
    %1592 = vmatprep.subr.bf16.mxu0 0
    %1593 = vmatpush1.bf16.msra.mxu0 0
    %1594 = vmatprep.subr.bf16.mxu0 0
    %1595 = vmatpush1.bf16.msra.mxu0 0
    %1596 = vmatprep.subr.bf16.mxu0 0
    %1597 = vmatpush1.bf16.msra.mxu0 0
    %1598 = vmatprep.subr.bf16.mxu0 0
    %1599 = vmatpush1.bf16.msra.mxu0 0
    %1600 = vmatprep.subr.bf16.mxu0 0
    %1601 = vmatpush1.bf16.msra.mxu0 0
    %1602 = vmatprep.subr.bf16.mxu0 0
    %1603 = vmatpush1.bf16.msra.mxu0 0
    %1604 = vmatprep.subr.bf16.mxu0 0
    %1605 = vmatpush1.bf16.msra.mxu0 0
    %1606 = vmatprep.subr.bf16.mxu0 0
    %1607 = vmatpush1.bf16.msra.mxu0 0
    %1608 = vmatprep.subr.bf16.mxu0 0
    %1609 = vmatpush1.bf16.msra.mxu0 0
    %1610 = vmatprep.mubr.bf16.mxu0 0
    %1611 = vmatmul.mubr.bf16.gmra.mrb[0].mxu0 %v1576
    %v1612 = vpop.f32.mrb[0].mxu0
    %v1613 = vadd.f32 %v1561, %v1612
    %v1614 = vpop.f32.mrb[0].mxu0
    %v1615 = vpop.f32.mrb[0].mxu0
    %v1616 = vadd.f32 %v1561, %v1615
    %v1617 = vpop.f32.mrb[0].mxu0
    %1618 = vdwg.mxu0
    %vm1619 = vcmp.ge.f32.partialorder %v1613, 0.0
    %vm1620 = vcmp.ge.f32.partialorder %v1616, 0.0
    %v1621 = vmul.f32 %v1613, 0.2
    %v1622 = vmul.f32 %v1616, 0.2
    %v1623 = vsel %vm1619, %v1613, %v1621
    %v1624 = vsel %vm1620, %v1616, %v1622
    %v1625 = vpack.c.bf16 %v1624, %v1623
    %v1626 = vld [vmem:[%s16] sm:$0xf]
    %v1627 = vld [vmem:[%s16 + $0x4] sm:$0xf]
    %v1628 = vld [vmem:[%s16 + $0x8] sm:$0xf]
    %v1629 = vld [vmem:[%s16 + $0xc] sm:$0xf]
    %v1630 = vld [vmem:[%s16 + $0x10] sm:$0xf]
    %v1631 = vld [vmem:[%s16 + $0x14] sm:$0xf]
    %v1632 = vld [vmem:[%s16 + $0x18] sm:$0xf]
    %v1633 = vld [vmem:[%s16 + $0x1c] sm:$0xf]
    %v1634 = vld [vmem:[%s16 + $0x20] sm:$0xf]
    %v1635 = vld [vmem:[%s16 + $0x24] sm:$0xf]
    %v1636 = vld [vmem:[%s16 + $0x28] sm:$0xf]
    %v1637 = vld [vmem:[%s16 + $0x2c] sm:$0xf]
    %v1638 = vld [vmem:[%s16 + $0x30] sm:$0xf]
    %v1639 = vld [vmem:[%s16 + $0x34] sm:$0xf]
    %v1640 = vld [vmem:[%s16 + $0x38] sm:$0xf]
    %v1641 = vld [vmem:[%s16 + $0x3c] sm:$0xf]
    %v1642 = vld [vmem:[%s17] sm:$0x1]
    %v1644 = vlaneseq
    %v1645 = vshrl.u32 %v1644, 7
    %v1646 = vsub.s32 0, %v1645
    %v1647 = vrot.slane %v1642, %v1646
    %v1665 = vunpack.c.l.b16 %v1626
    %v1666 = vunpack.c.l.b16 %v1627
    %v1667 = vunpack.c.l.b16 %v1628
    %v1668 = vunpack.c.l.b16 %v1629
    %v1669 = vunpack.c.l.b16 %v1630
    %v1670 = vunpack.c.l.b16 %v1631
    %v1671 = vunpack.c.l.b16 %v1632
    %v1672 = vunpack.c.l.b16 %v1633
    %v1673 = vunpack.c.l.b16 %v1634
    %v1674 = vunpack.c.l.b16 %v1635
    %v1675 = vunpack.c.l.b16 %v1636
    %v1676 = vunpack.c.l.b16 %v1637
    %v1677 = vunpack.c.l.b16 %v1638
    %v1678 = vunpack.c.l.b16 %v1639
    %v1679 = vunpack.c.l.b16 %v1640
    %v1680 = vunpack.c.l.b16 %v1641
    %v1681 = vpack.c.b16 %v1666, %v1665
    %v1682 = vpack.c.b16 %v1668, %v1667
    %v1683 = vpack.c.b16 %v1670, %v1669
    %v1684 = vpack.c.b16 %v1672, %v1671
    %v1685 = vpack.c.b16 %v1674, %v1673
    %v1686 = vpack.c.b16 %v1676, %v1675
    %v1687 = vpack.c.b16 %v1678, %v1677
    %v1688 = vpack.c.b16 %v1680, %v1679
    %1697 = vmatprep.subr.bf16.mxu0 0
    %1698 = vmatpush1.bf16.msra.mxu0 %v1681
    %1699 = vmatprep.subr.bf16.mxu0 0
    %1700 = vmatpush1.bf16.msra.mxu0 %v1682
    %1701 = vmatprep.subr.bf16.mxu0 0
    %1702 = vmatpush1.bf16.msra.mxu0 %v1683
    %1703 = vmatprep.subr.bf16.mxu0 0
    %1704 = vmatpush1.bf16.msra.mxu0 %v1684
    %1705 = vmatprep.subr.bf16.mxu0 0
    %1706 = vmatpush1.bf16.msra.mxu0 %v1685
    %1707 = vmatprep.subr.bf16.mxu0 0
    %1708 = vmatpush1.bf16.msra.mxu0 %v1686
    %1709 = vmatprep.subr.bf16.mxu0 0
    %1710 = vmatpush1.bf16.msra.mxu0 %v1687
    %1711 = vmatprep.subr.bf16.mxu0 0
    %1712 = vmatpush1.bf16.msra.mxu0 %v1688
    %1713 = vmatprep.subr.bf16.mxu0 0
    %1714 = vmatpush1.bf16.msra.mxu0 0
    %1715 = vmatprep.subr.bf16.mxu0 0
    %1716 = vmatpush1.bf16.msra.mxu0 0
    %1717 = vmatprep.subr.bf16.mxu0 0
    %1718 = vmatpush1.bf16.msra.mxu0 0
    %1719 = vmatprep.subr.bf16.mxu0 0
    %1720 = vmatpush1.bf16.msra.mxu0 0
    %1721 = vmatprep.subr.bf16.mxu0 0
    %1722 = vmatpush1.bf16.msra.mxu0 0
    %1723 = vmatprep.subr.bf16.mxu0 0
    %1724 = vmatpush1.bf16.msra.mxu0 0
    %1725 = vmatprep.subr.bf16.mxu0 0
    %1726 = vmatpush1.bf16.msra.mxu0 0
    %1727 = vmatprep.subr.bf16.mxu0 0
    %1728 = vmatpush1.bf16.msra.mxu0 0
    %1729 = vmatprep.mubr.bf16.mxu0 0
    %1730 = vmatmul.mubr.bf16.gmra.mrb[0].mxu0 %v1625
    %v1731 = vpop.f32.mrb[0].mxu0
    %v1732 = vadd.f32 %v1647, %v1731
    %v1733 = vpop.f32.mrb[0].mxu0
    %v1734 = vpop.f32.mrb[0].mxu0
    %v1735 = vadd.f32 %v1647, %v1734
    %v1736 = vpop.f32.mrb[0].mxu0
    %1737 = vdwg.mxu0
    %v1738 = vadd.f32 %v1732, %v1549
    %v1739 = vadd.f32 %v1735, %v1550
    %v1740 = vsel %vm394, %v1738, 0.0
    %1741 = vadd.xlane.f32.xlu0 %v1740
    %v1742 = vpop.xlane.xlu0 %1741
    %v1743 = vsel %vm394, %v1739, 0.0
    %1744 = vadd.xlane.f32.xlu0 %v1743
    %v1745 = vpop.xlane.xlu0 %1744
    %v1746 = vmul.f32 %v1742, %v1512
    %v1747 = vmul.f32 %v1745, %v1512
    %v1748 = vsub.f32 %v1738, %v1746
    %v1749 = vsub.f32 %v1739, %v1747
    %v1750 = vmul.f32 %v1748, %v1748
    %v1751 = vmul.f32 %v1749, %v1749
    %v1752 = vsel %vm394, %v1750, 0.0
    %1753 = vadd.xlane.f32.xlu0 %v1752
    %v1754 = vpop.xlane.xlu0 %1753
    %v1755 = vsel %vm394, %v1751, 0.0
    %1756 = vadd.xlane.f32.xlu0 %v1755
    %v1757 = vpop.xlane.xlu0 %1756
    %v1758 = vmul.f32 %v1754, %v1512
    %v1759 = vmul.f32 %v1757, %v1512
    %v1760 = vadd.f32 %v1758, 1e-05
    %v1761 = vadd.f32 %v1759, 1e-05
    %v1762 = vrsqrt.pop %v1760
    %v1763 = vrsqrt.pop %v1761
    %v1764 = vmul.f32 %v1748, %v1762
    %v1765 = vmul.f32 %v1749, %v1763
    %v1766 = vld [vmem:[%s18] sm:$0x1]
    %v1768 = vlaneseq
    %v1769 = vshrl.u32 %v1768, 7
    %v1770 = vsub.s32 0, %v1769
    %v1771 = vrot.slane %v1766, %v1770
    %v1773 = vmul.f32 %v1764, %v1771
    %v1774 = vmul.f32 %v1765, %v1771
    %v1775 = vld [vmem:[%s19] sm:$0x1]
    %v1777 = vlaneseq
    %v1778 = vshrl.u32 %v1777, 7
    %v1779 = vsub.s32 0, %v1778
    %v1780 = vrot.slane %v1775, %v1779
    %v1782 = vadd.f32 %v1773, %v1780
    %v1783 = vadd.f32 %v1774, %v1780
    %v1784 = vpack.c.bf16 %v1783, %v1782
    %s1785 = scalar_lea.vmem %s7, 16
    %v1786 = vld [vmem:[%s1785] sm:$0xf]
    %v1787 = vld [vmem:[%s1785 + $0x4] sm:$0xf]
    %v1788 = vld [vmem:[%s1785 + $0x8] sm:$0xf]
    %v1789 = vld [vmem:[%s1785 + $0xc] sm:$0xf]
    %s1790 = scalar_lea.vmem %s8, 1
    %v1791 = vld [vmem:[%s1790] sm:$0x1]
    %v1793 = vlaneseq
    %v1794 = vshrl.u32 %v1793, 7
    %v1795 = vsub.s32 0, %v1794
    %v1796 = vrot.slane %v1791, %v1795
    %v1802 = vunpack.c.l.b16 %v1786
    %v1803 = vunpack.c.l.b16 %v1787
    %v1804 = vunpack.c.l.b16 %v1788
    %v1805 = vunpack.c.l.b16 %v1789
    %v1806 = vpack.c.b16 %v1803, %v1802
    %v1807 = vpack.c.b16 %v1805, %v1804
    %v1811 = vsel %vm394, %v1784, 0
    %1813 = vmatprep.subr.bf16.mxu0 0
    %1814 = vmatpush1.bf16.msra.mxu0 %v1806
    %1815 = vmatprep.subr.bf16.mxu0 0
    %1816 = vmatpush1.bf16.msra.mxu0 %v1807
    %1817 = vmatprep.subr.bf16.mxu0 0
    %1818 = vmatpush1.bf16.msra.mxu0 0
    %1819 = vmatprep.subr.bf16.mxu0 0
    %1820 = vmatpush1.bf16.msra.mxu0 0
    %1821 = vmatprep.subr.bf16.mxu0 0
    %1822 = vmatpush1.bf16.msra.mxu0 0
    %1823 = vmatprep.subr.bf16.mxu0 0
    %1824 = vmatpush1.bf16.msra.mxu0 0
    %1825 = vmatprep.subr.bf16.mxu0 0
    %1826 = vmatpush1.bf16.msra.mxu0 0
    %1827 = vmatprep.subr.bf16.mxu0 0
    %1828 = vmatpush1.bf16.msra.mxu0 0
    %1829 = vmatprep.subr.bf16.mxu0 0
    %1830 = vmatpush1.bf16.msra.mxu0 0
    %1831 = vmatprep.subr.bf16.mxu0 0
    %1832 = vmatpush1.bf16.msra.mxu0 0
    %1833 = vmatprep.subr.bf16.mxu0 0
    %1834 = vmatpush1.bf16.msra.mxu0 0
    %1835 = vmatprep.subr.bf16.mxu0 0
    %1836 = vmatpush1.bf16.msra.mxu0 0
    %1837 = vmatprep.subr.bf16.mxu0 0
    %1838 = vmatpush1.bf16.msra.mxu0 0
    %1839 = vmatprep.subr.bf16.mxu0 0
    %1840 = vmatpush1.bf16.msra.mxu0 0
    %1841 = vmatprep.subr.bf16.mxu0 0
    %1842 = vmatpush1.bf16.msra.mxu0 0
    %1843 = vmatprep.subr.bf16.mxu0 0
    %1844 = vmatpush1.bf16.msra.mxu0 0
    %1845 = vmatprep.mubr.bf16.mxu0 0
    %1846 = vmatmul.mubr.bf16.gmra.mrb[0].mxu0 %v1811
    %v1847 = vpop.f32.mrb[0].mxu0
    %v1848 = vadd.f32 %v1796, %v1847
    %v1849 = vpop.f32.mrb[0].mxu0
    %v1850 = vpop.f32.mrb[0].mxu0
    %v1851 = vadd.f32 %v1796, %v1850
    %v1852 = vpop.f32.mrb[0].mxu0
    %1853 = vdwg.mxu0
    %v1854 = vpack.c.bf16 %v1848, %v1848
    %1856 = vrot.lane.b32.xlu0 %v1854, 96
    %v1857 = vpop.permute.xlu0 %1856
    %v1859 = vsel %vm450, %v1854, 0
    %v1862 = vsel %vm450, %v1857, 0
    %1864 = vmatprep.subr.bf16.mxu0 0
    %1865 = vmatpush1.bf16.xpose.msra.mxu0 %v1862
    %1866 = vmatprep.subr.bf16.mxu0 0
    %1867 = vmatpush1.bf16.xpose.msra.mxu0 0
    %1868 = vmatprep.subr.bf16.mxu0 0
    %1869 = vmatpush1.bf16.xpose.msra.mxu0 0
    %1870 = vmatprep.subr.bf16.mxu0 0
    %1871 = vmatpush1.bf16.xpose.msra.mxu0 0
    %1872 = vmatprep.subr.bf16.mxu0 0
    %1873 = vmatpush1.bf16.xpose.msra.mxu0 0
    %1874 = vmatprep.subr.bf16.mxu0 0
    %1875 = vmatpush1.bf16.xpose.msra.mxu0 0
    %1876 = vmatprep.subr.bf16.mxu0 0
    %1877 = vmatpush1.bf16.xpose.msra.mxu0 0
    %1878 = vmatprep.subr.bf16.mxu0 0
    %1879 = vmatpush1.bf16.xpose.msra.mxu0 0
    %1880 = vmatprep.subr.bf16.mxu0 0
    %1881 = vmatpush1.bf16.xpose.msra.mxu0 0
    %1882 = vmatprep.subr.bf16.mxu0 0
    %1883 = vmatpush1.bf16.xpose.msra.mxu0 0
    %1884 = vmatprep.subr.bf16.mxu0 0
    %1885 = vmatpush1.bf16.xpose.msra.mxu0 0
    %1886 = vmatprep.subr.bf16.mxu0 0
    %1887 = vmatpush1.bf16.xpose.msra.mxu0 0
    %1888 = vmatprep.subr.bf16.mxu0 0
    %1889 = vmatpush1.bf16.xpose.msra.mxu0 0
    %1890 = vmatprep.subr.bf16.mxu0 0
    %1891 = vmatpush1.bf16.xpose.msra.mxu0 0
    %1892 = vmatprep.subr.bf16.mxu0 0
    %1893 = vmatpush1.bf16.xpose.msra.mxu0 0
    %1894 = vmatprep.subr.bf16.mxu0 0
    %1895 = vmatpush1.bf16.xpose.msra.mxu0 0
    %1896 = vmatprep.mubr.bf16.mxu0 0
    %1897 = vmatmul.mubr.bf16.gmra.mrb[0].mxu0 %v1859
    %v1898 = vpop.f32.mrb[0].mxu0
    %v1899 = vadd.f32 0.0, %v1898
    %v1900 = vpop.f32.mrb[0].mxu0
    %v1901 = vpop.f32.mrb[0].mxu0
    %v1902 = vpop.f32.mrb[0].mxu0
    %1903 = vdwg.mxu0
    %v1904 = vsel %vm497, %v1899, -1e+09
    %v1905 = vsel %vm450, %v1904, -inf
    %1906 = vmax.xlane.f32.xlu0 %v1905
    %v1907 = vpop.xlane.xlu0 %1906
    %v1908 = vsub.f32 %v1904, %v1907
    %v1909 = vmul.f32 %v1908, 1.442695
    %v1910 = vpow.pop %v1909
    %v1911 = vsel %vm450, %v1910, 0.0
    %1912 = vadd.xlane.f32.xlu0 %v1911
    %v1913 = vpop.xlane.xlu0 %1912
    %v1914 = vrcp.pop %v1913
    %v1915 = vmul.f32 %v1910, %v1914
    %v1916 = vpack.c.bf16 %v1915, %v1915
    %1917 = vrot.lane.b32.xlu0 %v1854, 64
    %v1918 = vpop.permute.xlu0 %1917
    %v1920 = vsel %vm450, %v1916, 0
    %v1923 = vsel %vm516, %v1918, 0
    %1925 = vmatprep.subr.bf16.mxu0 0
    %1926 = vmatpush1.bf16.msra.mxu0 %v1923
    %1927 = vmatprep.subr.bf16.mxu0 0
    %1928 = vmatpush1.bf16.msra.mxu0 0
    %1929 = vmatprep.subr.bf16.mxu0 0
    %1930 = vmatpush1.bf16.msra.mxu0 0
    %1931 = vmatprep.subr.bf16.mxu0 0
    %1932 = vmatpush1.bf16.msra.mxu0 0
    %1933 = vmatprep.subr.bf16.mxu0 0
    %1934 = vmatpush1.bf16.msra.mxu0 0
    %1935 = vmatprep.subr.bf16.mxu0 0
    %1936 = vmatpush1.bf16.msra.mxu0 0
    %1937 = vmatprep.subr.bf16.mxu0 0
    %1938 = vmatpush1.bf16.msra.mxu0 0
    %1939 = vmatprep.subr.bf16.mxu0 0
    %1940 = vmatpush1.bf16.msra.mxu0 0
    %1941 = vmatprep.subr.bf16.mxu0 0
    %1942 = vmatpush1.bf16.msra.mxu0 0
    %1943 = vmatprep.subr.bf16.mxu0 0
    %1944 = vmatpush1.bf16.msra.mxu0 0
    %1945 = vmatprep.subr.bf16.mxu0 0
    %1946 = vmatpush1.bf16.msra.mxu0 0
    %1947 = vmatprep.subr.bf16.mxu0 0
    %1948 = vmatpush1.bf16.msra.mxu0 0
    %1949 = vmatprep.subr.bf16.mxu0 0
    %1950 = vmatpush1.bf16.msra.mxu0 0
    %1951 = vmatprep.subr.bf16.mxu0 0
    %1952 = vmatpush1.bf16.msra.mxu0 0
    %1953 = vmatprep.subr.bf16.mxu0 0
    %1954 = vmatpush1.bf16.msra.mxu0 0
    %1955 = vmatprep.subr.bf16.mxu0 0
    %1956 = vmatpush1.bf16.msra.mxu0 0
    %1957 = vmatprep.mubr.bf16.mxu0 0
    %1958 = vmatmul.mubr.bf16.gmra.mrb[0].mxu0 %v1920
    %v1959 = vpop.f32.mrb[0].mxu0
    %v1960 = vadd.f32 0.0, %v1959
    %v1961 = vpop.f32.mrb[0].mxu0
    %v1962 = vpop.f32.mrb[0].mxu0
    %v1963 = vpop.f32.mrb[0].mxu0
    %1964 = vdwg.mxu0
    %1965 = vrot.lane.b32.xlu0 %v1854, 120
    %v1966 = vpop.permute.xlu0 %1965
    %1967 = vrot.lane.b32.xlu0 %v1854, 88
    %v1968 = vpop.permute.xlu0 %1967
    %v1970 = vsel %vm450, %v1966, 0
    %v1973 = vsel %vm450, %v1968, 0
    %1975 = vmatprep.subr.bf16.mxu0 0
    %1976 = vmatpush1.bf16.xpose.msra.mxu0 %v1973
    %1977 = vmatprep.subr.bf16.mxu0 0
    %1978 = vmatpush1.bf16.xpose.msra.mxu0 0
    %1979 = vmatprep.subr.bf16.mxu0 0
    %1980 = vmatpush1.bf16.xpose.msra.mxu0 0
    %1981 = vmatprep.subr.bf16.mxu0 0
    %1982 = vmatpush1.bf16.xpose.msra.mxu0 0
    %1983 = vmatprep.subr.bf16.mxu0 0
    %1984 = vmatpush1.bf16.xpose.msra.mxu0 0
    %1985 = vmatprep.subr.bf16.mxu0 0
    %1986 = vmatpush1.bf16.xpose.msra.mxu0 0
    %1987 = vmatprep.subr.bf16.mxu0 0
    %1988 = vmatpush1.bf16.xpose.msra.mxu0 0
    %1989 = vmatprep.subr.bf16.mxu0 0
    %1990 = vmatpush1.bf16.xpose.msra.mxu0 0
    %1991 = vmatprep.subr.bf16.mxu0 0
    %1992 = vmatpush1.bf16.xpose.msra.mxu0 0
    %1993 = vmatprep.subr.bf16.mxu0 0
    %1994 = vmatpush1.bf16.xpose.msra.mxu0 0
    %1995 = vmatprep.subr.bf16.mxu0 0
    %1996 = vmatpush1.bf16.xpose.msra.mxu0 0
    %1997 = vmatprep.subr.bf16.mxu0 0
    %1998 = vmatpush1.bf16.xpose.msra.mxu0 0
    %1999 = vmatprep.subr.bf16.mxu0 0
    %2000 = vmatpush1.bf16.xpose.msra.mxu0 0
    %2001 = vmatprep.subr.bf16.mxu0 0
    %2002 = vmatpush1.bf16.xpose.msra.mxu0 0
    %2003 = vmatprep.subr.bf16.mxu0 0
    %2004 = vmatpush1.bf16.xpose.msra.mxu0 0
    %2005 = vmatprep.subr.bf16.mxu0 0
    %2006 = vmatpush1.bf16.xpose.msra.mxu0 0
    %2007 = vmatprep.mubr.bf16.mxu0 0
    %2008 = vmatmul.mubr.bf16.gmra.mrb[0].mxu0 %v1970
    %v2009 = vpop.f32.mrb[0].mxu0
    %v2010 = vadd.f32 0.0, %v2009
    %v2011 = vpop.f32.mrb[0].mxu0
    %v2012 = vpop.f32.mrb[0].mxu0
    %v2013 = vpop.f32.mrb[0].mxu0
    %2014 = vdwg.mxu0
    %v2015 = vsel %vm497, %v2010, -1e+09
    %v2016 = vsel %vm450, %v2015, -inf
    %2017 = vmax.xlane.f32.xlu0 %v2016
    %v2018 = vpop.xlane.xlu0 %2017
    %v2019 = vsub.f32 %v2015, %v2018
    %v2020 = vmul.f32 %v2019, 1.442695
    %v2021 = vpow.pop %v2020
    %v2022 = vsel %vm450, %v2021, 0.0
    %2023 = vadd.xlane.f32.xlu0 %v2022
    %v2024 = vpop.xlane.xlu0 %2023
    %v2025 = vrcp.pop %v2024
    %v2026 = vmul.f32 %v2021, %v2025
    %v2027 = vpack.c.bf16 %v2026, %v2026
    %2028 = vrot.lane.b32.xlu0 %v1854, 56
    %v2029 = vpop.permute.xlu0 %2028
    %v2031 = vsel %vm450, %v2027, 0
    %v2034 = vsel %vm516, %v2029, 0
    %2036 = vmatprep.subr.bf16.mxu0 0
    %2037 = vmatpush1.bf16.msra.mxu0 %v2034
    %2038 = vmatprep.subr.bf16.mxu0 0
    %2039 = vmatpush1.bf16.msra.mxu0 0
    %2040 = vmatprep.subr.bf16.mxu0 0
    %2041 = vmatpush1.bf16.msra.mxu0 0
    %2042 = vmatprep.subr.bf16.mxu0 0
    %2043 = vmatpush1.bf16.msra.mxu0 0
    %2044 = vmatprep.subr.bf16.mxu0 0
    %2045 = vmatpush1.bf16.msra.mxu0 0
    %2046 = vmatprep.subr.bf16.mxu0 0
    %2047 = vmatpush1.bf16.msra.mxu0 0
    %2048 = vmatprep.subr.bf16.mxu0 0
    %2049 = vmatpush1.bf16.msra.mxu0 0
    %2050 = vmatprep.subr.bf16.mxu0 0
    %2051 = vmatpush1.bf16.msra.mxu0 0
    %2052 = vmatprep.subr.bf16.mxu0 0
    %2053 = vmatpush1.bf16.msra.mxu0 0
    %2054 = vmatprep.subr.bf16.mxu0 0
    %2055 = vmatpush1.bf16.msra.mxu0 0
    %2056 = vmatprep.subr.bf16.mxu0 0
    %2057 = vmatpush1.bf16.msra.mxu0 0
    %2058 = vmatprep.subr.bf16.mxu0 0
    %2059 = vmatpush1.bf16.msra.mxu0 0
    %2060 = vmatprep.subr.bf16.mxu0 0
    %2061 = vmatpush1.bf16.msra.mxu0 0
    %2062 = vmatprep.subr.bf16.mxu0 0
    %2063 = vmatpush1.bf16.msra.mxu0 0
    %2064 = vmatprep.subr.bf16.mxu0 0
    %2065 = vmatpush1.bf16.msra.mxu0 0
    %2066 = vmatprep.subr.bf16.mxu0 0
    %2067 = vmatpush1.bf16.msra.mxu0 0
    %2068 = vmatprep.mubr.bf16.mxu0 0
    %2069 = vmatmul.mubr.bf16.gmra.mrb[0].mxu0 %v2031
    %v2070 = vpop.f32.mrb[0].mxu0
    %v2071 = vadd.f32 0.0, %v2070
    %v2072 = vpop.f32.mrb[0].mxu0
    %v2073 = vpop.f32.mrb[0].mxu0
    %v2074 = vpop.f32.mrb[0].mxu0
    %2075 = vdwg.mxu0
    %2076 = vrot.lane.b32.xlu0 %v1854, 112
    %v2077 = vpop.permute.xlu0 %2076
    %2078 = vrot.lane.b32.xlu0 %v1854, 80
    %v2079 = vpop.permute.xlu0 %2078
    %v2081 = vsel %vm450, %v2077, 0
    %v2084 = vsel %vm450, %v2079, 0
    %2086 = vmatprep.subr.bf16.mxu0 0
    %2087 = vmatpush1.bf16.xpose.msra.mxu0 %v2084
    %2088 = vmatprep.subr.bf16.mxu0 0
    %2089 = vmatpush1.bf16.xpose.msra.mxu0 0
    %2090 = vmatprep.subr.bf16.mxu0 0
    %2091 = vmatpush1.bf16.xpose.msra.mxu0 0
    %2092 = vmatprep.subr.bf16.mxu0 0
    %2093 = vmatpush1.bf16.xpose.msra.mxu0 0
    %2094 = vmatprep.subr.bf16.mxu0 0
    %2095 = vmatpush1.bf16.xpose.msra.mxu0 0
    %2096 = vmatprep.subr.bf16.mxu0 0
    %2097 = vmatpush1.bf16.xpose.msra.mxu0 0
    %2098 = vmatprep.subr.bf16.mxu0 0
    %2099 = vmatpush1.bf16.xpose.msra.mxu0 0
    %2100 = vmatprep.subr.bf16.mxu0 0
    %2101 = vmatpush1.bf16.xpose.msra.mxu0 0
    %2102 = vmatprep.subr.bf16.mxu0 0
    %2103 = vmatpush1.bf16.xpose.msra.mxu0 0
    %2104 = vmatprep.subr.bf16.mxu0 0
    %2105 = vmatpush1.bf16.xpose.msra.mxu0 0
    %2106 = vmatprep.subr.bf16.mxu0 0
    %2107 = vmatpush1.bf16.xpose.msra.mxu0 0
    %2108 = vmatprep.subr.bf16.mxu0 0
    %2109 = vmatpush1.bf16.xpose.msra.mxu0 0
    %2110 = vmatprep.subr.bf16.mxu0 0
    %2111 = vmatpush1.bf16.xpose.msra.mxu0 0
    %2112 = vmatprep.subr.bf16.mxu0 0
    %2113 = vmatpush1.bf16.xpose.msra.mxu0 0
    %2114 = vmatprep.subr.bf16.mxu0 0
    %2115 = vmatpush1.bf16.xpose.msra.mxu0 0
    %2116 = vmatprep.subr.bf16.mxu0 0
    %2117 = vmatpush1.bf16.xpose.msra.mxu0 0
    %2118 = vmatprep.mubr.bf16.mxu0 0
    %2119 = vmatmul.mubr.bf16.gmra.mrb[0].mxu0 %v2081
    %v2120 = vpop.f32.mrb[0].mxu0
    %v2121 = vadd.f32 0.0, %v2120
    %v2122 = vpop.f32.mrb[0].mxu0
    %v2123 = vpop.f32.mrb[0].mxu0
    %v2124 = vpop.f32.mrb[0].mxu0
    %2125 = vdwg.mxu0
    %v2126 = vsel %vm497, %v2121, -1e+09
    %v2127 = vsel %vm450, %v2126, -inf
    %2128 = vmax.xlane.f32.xlu0 %v2127
    %v2129 = vpop.xlane.xlu0 %2128
    %v2130 = vsub.f32 %v2126, %v2129
    %v2131 = vmul.f32 %v2130, 1.442695
    %v2132 = vpow.pop %v2131
    %v2133 = vsel %vm450, %v2132, 0.0
    %2134 = vadd.xlane.f32.xlu0 %v2133
    %v2135 = vpop.xlane.xlu0 %2134
    %v2136 = vrcp.pop %v2135
    %v2137 = vmul.f32 %v2132, %v2136
    %v2138 = vpack.c.bf16 %v2137, %v2137
    %2139 = vrot.lane.b32.xlu0 %v1854, 48
    %v2140 = vpop.permute.xlu0 %2139
    %v2142 = vsel %vm450, %v2138, 0
    %v2145 = vsel %vm516, %v2140, 0
    %2147 = vmatprep.subr.bf16.mxu0 0
    %2148 = vmatpush1.bf16.msra.mxu0 %v2145
    %2149 = vmatprep.subr.bf16.mxu0 0
    %2150 = vmatpush1.bf16.msra.mxu0 0
    %2151 = vmatprep.subr.bf16.mxu0 0
    %2152 = vmatpush1.bf16.msra.mxu0 0
    %2153 = vmatprep.subr.bf16.mxu0 0
    %2154 = vmatpush1.bf16.msra.mxu0 0
    %2155 = vmatprep.subr.bf16.mxu0 0
    %2156 = vmatpush1.bf16.msra.mxu0 0
    %2157 = vmatprep.subr.bf16.mxu0 0
    %2158 = vmatpush1.bf16.msra.mxu0 0
    %2159 = vmatprep.subr.bf16.mxu0 0
    %2160 = vmatpush1.bf16.msra.mxu0 0
    %2161 = vmatprep.subr.bf16.mxu0 0
    %2162 = vmatpush1.bf16.msra.mxu0 0
    %2163 = vmatprep.subr.bf16.mxu0 0
    %2164 = vmatpush1.bf16.msra.mxu0 0
    %2165 = vmatprep.subr.bf16.mxu0 0
    %2166 = vmatpush1.bf16.msra.mxu0 0
    %2167 = vmatprep.subr.bf16.mxu0 0
    %2168 = vmatpush1.bf16.msra.mxu0 0
    %2169 = vmatprep.subr.bf16.mxu0 0
    %2170 = vmatpush1.bf16.msra.mxu0 0
    %2171 = vmatprep.subr.bf16.mxu0 0
    %2172 = vmatpush1.bf16.msra.mxu0 0
    %2173 = vmatprep.subr.bf16.mxu0 0
    %2174 = vmatpush1.bf16.msra.mxu0 0
    %2175 = vmatprep.subr.bf16.mxu0 0
    %2176 = vmatpush1.bf16.msra.mxu0 0
    %2177 = vmatprep.subr.bf16.mxu0 0
    %2178 = vmatpush1.bf16.msra.mxu0 0
    %2179 = vmatprep.mubr.bf16.mxu0 0
    %2180 = vmatmul.mubr.bf16.gmra.mrb[0].mxu0 %v2142
    %v2181 = vpop.f32.mrb[0].mxu0
    %v2182 = vadd.f32 0.0, %v2181
    %v2183 = vpop.f32.mrb[0].mxu0
    %v2184 = vpop.f32.mrb[0].mxu0
    %v2185 = vpop.f32.mrb[0].mxu0
    %2186 = vdwg.mxu0
    %2187 = vrot.lane.b32.xlu0 %v1854, 104
    %v2188 = vpop.permute.xlu0 %2187
    %2189 = vrot.lane.b32.xlu0 %v1854, 72
    %v2190 = vpop.permute.xlu0 %2189
    %v2192 = vsel %vm450, %v2188, 0
    %v2195 = vsel %vm450, %v2190, 0
    %2197 = vmatprep.subr.bf16.mxu0 0
    %2198 = vmatpush1.bf16.xpose.msra.mxu0 %v2195
    %2199 = vmatprep.subr.bf16.mxu0 0
    %2200 = vmatpush1.bf16.xpose.msra.mxu0 0
    %2201 = vmatprep.subr.bf16.mxu0 0
    %2202 = vmatpush1.bf16.xpose.msra.mxu0 0
    %2203 = vmatprep.subr.bf16.mxu0 0
    %2204 = vmatpush1.bf16.xpose.msra.mxu0 0
    %2205 = vmatprep.subr.bf16.mxu0 0
    %2206 = vmatpush1.bf16.xpose.msra.mxu0 0
    %2207 = vmatprep.subr.bf16.mxu0 0
    %2208 = vmatpush1.bf16.xpose.msra.mxu0 0
    %2209 = vmatprep.subr.bf16.mxu0 0
    %2210 = vmatpush1.bf16.xpose.msra.mxu0 0
    %2211 = vmatprep.subr.bf16.mxu0 0
    %2212 = vmatpush1.bf16.xpose.msra.mxu0 0
    %2213 = vmatprep.subr.bf16.mxu0 0
    %2214 = vmatpush1.bf16.xpose.msra.mxu0 0
    %2215 = vmatprep.subr.bf16.mxu0 0
    %2216 = vmatpush1.bf16.xpose.msra.mxu0 0
    %2217 = vmatprep.subr.bf16.mxu0 0
    %2218 = vmatpush1.bf16.xpose.msra.mxu0 0
    %2219 = vmatprep.subr.bf16.mxu0 0
    %2220 = vmatpush1.bf16.xpose.msra.mxu0 0
    %2221 = vmatprep.subr.bf16.mxu0 0
    %2222 = vmatpush1.bf16.xpose.msra.mxu0 0
    %2223 = vmatprep.subr.bf16.mxu0 0
    %2224 = vmatpush1.bf16.xpose.msra.mxu0 0
    %2225 = vmatprep.subr.bf16.mxu0 0
    %2226 = vmatpush1.bf16.xpose.msra.mxu0 0
    %2227 = vmatprep.subr.bf16.mxu0 0
    %2228 = vmatpush1.bf16.xpose.msra.mxu0 0
    %2229 = vmatprep.mubr.bf16.mxu0 0
    %2230 = vmatmul.mubr.bf16.gmra.mrb[0].mxu0 %v2192
    %v2231 = vpop.f32.mrb[0].mxu0
    %v2232 = vadd.f32 0.0, %v2231
    %v2233 = vpop.f32.mrb[0].mxu0
    %v2234 = vpop.f32.mrb[0].mxu0
    %v2235 = vpop.f32.mrb[0].mxu0
    %2236 = vdwg.mxu0
    %v2237 = vsel %vm497, %v2232, -1e+09
    %v2238 = vsel %vm450, %v2237, -inf
    %2239 = vmax.xlane.f32.xlu0 %v2238
    %v2240 = vpop.xlane.xlu0 %2239
    %v2241 = vsub.f32 %v2237, %v2240
    %v2242 = vmul.f32 %v2241, 1.442695
    %v2243 = vpow.pop %v2242
    %v2244 = vsel %vm450, %v2243, 0.0
    %2245 = vadd.xlane.f32.xlu0 %v2244
    %v2246 = vpop.xlane.xlu0 %2245
    %v2247 = vrcp.pop %v2246
    %v2248 = vmul.f32 %v2243, %v2247
    %v2249 = vpack.c.bf16 %v2248, %v2248
    %2250 = vrot.lane.b32.xlu0 %v1854, 40
    %v2251 = vpop.permute.xlu0 %2250
    %v2253 = vsel %vm450, %v2249, 0
    %v2256 = vsel %vm516, %v2251, 0
    %2258 = vmatprep.subr.bf16.mxu0 0
    %2259 = vmatpush1.bf16.msra.mxu0 %v2256
    %2260 = vmatprep.subr.bf16.mxu0 0
    %2261 = vmatpush1.bf16.msra.mxu0 0
    %2262 = vmatprep.subr.bf16.mxu0 0
    %2263 = vmatpush1.bf16.msra.mxu0 0
    %2264 = vmatprep.subr.bf16.mxu0 0
    %2265 = vmatpush1.bf16.msra.mxu0 0
    %2266 = vmatprep.subr.bf16.mxu0 0
    %2267 = vmatpush1.bf16.msra.mxu0 0
    %2268 = vmatprep.subr.bf16.mxu0 0
    %2269 = vmatpush1.bf16.msra.mxu0 0
    %2270 = vmatprep.subr.bf16.mxu0 0
    %2271 = vmatpush1.bf16.msra.mxu0 0
    %2272 = vmatprep.subr.bf16.mxu0 0
    %2273 = vmatpush1.bf16.msra.mxu0 0
    %2274 = vmatprep.subr.bf16.mxu0 0
    %2275 = vmatpush1.bf16.msra.mxu0 0
    %2276 = vmatprep.subr.bf16.mxu0 0
    %2277 = vmatpush1.bf16.msra.mxu0 0
    %2278 = vmatprep.subr.bf16.mxu0 0
    %2279 = vmatpush1.bf16.msra.mxu0 0
    %2280 = vmatprep.subr.bf16.mxu0 0
    %2281 = vmatpush1.bf16.msra.mxu0 0
    %2282 = vmatprep.subr.bf16.mxu0 0
    %2283 = vmatpush1.bf16.msra.mxu0 0
    %2284 = vmatprep.subr.bf16.mxu0 0
    %2285 = vmatpush1.bf16.msra.mxu0 0
    %2286 = vmatprep.subr.bf16.mxu0 0
    %2287 = vmatpush1.bf16.msra.mxu0 0
    %2288 = vmatprep.subr.bf16.mxu0 0
    %2289 = vmatpush1.bf16.msra.mxu0 0
    %2290 = vmatprep.mubr.bf16.mxu0 0
    %2291 = vmatmul.mubr.bf16.gmra.mrb[0].mxu0 %v2253
    %v2292 = vpop.f32.mrb[0].mxu0
    %v2293 = vadd.f32 0.0, %v2292
    %v2294 = vpop.f32.mrb[0].mxu0
    %v2295 = vpop.f32.mrb[0].mxu0
    %v2296 = vpop.f32.mrb[0].mxu0
    %2297 = vdwg.mxu0
    %2299 = vrot.lane.b32.xlu0 %v2026, 8
    %v2300 = vpop.permute.xlu0 %2299
    %2303 = vrot.lane.b32.xlu0 %v2137, 16
    %v2304 = vpop.permute.xlu0 %2303
    %2307 = vrot.lane.b32.xlu0 %v2248, 24
    %v2308 = vpop.permute.xlu0 %2307
    %v2310 = vsel %vm450, %v1915, %v2300
    %v2311 = vsel %vm85, %v2310, %v2304
    %v2312 = vsel %vm907, %v2311, %v2308
    %2313 = vst.msk [vmem:[#allocation6] sm:$0xff] %vm394, %v2312
    %2315 = vrot.lane.b32.xlu0 %v2071, 8
    %v2316 = vpop.permute.xlu0 %2315
    %2319 = vrot.lane.b32.xlu0 %v2182, 16
    %v2320 = vpop.permute.xlu0 %2319
    %2323 = vrot.lane.b32.xlu0 %v2293, 24
    %v2324 = vpop.permute.xlu0 %2323
    %v2326 = vsel %vm450, %v1960, %v2316
    %v2327 = vsel %vm85, %v2326, %v2320
    %v2328 = vsel %vm907, %v2327, %v2324
    %v2329 = vld [vmem:[%s909] sm:$0x1]
    %v2331 = vlaneseq
    %v2332 = vshrl.u32 %v2331, 7
    %v2333 = vsub.s32 0, %v2332
    %v2334 = vrot.slane %v2329, %v2333
    %v2336 = vpack.c.bf16 %v1851, %v1851
    %2338 = vrot.lane.b32.xlu0 %v2336, 96
    %v2339 = vpop.permute.xlu0 %2338
    %v2341 = vsel %vm450, %v2336, 0
    %v2344 = vsel %vm450, %v2339, 0
    %2346 = vmatprep.subr.bf16.mxu0 0
    %2347 = vmatpush1.bf16.xpose.msra.mxu0 %v2344
    %2348 = vmatprep.subr.bf16.mxu0 0
    %2349 = vmatpush1.bf16.xpose.msra.mxu0 0
    %2350 = vmatprep.subr.bf16.mxu0 0
    %2351 = vmatpush1.bf16.xpose.msra.mxu0 0
    %2352 = vmatprep.subr.bf16.mxu0 0
    %2353 = vmatpush1.bf16.xpose.msra.mxu0 0
    %2354 = vmatprep.subr.bf16.mxu0 0
    %2355 = vmatpush1.bf16.xpose.msra.mxu0 0
    %2356 = vmatprep.subr.bf16.mxu0 0
    %2357 = vmatpush1.bf16.xpose.msra.mxu0 0
    %2358 = vmatprep.subr.bf16.mxu0 0
    %2359 = vmatpush1.bf16.xpose.msra.mxu0 0
    %2360 = vmatprep.subr.bf16.mxu0 0
    %2361 = vmatpush1.bf16.xpose.msra.mxu0 0
    %2362 = vmatprep.subr.bf16.mxu0 0
    %2363 = vmatpush1.bf16.xpose.msra.mxu0 0
    %2364 = vmatprep.subr.bf16.mxu0 0
    %2365 = vmatpush1.bf16.xpose.msra.mxu0 0
    %2366 = vmatprep.subr.bf16.mxu0 0
    %2367 = vmatpush1.bf16.xpose.msra.mxu0 0
    %2368 = vmatprep.subr.bf16.mxu0 0
    %2369 = vmatpush1.bf16.xpose.msra.mxu0 0
    %2370 = vmatprep.subr.bf16.mxu0 0
    %2371 = vmatpush1.bf16.xpose.msra.mxu0 0
    %2372 = vmatprep.subr.bf16.mxu0 0
    %2373 = vmatpush1.bf16.xpose.msra.mxu0 0
    %2374 = vmatprep.subr.bf16.mxu0 0
    %2375 = vmatpush1.bf16.xpose.msra.mxu0 0
    %2376 = vmatprep.subr.bf16.mxu0 0
    %2377 = vmatpush1.bf16.xpose.msra.mxu0 0
    %2378 = vmatprep.mubr.bf16.mxu0 0
    %2379 = vmatmul.mubr.bf16.gmra.mrb[0].mxu0 %v2341
    %v2380 = vpop.f32.mrb[0].mxu0
    %v2381 = vadd.f32 0.0, %v2380
    %v2382 = vpop.f32.mrb[0].mxu0
    %v2383 = vpop.f32.mrb[0].mxu0
    %v2384 = vpop.f32.mrb[0].mxu0
    %2385 = vdwg.mxu0
    %vm2386 = vcmp.gt.f32.partialorder %v2334, 0.0
    %v2387 = vsel %vm2386, %v2381, -1e+09
    %v2388 = vsel %vm450, %v2387, -inf
    %2389 = vmax.xlane.f32.xlu0 %v2388
    %v2390 = vpop.xlane.xlu0 %2389
    %v2391 = vsub.f32 %v2387, %v2390
    %v2392 = vmul.f32 %v2391, 1.442695
    %v2393 = vpow.pop %v2392
    %v2394 = vsel %vm450, %v2393, 0.0
    %2395 = vadd.xlane.f32.xlu0 %v2394
    %v2396 = vpop.xlane.xlu0 %2395
    %v2397 = vrcp.pop %v2396
    %v2398 = vmul.f32 %v2393, %v2397
    %v2399 = vpack.c.bf16 %v2398, %v2398
    %2400 = vrot.lane.b32.xlu0 %v2336, 64
    %v2401 = vpop.permute.xlu0 %2400
    %v2403 = vsel %vm450, %v2399, 0
    %v2406 = vsel %vm516, %v2401, 0
    %2408 = vmatprep.subr.bf16.mxu0 0
    %2409 = vmatpush1.bf16.msra.mxu0 %v2406
    %2410 = vmatprep.subr.bf16.mxu0 0
    %2411 = vmatpush1.bf16.msra.mxu0 0
    %2412 = vmatprep.subr.bf16.mxu0 0
    %2413 = vmatpush1.bf16.msra.mxu0 0
    %2414 = vmatprep.subr.bf16.mxu0 0
    %2415 = vmatpush1.bf16.msra.mxu0 0
    %2416 = vmatprep.subr.bf16.mxu0 0
    %2417 = vmatpush1.bf16.msra.mxu0 0
    %2418 = vmatprep.subr.bf16.mxu0 0
    %2419 = vmatpush1.bf16.msra.mxu0 0
    %2420 = vmatprep.subr.bf16.mxu0 0
    %2421 = vmatpush1.bf16.msra.mxu0 0
    %2422 = vmatprep.subr.bf16.mxu0 0
    %2423 = vmatpush1.bf16.msra.mxu0 0
    %2424 = vmatprep.subr.bf16.mxu0 0
    %2425 = vmatpush1.bf16.msra.mxu0 0
    %2426 = vmatprep.subr.bf16.mxu0 0
    %2427 = vmatpush1.bf16.msra.mxu0 0
    %2428 = vmatprep.subr.bf16.mxu0 0
    %2429 = vmatpush1.bf16.msra.mxu0 0
    %2430 = vmatprep.subr.bf16.mxu0 0
    %2431 = vmatpush1.bf16.msra.mxu0 0
    %2432 = vmatprep.subr.bf16.mxu0 0
    %2433 = vmatpush1.bf16.msra.mxu0 0
    %2434 = vmatprep.subr.bf16.mxu0 0
    %2435 = vmatpush1.bf16.msra.mxu0 0
    %2436 = vmatprep.subr.bf16.mxu0 0
    %2437 = vmatpush1.bf16.msra.mxu0 0
    %2438 = vmatprep.subr.bf16.mxu0 0
    %2439 = vmatpush1.bf16.msra.mxu0 0
    %2440 = vmatprep.mubr.bf16.mxu0 0
    %2441 = vmatmul.mubr.bf16.gmra.mrb[0].mxu0 %v2403
    %v2442 = vpop.f32.mrb[0].mxu0
    %v2443 = vadd.f32 0.0, %v2442
    %v2444 = vpop.f32.mrb[0].mxu0
    %v2445 = vpop.f32.mrb[0].mxu0
    %v2446 = vpop.f32.mrb[0].mxu0
    %2447 = vdwg.mxu0
    %2448 = vrot.lane.b32.xlu0 %v2336, 120
    %v2449 = vpop.permute.xlu0 %2448
    %2450 = vrot.lane.b32.xlu0 %v2336, 88
    %v2451 = vpop.permute.xlu0 %2450
    %v2453 = vsel %vm450, %v2449, 0
    %v2456 = vsel %vm450, %v2451, 0
    %2458 = vmatprep.subr.bf16.mxu0 0
    %2459 = vmatpush1.bf16.xpose.msra.mxu0 %v2456
    %2460 = vmatprep.subr.bf16.mxu0 0
    %2461 = vmatpush1.bf16.xpose.msra.mxu0 0
    %2462 = vmatprep.subr.bf16.mxu0 0
    %2463 = vmatpush1.bf16.xpose.msra.mxu0 0
    %2464 = vmatprep.subr.bf16.mxu0 0
    %2465 = vmatpush1.bf16.xpose.msra.mxu0 0
    %2466 = vmatprep.subr.bf16.mxu0 0
    %2467 = vmatpush1.bf16.xpose.msra.mxu0 0
    %2468 = vmatprep.subr.bf16.mxu0 0
    %2469 = vmatpush1.bf16.xpose.msra.mxu0 0
    %2470 = vmatprep.subr.bf16.mxu0 0
    %2471 = vmatpush1.bf16.xpose.msra.mxu0 0
    %2472 = vmatprep.subr.bf16.mxu0 0
    %2473 = vmatpush1.bf16.xpose.msra.mxu0 0
    %2474 = vmatprep.subr.bf16.mxu0 0
    %2475 = vmatpush1.bf16.xpose.msra.mxu0 0
    %2476 = vmatprep.subr.bf16.mxu0 0
    %2477 = vmatpush1.bf16.xpose.msra.mxu0 0
    %2478 = vmatprep.subr.bf16.mxu0 0
    %2479 = vmatpush1.bf16.xpose.msra.mxu0 0
    %2480 = vmatprep.subr.bf16.mxu0 0
    %2481 = vmatpush1.bf16.xpose.msra.mxu0 0
    %2482 = vmatprep.subr.bf16.mxu0 0
    %2483 = vmatpush1.bf16.xpose.msra.mxu0 0
    %2484 = vmatprep.subr.bf16.mxu0 0
    %2485 = vmatpush1.bf16.xpose.msra.mxu0 0
    %2486 = vmatprep.subr.bf16.mxu0 0
    %2487 = vmatpush1.bf16.xpose.msra.mxu0 0
    %2488 = vmatprep.subr.bf16.mxu0 0
    %2489 = vmatpush1.bf16.xpose.msra.mxu0 0
    %2490 = vmatprep.mubr.bf16.mxu0 0
    %2491 = vmatmul.mubr.bf16.gmra.mrb[0].mxu0 %v2453
    %v2492 = vpop.f32.mrb[0].mxu0
    %v2493 = vadd.f32 0.0, %v2492
    %v2494 = vpop.f32.mrb[0].mxu0
    %v2495 = vpop.f32.mrb[0].mxu0
    %v2496 = vpop.f32.mrb[0].mxu0
    %2497 = vdwg.mxu0
    %v2498 = vsel %vm2386, %v2493, -1e+09
    %v2499 = vsel %vm450, %v2498, -inf
    %2500 = vmax.xlane.f32.xlu0 %v2499
    %v2501 = vpop.xlane.xlu0 %2500
    %v2502 = vsub.f32 %v2498, %v2501
    %v2503 = vmul.f32 %v2502, 1.442695
    %v2504 = vpow.pop %v2503
    %v2505 = vsel %vm450, %v2504, 0.0
    %2506 = vadd.xlane.f32.xlu0 %v2505
    %v2507 = vpop.xlane.xlu0 %2506
    %v2508 = vrcp.pop %v2507
    %v2509 = vmul.f32 %v2504, %v2508
    %v2510 = vpack.c.bf16 %v2509, %v2509
    %2511 = vrot.lane.b32.xlu0 %v2336, 56
    %v2512 = vpop.permute.xlu0 %2511
    %v2514 = vsel %vm450, %v2510, 0
    %v2517 = vsel %vm516, %v2512, 0
    %2519 = vmatprep.subr.bf16.mxu0 0
    %2520 = vmatpush1.bf16.msra.mxu0 %v2517
    %2521 = vmatprep.subr.bf16.mxu0 0
    %2522 = vmatpush1.bf16.msra.mxu0 0
    %2523 = vmatprep.subr.bf16.mxu0 0
    %2524 = vmatpush1.bf16.msra.mxu0 0
    %2525 = vmatprep.subr.bf16.mxu0 0
    %2526 = vmatpush1.bf16.msra.mxu0 0
    %2527 = vmatprep.subr.bf16.mxu0 0
    %2528 = vmatpush1.bf16.msra.mxu0 0
    %2529 = vmatprep.subr.bf16.mxu0 0
    %2530 = vmatpush1.bf16.msra.mxu0 0
    %2531 = vmatprep.subr.bf16.mxu0 0
    %2532 = vmatpush1.bf16.msra.mxu0 0
    %2533 = vmatprep.subr.bf16.mxu0 0
    %2534 = vmatpush1.bf16.msra.mxu0 0
    %2535 = vmatprep.subr.bf16.mxu0 0
    %2536 = vmatpush1.bf16.msra.mxu0 0
    %2537 = vmatprep.subr.bf16.mxu0 0
    %2538 = vmatpush1.bf16.msra.mxu0 0
    %2539 = vmatprep.subr.bf16.mxu0 0
    %2540 = vmatpush1.bf16.msra.mxu0 0
    %2541 = vmatprep.subr.bf16.mxu0 0
    %2542 = vmatpush1.bf16.msra.mxu0 0
    %2543 = vmatprep.subr.bf16.mxu0 0
    %2544 = vmatpush1.bf16.msra.mxu0 0
    %2545 = vmatprep.subr.bf16.mxu0 0
    %2546 = vmatpush1.bf16.msra.mxu0 0
    %2547 = vmatprep.subr.bf16.mxu0 0
    %2548 = vmatpush1.bf16.msra.mxu0 0
    %2549 = vmatprep.subr.bf16.mxu0 0
    %2550 = vmatpush1.bf16.msra.mxu0 0
    %2551 = vmatprep.mubr.bf16.mxu0 0
    %2552 = vmatmul.mubr.bf16.gmra.mrb[0].mxu0 %v2514
    %v2553 = vpop.f32.mrb[0].mxu0
    %v2554 = vadd.f32 0.0, %v2553
    %v2555 = vpop.f32.mrb[0].mxu0
    %v2556 = vpop.f32.mrb[0].mxu0
    %v2557 = vpop.f32.mrb[0].mxu0
    %2558 = vdwg.mxu0
    %2559 = vrot.lane.b32.xlu0 %v2336, 112
    %v2560 = vpop.permute.xlu0 %2559
    %2561 = vrot.lane.b32.xlu0 %v2336, 80
    %v2562 = vpop.permute.xlu0 %2561
    %v2564 = vsel %vm450, %v2560, 0
    %v2567 = vsel %vm450, %v2562, 0
    %2569 = vmatprep.subr.bf16.mxu0 0
    %2570 = vmatpush1.bf16.xpose.msra.mxu0 %v2567
    %2571 = vmatprep.subr.bf16.mxu0 0
    %2572 = vmatpush1.bf16.xpose.msra.mxu0 0
    %2573 = vmatprep.subr.bf16.mxu0 0
    %2574 = vmatpush1.bf16.xpose.msra.mxu0 0
    %2575 = vmatprep.subr.bf16.mxu0 0
    %2576 = vmatpush1.bf16.xpose.msra.mxu0 0
    %2577 = vmatprep.subr.bf16.mxu0 0
    %2578 = vmatpush1.bf16.xpose.msra.mxu0 0
    %2579 = vmatprep.subr.bf16.mxu0 0
    %2580 = vmatpush1.bf16.xpose.msra.mxu0 0
    %2581 = vmatprep.subr.bf16.mxu0 0
    %2582 = vmatpush1.bf16.xpose.msra.mxu0 0
    %2583 = vmatprep.subr.bf16.mxu0 0
    %2584 = vmatpush1.bf16.xpose.msra.mxu0 0
    %2585 = vmatprep.subr.bf16.mxu0 0
    %2586 = vmatpush1.bf16.xpose.msra.mxu0 0
    %2587 = vmatprep.subr.bf16.mxu0 0
    %2588 = vmatpush1.bf16.xpose.msra.mxu0 0
    %2589 = vmatprep.subr.bf16.mxu0 0
    %2590 = vmatpush1.bf16.xpose.msra.mxu0 0
    %2591 = vmatprep.subr.bf16.mxu0 0
    %2592 = vmatpush1.bf16.xpose.msra.mxu0 0
    %2593 = vmatprep.subr.bf16.mxu0 0
    %2594 = vmatpush1.bf16.xpose.msra.mxu0 0
    %2595 = vmatprep.subr.bf16.mxu0 0
    %2596 = vmatpush1.bf16.xpose.msra.mxu0 0
    %2597 = vmatprep.subr.bf16.mxu0 0
    %2598 = vmatpush1.bf16.xpose.msra.mxu0 0
    %2599 = vmatprep.subr.bf16.mxu0 0
    %2600 = vmatpush1.bf16.xpose.msra.mxu0 0
    %2601 = vmatprep.mubr.bf16.mxu0 0
    %2602 = vmatmul.mubr.bf16.gmra.mrb[0].mxu0 %v2564
    %v2603 = vpop.f32.mrb[0].mxu0
    %v2604 = vadd.f32 0.0, %v2603
    %v2605 = vpop.f32.mrb[0].mxu0
    %v2606 = vpop.f32.mrb[0].mxu0
    %v2607 = vpop.f32.mrb[0].mxu0
    %2608 = vdwg.mxu0
    %v2609 = vsel %vm2386, %v2604, -1e+09
    %v2610 = vsel %vm450, %v2609, -inf
    %2611 = vmax.xlane.f32.xlu0 %v2610
    %v2612 = vpop.xlane.xlu0 %2611
    %v2613 = vsub.f32 %v2609, %v2612
    %v2614 = vmul.f32 %v2613, 1.442695
    %v2615 = vpow.pop %v2614
    %v2616 = vsel %vm450, %v2615, 0.0
    %2617 = vadd.xlane.f32.xlu0 %v2616
    %v2618 = vpop.xlane.xlu0 %2617
    %v2619 = vrcp.pop %v2618
    %v2620 = vmul.f32 %v2615, %v2619
    %v2621 = vpack.c.bf16 %v2620, %v2620
    %2622 = vrot.lane.b32.xlu0 %v2336, 48
    %v2623 = vpop.permute.xlu0 %2622
    %v2625 = vsel %vm450, %v2621, 0
    %v2628 = vsel %vm516, %v2623, 0
    %2630 = vmatprep.subr.bf16.mxu0 0
    %2631 = vmatpush1.bf16.msra.mxu0 %v2628
    %2632 = vmatprep.subr.bf16.mxu0 0
    %2633 = vmatpush1.bf16.msra.mxu0 0
    %2634 = vmatprep.subr.bf16.mxu0 0
    %2635 = vmatpush1.bf16.msra.mxu0 0
    %2636 = vmatprep.subr.bf16.mxu0 0
    %2637 = vmatpush1.bf16.msra.mxu0 0
    %2638 = vmatprep.subr.bf16.mxu0 0
    %2639 = vmatpush1.bf16.msra.mxu0 0
    %2640 = vmatprep.subr.bf16.mxu0 0
    %2641 = vmatpush1.bf16.msra.mxu0 0
    %2642 = vmatprep.subr.bf16.mxu0 0
    %2643 = vmatpush1.bf16.msra.mxu0 0
    %2644 = vmatprep.subr.bf16.mxu0 0
    %2645 = vmatpush1.bf16.msra.mxu0 0
    %2646 = vmatprep.subr.bf16.mxu0 0
    %2647 = vmatpush1.bf16.msra.mxu0 0
    %2648 = vmatprep.subr.bf16.mxu0 0
    %2649 = vmatpush1.bf16.msra.mxu0 0
    %2650 = vmatprep.subr.bf16.mxu0 0
    %2651 = vmatpush1.bf16.msra.mxu0 0
    %2652 = vmatprep.subr.bf16.mxu0 0
    %2653 = vmatpush1.bf16.msra.mxu0 0
    %2654 = vmatprep.subr.bf16.mxu0 0
    %2655 = vmatpush1.bf16.msra.mxu0 0
    %2656 = vmatprep.subr.bf16.mxu0 0
    %2657 = vmatpush1.bf16.msra.mxu0 0
    %2658 = vmatprep.subr.bf16.mxu0 0
    %2659 = vmatpush1.bf16.msra.mxu0 0
    %2660 = vmatprep.subr.bf16.mxu0 0
    %2661 = vmatpush1.bf16.msra.mxu0 0
    %2662 = vmatprep.mubr.bf16.mxu0 0
    %2663 = vmatmul.mubr.bf16.gmra.mrb[0].mxu0 %v2625
    %v2664 = vpop.f32.mrb[0].mxu0
    %v2665 = vadd.f32 0.0, %v2664
    %v2666 = vpop.f32.mrb[0].mxu0
    %v2667 = vpop.f32.mrb[0].mxu0
    %v2668 = vpop.f32.mrb[0].mxu0
    %2669 = vdwg.mxu0
    %2670 = vrot.lane.b32.xlu0 %v2336, 104
    %v2671 = vpop.permute.xlu0 %2670
    %2672 = vrot.lane.b32.xlu0 %v2336, 72
    %v2673 = vpop.permute.xlu0 %2672
    %v2675 = vsel %vm450, %v2671, 0
    %v2678 = vsel %vm450, %v2673, 0
    %2680 = vmatprep.subr.bf16.mxu0 0
    %2681 = vmatpush1.bf16.xpose.msra.mxu0 %v2678
    %2682 = vmatprep.subr.bf16.mxu0 0
    %2683 = vmatpush1.bf16.xpose.msra.mxu0 0
    %2684 = vmatprep.subr.bf16.mxu0 0
    %2685 = vmatpush1.bf16.xpose.msra.mxu0 0
    %2686 = vmatprep.subr.bf16.mxu0 0
    %2687 = vmatpush1.bf16.xpose.msra.mxu0 0
    %2688 = vmatprep.subr.bf16.mxu0 0
    %2689 = vmatpush1.bf16.xpose.msra.mxu0 0
    %2690 = vmatprep.subr.bf16.mxu0 0
    %2691 = vmatpush1.bf16.xpose.msra.mxu0 0
    %2692 = vmatprep.subr.bf16.mxu0 0
    %2693 = vmatpush1.bf16.xpose.msra.mxu0 0
    %2694 = vmatprep.subr.bf16.mxu0 0
    %2695 = vmatpush1.bf16.xpose.msra.mxu0 0
    %2696 = vmatprep.subr.bf16.mxu0 0
    %2697 = vmatpush1.bf16.xpose.msra.mxu0 0
    %2698 = vmatprep.subr.bf16.mxu0 0
    %2699 = vmatpush1.bf16.xpose.msra.mxu0 0
    %2700 = vmatprep.subr.bf16.mxu0 0
    %2701 = vmatpush1.bf16.xpose.msra.mxu0 0
    %2702 = vmatprep.subr.bf16.mxu0 0
    %2703 = vmatpush1.bf16.xpose.msra.mxu0 0
    %2704 = vmatprep.subr.bf16.mxu0 0
    %2705 = vmatpush1.bf16.xpose.msra.mxu0 0
    %2706 = vmatprep.subr.bf16.mxu0 0
    %2707 = vmatpush1.bf16.xpose.msra.mxu0 0
    %2708 = vmatprep.subr.bf16.mxu0 0
    %2709 = vmatpush1.bf16.xpose.msra.mxu0 0
    %2710 = vmatprep.subr.bf16.mxu0 0
    %2711 = vmatpush1.bf16.xpose.msra.mxu0 0
    %2712 = vmatprep.mubr.bf16.mxu0 0
    %2713 = vmatmul.mubr.bf16.gmra.mrb[0].mxu0 %v2675
    %v2714 = vpop.f32.mrb[0].mxu0
    %v2715 = vadd.f32 0.0, %v2714
    %v2716 = vpop.f32.mrb[0].mxu0
    %v2717 = vpop.f32.mrb[0].mxu0
    %v2718 = vpop.f32.mrb[0].mxu0
    %2719 = vdwg.mxu0
    %v2720 = vsel %vm2386, %v2715, -1e+09
    %v2721 = vsel %vm450, %v2720, -inf
    %2722 = vmax.xlane.f32.xlu0 %v2721
    %v2723 = vpop.xlane.xlu0 %2722
    %v2724 = vsub.f32 %v2720, %v2723
    %v2725 = vmul.f32 %v2724, 1.442695
    %v2726 = vpow.pop %v2725
    %v2727 = vsel %vm450, %v2726, 0.0
    %2728 = vadd.xlane.f32.xlu0 %v2727
    %v2729 = vpop.xlane.xlu0 %2728
    %v2730 = vrcp.pop %v2729
    %v2731 = vmul.f32 %v2726, %v2730
    %v2732 = vpack.c.bf16 %v2731, %v2731
    %2733 = vrot.lane.b32.xlu0 %v2336, 40
    %v2734 = vpop.permute.xlu0 %2733
    %v2736 = vsel %vm450, %v2732, 0
    %v2739 = vsel %vm516, %v2734, 0
    %2741 = vmatprep.subr.bf16.mxu0 0
    %2742 = vmatpush1.bf16.msra.mxu0 %v2739
    %2743 = vmatprep.subr.bf16.mxu0 0
    %2744 = vmatpush1.bf16.msra.mxu0 0
    %2745 = vmatprep.subr.bf16.mxu0 0
    %2746 = vmatpush1.bf16.msra.mxu0 0
    %2747 = vmatprep.subr.bf16.mxu0 0
    %2748 = vmatpush1.bf16.msra.mxu0 0
    %2749 = vmatprep.subr.bf16.mxu0 0
    %2750 = vmatpush1.bf16.msra.mxu0 0
    %2751 = vmatprep.subr.bf16.mxu0 0
    %2752 = vmatpush1.bf16.msra.mxu0 0
    %2753 = vmatprep.subr.bf16.mxu0 0
    %2754 = vmatpush1.bf16.msra.mxu0 0
    %2755 = vmatprep.subr.bf16.mxu0 0
    %2756 = vmatpush1.bf16.msra.mxu0 0
    %2757 = vmatprep.subr.bf16.mxu0 0
    %2758 = vmatpush1.bf16.msra.mxu0 0
    %2759 = vmatprep.subr.bf16.mxu0 0
    %2760 = vmatpush1.bf16.msra.mxu0 0
    %2761 = vmatprep.subr.bf16.mxu0 0
    %2762 = vmatpush1.bf16.msra.mxu0 0
    %2763 = vmatprep.subr.bf16.mxu0 0
    %2764 = vmatpush1.bf16.msra.mxu0 0
    %2765 = vmatprep.subr.bf16.mxu0 0
    %2766 = vmatpush1.bf16.msra.mxu0 0
    %2767 = vmatprep.subr.bf16.mxu0 0
    %2768 = vmatpush1.bf16.msra.mxu0 0
    %2769 = vmatprep.subr.bf16.mxu0 0
    %2770 = vmatpush1.bf16.msra.mxu0 0
    %2771 = vmatprep.subr.bf16.mxu0 0
    %2772 = vmatpush1.bf16.msra.mxu0 0
    %2773 = vmatprep.mubr.bf16.mxu0 0
    %2774 = vmatmul.mubr.bf16.gmra.mrb[0].mxu0 %v2736
    %v2775 = vpop.f32.mrb[0].mxu0
    %v2776 = vadd.f32 0.0, %v2775
    %v2777 = vpop.f32.mrb[0].mxu0
    %v2778 = vpop.f32.mrb[0].mxu0
    %v2779 = vpop.f32.mrb[0].mxu0
    %2780 = vdwg.mxu0
    %2782 = vrot.lane.b32.xlu0 %v2509, 8
    %v2783 = vpop.permute.xlu0 %2782
    %2786 = vrot.lane.b32.xlu0 %v2620, 16
    %v2787 = vpop.permute.xlu0 %2786
    %2790 = vrot.lane.b32.xlu0 %v2731, 24
    %v2791 = vpop.permute.xlu0 %2790
    %v2793 = vsel %vm450, %v2398, %v2783
    %v2794 = vsel %vm85, %v2793, %v2787
    %v2795 = vsel %vm907, %v2794, %v2791
    %s2796 = scalar_lea.vmem [#allocation6], 8
    %2797 = vst.msk [vmem:[%s2796] sm:$0xff] %vm394, %v2795
    %2799 = vrot.lane.b32.xlu0 %v2554, 8
    %v2800 = vpop.permute.xlu0 %2799
    %2803 = vrot.lane.b32.xlu0 %v2665, 16
    %v2804 = vpop.permute.xlu0 %2803
    %2807 = vrot.lane.b32.xlu0 %v2776, 24
    %v2808 = vpop.permute.xlu0 %2807
    %v2810 = vsel %vm450, %v2443, %v2800
    %v2811 = vsel %vm85, %v2810, %v2804
    %v2812 = vsel %vm907, %v2811, %v2808
    %s2813 = scalar_lea.vmem %s9, 16
    %v2814 = vld [vmem:[%s2813] sm:$0xf]
    %v2815 = vld [vmem:[%s2813 + $0x4] sm:$0xf]
    %v2816 = vld [vmem:[%s2813 + $0x8] sm:$0xf]
    %v2817 = vld [vmem:[%s2813 + $0xc] sm:$0xf]
    %v2818 = vpack.c.bf16 %v2812, %v2328
    %s2819 = scalar_lea.vmem %s10, 16
    %v2820 = vld [vmem:[%s2819] sm:$0xf]
    %v2821 = vld [vmem:[%s2819 + $0x4] sm:$0xf]
    %v2822 = vld [vmem:[%s2819 + $0x8] sm:$0xf]
    %v2823 = vld [vmem:[%s2819 + $0xc] sm:$0xf]
    %v2828 = vunpack.c.l.b16 %v2820
    %v2829 = vunpack.c.l.b16 %v2821
    %v2830 = vunpack.c.l.b16 %v2822
    %v2831 = vunpack.c.l.b16 %v2823
    %v2832 = vpack.c.b16 %v2829, %v2828
    %v2833 = vpack.c.b16 %v2831, %v2830
    %v2837 = vsel %vm394, %v2818, 0
    %2839 = vmatprep.subr.bf16.mxu0 0
    %2840 = vmatpush1.bf16.msra.mxu0 %v2832
    %2841 = vmatprep.subr.bf16.mxu0 0
    %2842 = vmatpush1.bf16.msra.mxu0 %v2833
    %2843 = vmatprep.subr.bf16.mxu0 0
    %2844 = vmatpush1.bf16.msra.mxu0 0
    %2845 = vmatprep.subr.bf16.mxu0 0
    %2846 = vmatpush1.bf16.msra.mxu0 0
    %2847 = vmatprep.subr.bf16.mxu0 0
    %2848 = vmatpush1.bf16.msra.mxu0 0
    %2849 = vmatprep.subr.bf16.mxu0 0
    %2850 = vmatpush1.bf16.msra.mxu0 0
    %2851 = vmatprep.subr.bf16.mxu0 0
    %2852 = vmatpush1.bf16.msra.mxu0 0
    %2853 = vmatprep.subr.bf16.mxu0 0
    %2854 = vmatpush1.bf16.msra.mxu0 0
    %2855 = vmatprep.subr.bf16.mxu0 0
    %2856 = vmatpush1.bf16.msra.mxu0 0
    %2857 = vmatprep.subr.bf16.mxu0 0
    %2858 = vmatpush1.bf16.msra.mxu0 0
    %2859 = vmatprep.subr.bf16.mxu0 0
    %2860 = vmatpush1.bf16.msra.mxu0 0
    %2861 = vmatprep.subr.bf16.mxu0 0
    %2862 = vmatpush1.bf16.msra.mxu0 0
    %2863 = vmatprep.subr.bf16.mxu0 0
    %2864 = vmatpush1.bf16.msra.mxu0 0
    %2865 = vmatprep.subr.bf16.mxu0 0
    %2866 = vmatpush1.bf16.msra.mxu0 0
    %2867 = vmatprep.subr.bf16.mxu0 0
    %2868 = vmatpush1.bf16.msra.mxu0 0
    %2869 = vmatprep.subr.bf16.mxu0 0
    %2870 = vmatpush1.bf16.msra.mxu0 0
    %2871 = vmatprep.mubr.bf16.mxu0 0
    %2872 = vmatmul.mubr.bf16.gmra.mrb[0].mxu0 %v2837
    %v2873 = vpop.f32.mrb[0].mxu0
    %v2874 = vadd.f32 0.0, %v2873
    %v2875 = vpop.f32.mrb[0].mxu0
    %v2876 = vpop.f32.mrb[0].mxu0
    %v2877 = vadd.f32 0.0, %v2876
    %v2878 = vpop.f32.mrb[0].mxu0
    %2879 = vdwg.mxu0
    %v2884 = vunpack.c.l.b16 %v2814
    %v2885 = vunpack.c.l.b16 %v2815
    %v2886 = vunpack.c.l.b16 %v2816
    %v2887 = vunpack.c.l.b16 %v2817
    %v2888 = vpack.c.b16 %v2885, %v2884
    %v2889 = vpack.c.b16 %v2887, %v2886
    %2892 = vmatprep.subr.bf16.mxu0 0
    %2893 = vmatpush1.bf16.msra.mxu0 %v2888
    %2894 = vmatprep.subr.bf16.mxu0 0
    %2895 = vmatpush1.bf16.msra.mxu0 %v2889
    %2896 = vmatprep.subr.bf16.mxu0 0
    %2897 = vmatpush1.bf16.msra.mxu0 0
    %2898 = vmatprep.subr.bf16.mxu0 0
    %2899 = vmatpush1.bf16.msra.mxu0 0
    %2900 = vmatprep.subr.bf16.mxu0 0
    %2901 = vmatpush1.bf16.msra.mxu0 0
    %2902 = vmatprep.subr.bf16.mxu0 0
    %2903 = vmatpush1.bf16.msra.mxu0 0
    %2904 = vmatprep.subr.bf16.mxu0 0
    %2905 = vmatpush1.bf16.msra.mxu0 0
    %2906 = vmatprep.subr.bf16.mxu0 0
    %2907 = vmatpush1.bf16.msra.mxu0 0
    %2908 = vmatprep.subr.bf16.mxu0 0
    %2909 = vmatpush1.bf16.msra.mxu0 0
    %2910 = vmatprep.subr.bf16.mxu0 0
    %2911 = vmatpush1.bf16.msra.mxu0 0
    %2912 = vmatprep.subr.bf16.mxu0 0
    %2913 = vmatpush1.bf16.msra.mxu0 0
    %2914 = vmatprep.subr.bf16.mxu0 0
    %2915 = vmatpush1.bf16.msra.mxu0 0
    %2916 = vmatprep.subr.bf16.mxu0 0
    %2917 = vmatpush1.bf16.msra.mxu0 0
    %2918 = vmatprep.subr.bf16.mxu0 0
    %2919 = vmatpush1.bf16.msra.mxu0 0
    %2920 = vmatprep.subr.bf16.mxu0 0
    %2921 = vmatpush1.bf16.msra.mxu0 0
    %2922 = vmatprep.subr.bf16.mxu0 0
    %2923 = vmatpush1.bf16.msra.mxu0 0
    %2924 = vmatprep.mubr.bf16.mxu0 0
    %2925 = vmatmul.mubr.bf16.gmra.mrb[0].mxu0 %v1811
    %v2926 = vpop.f32.mrb[0].mxu0
    %v2927 = vadd.f32 %v2874, %v2926
    %v2928 = vpop.f32.mrb[0].mxu0
    %v2929 = vpop.f32.mrb[0].mxu0
    %v2930 = vadd.f32 %v2877, %v2929
    %v2931 = vpop.f32.mrb[0].mxu0
    %2932 = vdwg.mxu0
    %s2933 = scalar_lea.vmem %s11, 1
    %v2934 = vld [vmem:[%s2933] sm:$0x1]
    %v2936 = vlaneseq
    %v2937 = vshrl.u32 %v2936, 7
    %v2938 = vsub.s32 0, %v2937
    %v2939 = vrot.slane %v2934, %v2938
    %v2941 = vadd.f32 %v2927, %v2939
    %v2942 = vadd.f32 %v2930, %v2939
    %v2943 = vadd.f32 %v2941, %v1782
    %v2944 = vadd.f32 %v2942, %v1783
    %v2945 = vsel %vm394, %v2943, 0.0
    %2946 = vadd.xlane.f32.xlu0 %v2945
    %v2947 = vpop.xlane.xlu0 %2946
    %v2948 = vsel %vm394, %v2944, 0.0
    %2949 = vadd.xlane.f32.xlu0 %v2948
    %v2950 = vpop.xlane.xlu0 %2949
    %v2951 = vmul.f32 %v2947, %v1512
    %v2952 = vmul.f32 %v2950, %v1512
    %v2953 = vsub.f32 %v2943, %v2951
    %v2954 = vsub.f32 %v2944, %v2952
    %v2955 = vmul.f32 %v2953, %v2953
    %v2956 = vmul.f32 %v2954, %v2954
    %v2957 = vsel %vm394, %v2955, 0.0
    %2958 = vadd.xlane.f32.xlu0 %v2957
    %v2959 = vpop.xlane.xlu0 %2958
    %v2960 = vsel %vm394, %v2956, 0.0
    %2961 = vadd.xlane.f32.xlu0 %v2960
    %v2962 = vpop.xlane.xlu0 %2961
    %v2963 = vmul.f32 %v2959, %v1512
    %v2964 = vmul.f32 %v2962, %v1512
    %v2965 = vadd.f32 %v2963, 1e-05
    %v2966 = vadd.f32 %v2964, 1e-05
    %v2967 = vrsqrt.pop %v2965
    %v2968 = vrsqrt.pop %v2966
    %v2969 = vmul.f32 %v2953, %v2967
    %v2970 = vmul.f32 %v2954, %v2968
    %s2971 = scalar_lea.vmem %s12, 1
    %v2972 = vld [vmem:[%s2971] sm:$0x1]
    %v2974 = vlaneseq
    %v2975 = vshrl.u32 %v2974, 7
    %v2976 = vsub.s32 0, %v2975
    %v2977 = vrot.slane %v2972, %v2976
    %v2979 = vmul.f32 %v2969, %v2977
    %v2980 = vmul.f32 %v2970, %v2977
    %s2981 = scalar_lea.vmem %s13, 1
    %v2982 = vld [vmem:[%s2981] sm:$0x1]
    %v2984 = vlaneseq
    %v2985 = vshrl.u32 %v2984, 7
    %v2986 = vsub.s32 0, %v2985
    %v2987 = vrot.slane %v2982, %v2986
    %v2989 = vadd.f32 %v2979, %v2987
    %v2990 = vadd.f32 %v2980, %v2987
    %v2991 = vpack.c.bf16 %v2990, %v2989
    %s2992 = scalar_lea.vmem %s14, 16
    %v2993 = vld [vmem:[%s2992] sm:$0xf]
    %v2994 = vld [vmem:[%s2992 + $0x4] sm:$0xf]
    %v2995 = vld [vmem:[%s2992 + $0x8] sm:$0xf]
    %v2996 = vld [vmem:[%s2992 + $0xc] sm:$0xf]
    %s2997 = scalar_lea.vmem %s15, 1
    %v2998 = vld [vmem:[%s2997] sm:$0x1]
    %v3000 = vlaneseq
    %v3001 = vshrl.u32 %v3000, 7
    %v3002 = vsub.s32 0, %v3001
    %v3003 = vrot.slane %v2998, %v3002
    %v3009 = vunpack.c.l.b16 %v2993
    %v3010 = vunpack.c.l.b16 %v2994
    %v3011 = vunpack.c.l.b16 %v2995
    %v3012 = vunpack.c.l.b16 %v2996
    %v3013 = vpack.c.b16 %v3010, %v3009
    %v3014 = vpack.c.b16 %v3012, %v3011
    %v3018 = vsel %vm394, %v2991, 0
    %3020 = vmatprep.subr.bf16.mxu0 0
    %3021 = vmatpush1.bf16.msra.mxu0 %v3013
    %3022 = vmatprep.subr.bf16.mxu0 0
    %3023 = vmatpush1.bf16.msra.mxu0 %v3014
    %3024 = vmatprep.subr.bf16.mxu0 0
    %3025 = vmatpush1.bf16.msra.mxu0 0
    %3026 = vmatprep.subr.bf16.mxu0 0
    %3027 = vmatpush1.bf16.msra.mxu0 0
    %3028 = vmatprep.subr.bf16.mxu0 0
    %3029 = vmatpush1.bf16.msra.mxu0 0
    %3030 = vmatprep.subr.bf16.mxu0 0
    %3031 = vmatpush1.bf16.msra.mxu0 0
    %3032 = vmatprep.subr.bf16.mxu0 0
    %3033 = vmatpush1.bf16.msra.mxu0 0
    %3034 = vmatprep.subr.bf16.mxu0 0
    %3035 = vmatpush1.bf16.msra.mxu0 0
    %3036 = vmatprep.subr.bf16.mxu0 0
    %3037 = vmatpush1.bf16.msra.mxu0 0
    %3038 = vmatprep.subr.bf16.mxu0 0
    %3039 = vmatpush1.bf16.msra.mxu0 0
    %3040 = vmatprep.subr.bf16.mxu0 0
    %3041 = vmatpush1.bf16.msra.mxu0 0
    %3042 = vmatprep.subr.bf16.mxu0 0
    %3043 = vmatpush1.bf16.msra.mxu0 0
    %3044 = vmatprep.subr.bf16.mxu0 0
    %3045 = vmatpush1.bf16.msra.mxu0 0
    %3046 = vmatprep.subr.bf16.mxu0 0
    %3047 = vmatpush1.bf16.msra.mxu0 0
    %3048 = vmatprep.subr.bf16.mxu0 0
    %3049 = vmatpush1.bf16.msra.mxu0 0
    %3050 = vmatprep.subr.bf16.mxu0 0
    %3051 = vmatpush1.bf16.msra.mxu0 0
    %3052 = vmatprep.mubr.bf16.mxu0 0
    %3053 = vmatmul.mubr.bf16.gmra.mrb[0].mxu0 %v3018
    %v3054 = vpop.f32.mrb[0].mxu0
    %v3055 = vadd.f32 %v3003, %v3054
    %v3056 = vpop.f32.mrb[0].mxu0
    %v3057 = vpop.f32.mrb[0].mxu0
    %v3058 = vadd.f32 %v3003, %v3057
    %v3059 = vpop.f32.mrb[0].mxu0
    %3060 = vdwg.mxu0
    %vm3061 = vcmp.ge.f32.partialorder %v3055, 0.0
    %vm3062 = vcmp.ge.f32.partialorder %v3058, 0.0
    %v3063 = vmul.f32 %v3055, 0.2
    %v3064 = vmul.f32 %v3058, 0.2
    %v3065 = vsel %vm3061, %v3055, %v3063
    %v3066 = vsel %vm3062, %v3058, %v3064
    %v3067 = vpack.c.bf16 %v3066, %v3065
    %s3068 = scalar_lea.vmem %s16, 64
    %v3069 = vld [vmem:[%s3068] sm:$0xf]
    %v3070 = vld [vmem:[%s3068 + $0x4] sm:$0xf]
    %v3071 = vld [vmem:[%s3068 + $0x8] sm:$0xf]
    %v3072 = vld [vmem:[%s3068 + $0xc] sm:$0xf]
    %v3073 = vld [vmem:[%s3068 + $0x10] sm:$0xf]
    %v3074 = vld [vmem:[%s3068 + $0x14] sm:$0xf]
    %v3075 = vld [vmem:[%s3068 + $0x18] sm:$0xf]
    %v3076 = vld [vmem:[%s3068 + $0x1c] sm:$0xf]
    %v3077 = vld [vmem:[%s3068 + $0x20] sm:$0xf]
    %v3078 = vld [vmem:[%s3068 + $0x24] sm:$0xf]
    %v3079 = vld [vmem:[%s3068 + $0x28] sm:$0xf]
    %v3080 = vld [vmem:[%s3068 + $0x2c] sm:$0xf]
    %v3081 = vld [vmem:[%s3068 + $0x30] sm:$0xf]
    %v3082 = vld [vmem:[%s3068 + $0x34] sm:$0xf]
    %v3083 = vld [vmem:[%s3068 + $0x38] sm:$0xf]
    %v3084 = vld [vmem:[%s3068 + $0x3c] sm:$0xf]
    %s3085 = scalar_lea.vmem %s17, 1
    %v3086 = vld [vmem:[%s3085] sm:$0x1]
    %v3088 = vlaneseq
    %v3089 = vshrl.u32 %v3088, 7
    %v3090 = vsub.s32 0, %v3089
    %v3091 = vrot.slane %v3086, %v3090
    %v3109 = vunpack.c.l.b16 %v3069
    %v3110 = vunpack.c.l.b16 %v3070
    %v3111 = vunpack.c.l.b16 %v3071
    %v3112 = vunpack.c.l.b16 %v3072
    %v3113 = vunpack.c.l.b16 %v3073
    %v3114 = vunpack.c.l.b16 %v3074
    %v3115 = vunpack.c.l.b16 %v3075
    %v3116 = vunpack.c.l.b16 %v3076
    %v3117 = vunpack.c.l.b16 %v3077
    %v3118 = vunpack.c.l.b16 %v3078
    %v3119 = vunpack.c.l.b16 %v3079
    %v3120 = vunpack.c.l.b16 %v3080
    %v3121 = vunpack.c.l.b16 %v3081
    %v3122 = vunpack.c.l.b16 %v3082
    %v3123 = vunpack.c.l.b16 %v3083
    %v3124 = vunpack.c.l.b16 %v3084
    %v3125 = vpack.c.b16 %v3110, %v3109
    %v3126 = vpack.c.b16 %v3112, %v3111
    %v3127 = vpack.c.b16 %v3114, %v3113
    %v3128 = vpack.c.b16 %v3116, %v3115
    %v3129 = vpack.c.b16 %v3118, %v3117
    %v3130 = vpack.c.b16 %v3120, %v3119
    %v3131 = vpack.c.b16 %v3122, %v3121
    %v3132 = vpack.c.b16 %v3124, %v3123
    %3141 = vmatprep.subr.bf16.mxu0 0
    %3142 = vmatpush1.bf16.msra.mxu0 %v3125
    %3143 = vmatprep.subr.bf16.mxu0 0
    %3144 = vmatpush1.bf16.msra.mxu0 %v3126
    %3145 = vmatprep.subr.bf16.mxu0 0
    %3146 = vmatpush1.bf16.msra.mxu0 %v3127
    %3147 = vmatprep.subr.bf16.mxu0 0
    %3148 = vmatpush1.bf16.msra.mxu0 %v3128
    %3149 = vmatprep.subr.bf16.mxu0 0
    %3150 = vmatpush1.bf16.msra.mxu0 %v3129
    %3151 = vmatprep.subr.bf16.mxu0 0
    %3152 = vmatpush1.bf16.msra.mxu0 %v3130
    %3153 = vmatprep.subr.bf16.mxu0 0
    %3154 = vmatpush1.bf16.msra.mxu0 %v3131
    %3155 = vmatprep.subr.bf16.mxu0 0
    %3156 = vmatpush1.bf16.msra.mxu0 %v3132
    %3157 = vmatprep.subr.bf16.mxu0 0
    %3158 = vmatpush1.bf16.msra.mxu0 0
    %3159 = vmatprep.subr.bf16.mxu0 0
    %3160 = vmatpush1.bf16.msra.mxu0 0
    %3161 = vmatprep.subr.bf16.mxu0 0
    %3162 = vmatpush1.bf16.msra.mxu0 0
    %3163 = vmatprep.subr.bf16.mxu0 0
    %3164 = vmatpush1.bf16.msra.mxu0 0
    %3165 = vmatprep.subr.bf16.mxu0 0
    %3166 = vmatpush1.bf16.msra.mxu0 0
    %3167 = vmatprep.subr.bf16.mxu0 0
    %3168 = vmatpush1.bf16.msra.mxu0 0
    %3169 = vmatprep.subr.bf16.mxu0 0
    %3170 = vmatpush1.bf16.msra.mxu0 0
    %3171 = vmatprep.subr.bf16.mxu0 0
    %3172 = vmatpush1.bf16.msra.mxu0 0
    %3173 = vmatprep.mubr.bf16.mxu0 0
    %3174 = vmatmul.mubr.bf16.gmra.mrb[0].mxu0 %v3067
    %v3175 = vpop.f32.mrb[0].mxu0
    %v3176 = vadd.f32 %v3091, %v3175
    %v3177 = vpop.f32.mrb[0].mxu0
    %v3178 = vpop.f32.mrb[0].mxu0
    %v3179 = vadd.f32 %v3091, %v3178
    %v3180 = vpop.f32.mrb[0].mxu0
    %3181 = vdwg.mxu0
    %v3182 = vadd.f32 %v3176, %v2989
    %v3183 = vadd.f32 %v3179, %v2990
    %v3184 = vsel %vm394, %v3182, 0.0
    %3185 = vadd.xlane.f32.xlu0 %v3184
    %v3186 = vpop.xlane.xlu0 %3185
    %v3187 = vsel %vm394, %v3183, 0.0
    %3188 = vadd.xlane.f32.xlu0 %v3187
    %v3189 = vpop.xlane.xlu0 %3188
    %v3190 = vmul.f32 %v3186, %v1512
    %v3191 = vmul.f32 %v3189, %v1512
    %v3192 = vsub.f32 %v3182, %v3190
    %v3193 = vsub.f32 %v3183, %v3191
    %v3194 = vmul.f32 %v3192, %v3192
    %v3195 = vmul.f32 %v3193, %v3193
    %v3196 = vsel %vm394, %v3194, 0.0
    %3197 = vadd.xlane.f32.xlu0 %v3196
    %v3198 = vpop.xlane.xlu0 %3197
    %v3199 = vsel %vm394, %v3195, 0.0
    %3200 = vadd.xlane.f32.xlu0 %v3199
    %v3201 = vpop.xlane.xlu0 %3200
    %v3202 = vmul.f32 %v3198, %v1512
    %v3203 = vmul.f32 %v3201, %v1512
    %v3204 = vadd.f32 %v3202, 1e-05
    %v3205 = vadd.f32 %v3203, 1e-05
    %v3206 = vrsqrt.pop %v3204
    %v3207 = vrsqrt.pop %v3205
    %v3208 = vmul.f32 %v3192, %v3206
    %v3209 = vmul.f32 %v3193, %v3207
    %s3210 = scalar_lea.vmem %s18, 1
    %v3211 = vld [vmem:[%s3210] sm:$0x1]
    %v3213 = vlaneseq
    %v3214 = vshrl.u32 %v3213, 7
    %v3215 = vsub.s32 0, %v3214
    %v3216 = vrot.slane %v3211, %v3215
    %v3218 = vmul.f32 %v3208, %v3216
    %v3219 = vmul.f32 %v3209, %v3216
    %s3220 = scalar_lea.vmem %s19, 1
    %v3221 = vld [vmem:[%s3220] sm:$0x1]
    %v3223 = vlaneseq
    %v3224 = vshrl.u32 %v3223, 7
    %v3225 = vsub.s32 0, %v3224
    %v3226 = vrot.slane %v3221, %v3225
    %v3228 = vadd.f32 %v3218, %v3226
    %v3229 = vadd.f32 %v3219, %v3226
    %3230 = vst.msk [vmem:[#allocation5] sm:$0xff] %vm394, %v3228
    %3231 = vst.msk [vmem:[#allocation5 + $0x8] sm:$0xff] %vm394, %v3229
    // Predicated region
    $region86: #{tpu_custom_call.1} parent=1 // pred_check
      _
    $region87: #{tpu_custom_call.1} parent=1 // pred_check_branch
      %3233 = sbr.rel (0) target = $region89
    $region88: #{tpu_custom_call.1} parent=1 // pred_region
      %s3235 = ssub.s32 256, 256
      %3236 = vsyncadd [#allocation4], %s3235
      %s3237 = sshll.u32 [#allocation5], 4
      %s3238 = int_to_ptr.vmem [resolvable:$true] %s3237
      %3243 = dma.vmem_to_hbm [thread:$0]  %s3238, 256, %s20, [#allocation4], 128, 128, 8
    $region89: #{tpu_custom_call.1} parent=1 // pred_fallthru
      _
    // Predicated region
    $region90: #{tpu_custom_call.1} parent=1 // pred_check
      _
    $region91: #{tpu_custom_call.1} parent=1 // pred_check_branch
      %3245 = sbr.rel (0) target = $region93
    $region92: #{tpu_custom_call.1} parent=1 // pred_region
      %s3247 = ssub.s32 256, 256
      %3248 = vsyncadd [#allocation7], %s3247
      %s3249 = sshll.u32 [#allocation6], 4
      %s3250 = int_to_ptr.vmem [resolvable:$true] %s3249
      %3255 = dma.vmem_to_hbm [thread:$0]  %s3250, 256, %s21, [#allocation7], 128, 128, 8
    $region93: #{tpu_custom_call.1} parent=1 // pred_fallthru
      _
    // Predicated region
    $region94: #{tpu_custom_call.1} parent=1 // pred_check
      _
    $region95: #{tpu_custom_call.1} parent=1 // pred_check_branch
      %3257 = sbr.rel (0) target = $region97
    $region96: #{tpu_custom_call.1} parent=1 // pred_region
      %3258 = dma.done [#allocation4], 256
    $region97: #{tpu_custom_call.1} parent=1 // pred_fallthru
      _
    // Predicated region
    $region98: #{tpu_custom_call.1} parent=1 // pred_check
      _
    $region99: #{tpu_custom_call.1} parent=1 // pred_check_branch
      %3260 = sbr.rel (0) target = $region101
    $region100: #{tpu_custom_call.1} parent=1 // pred_region
      %3261 = dma.done [#allocation7], 256
    $region101: #{tpu_custom_call.1} parent=1 // pred_fallthru
      _
    %3262 = vsyncpa [#allocation3], 1
    %3263 = vsyncpa [#allocation4], 1
    %3264 = vsyncpa [#allocation7], 1

</llo_original>
